<compile_context>
chip_gen: v5e
topology: v5e:2x2
jax: 0.10.0
libtpu: 0.0.40
codegen_flags: <defaults>
</compile_context>

<pallas_src>
import functools

import jax
import jax.numpy as jnp
from jax.experimental import pallas as pl
from jax.experimental.pallas import tpu as pltpu


def _round_up(v, m):
    return (v + m - 1) // m * m


def _unet_mid_kernel(x_ref, w_ref, o_ref, panel_ref, *,
                     KD, KH, KW, Hp, Wp, Cin, P_over, OD, OH, OW, inv_n):
    # x_ref:     (1, Cin, S)          bf16, zero-padded flattened sample
    # w_ref:     (Cout, K3*Cin)       bf16, lane-dense fused conv weights
    # o_ref:     (1, Cout, P_over)    f32 normalized + activated conv output
    # panel_ref: (K3*Cin, P_over)     f32 VMEM im2col panel (scratch)

    # ---- build the im2col panel in VMEM --------------------------------
    # panel[k*Cin + c, p] = xpad[c, p + tap_off(k)], k = (kd*KH + kh)*KW + kw
    # (8-row f32 slabs at multiples of 8 -> dense, tile-aligned stores)
    for kd in range(KD):
        for kh in range(KH):
            for kw in range(KW):
                k = (kd * KH + kh) * KW + kw
                off = (kd * Hp + kh) * Wp + kw
                panel_ref[k * Cin:(k + 1) * Cin, :] = (
                    x_ref[0, :, off:off + P_over].astype(jnp.float32))

    # ---- one fused MXU matmul (single bf16 pass, f32 accumulation) -----
    acc = jnp.dot(w_ref[...], panel_ref[...].astype(jnp.bfloat16),
                  preferred_element_type=jnp.float32)      # (Cout, P_over)

    # ---- validity mask, built in-kernel (division-free) ----------------
    HpWp = Hp * Wp
    p = jax.lax.broadcasted_iota(jnp.int32, (1, P_over), 1)
    rem1 = p                                                # -> p mod (Hp*Wp)
    for _ in range((P_over - 1) // HpWp):
        rem1 = jnp.where(rem1 >= HpWp, rem1 - HpWp, rem1)
    rem2 = rem1                                             # -> p mod Wp
    for _ in range((HpWp - 1) // Wp):
        rem2 = jnp.where(rem2 >= Wp, rem2 - Wp, rem2)
    valid = (p < OD * HpWp) & (rem1 < OH * Wp) & (rem2 < OW)

    # ---- InstanceNorm3d (affine=False, eps=1e-5), single pass ----------
    ym = jnp.where(valid, acc, 0.0)
    s1 = jnp.sum(ym, axis=1, keepdims=True)                 # (Cout, 1)
    s2 = jnp.sum(ym * ym, axis=1, keepdims=True)            # (Cout, 1)
    mean = s1 * inv_n
    var = jnp.maximum(s2 * inv_n - mean * mean, 0.0)        # clamp (cancellation)
    y = (acc - mean) * jax.lax.rsqrt(var + 1e-5)

    # ---- LeakyReLU(0.2) -------------------------------------------------
    o_ref[0] = jnp.where(y > 0, y, 0.2 * y)


def unet_mid_forward(x, skip_input, weight):
    """x, skip_input: (N, C, D, H, W); weight: (Cout, 2*C, 4, 4, 4); no bias."""
    N, _, D, H, W = x.shape
    Cout, Cin, KD, KH, KW = weight.shape
    K3 = KD * KH * KW

    Dp, Hp, Wp = D + 2, H + 2, W + 2                        # conv padding = 1
    OD, OH, OW = Dp - KD + 1, Hp - KH + 1, Wp - KW + 1      # stride 1

    # Over-computed contiguous window: one conv output per flat padded position
    # p = od*Hp*Wp + oh*Wp + ow, kept lane-dense (multiple of 128).  Positions
    # with oh>=OH / ow>=OW / alignment tail are masked out of the statistics
    # and dropped by the (fused) epilogue slice.
    P_real = OD * Hp * Wp
    P_over = _round_up(P_real, 128)
    max_off = (KD - 1) * Hp * Wp + (KH - 1) * Wp + (KW - 1)
    flat_len = Dp * Hp * Wp
    S = max(flat_len, P_over + max_off)

    # prologue (fuses under jit): concat channels, spatial zero-pad, bf16 cast
    xcat = jnp.concatenate([x, skip_input], axis=1)         # (N, Cin, D, H, W)
    xp = jnp.pad(xcat, ((0, 0), (0, 0), (1, 1), (1, 1), (1, 1)))
    x_flat = xp.astype(jnp.bfloat16).reshape(N, Cin, flat_len)
    if S > flat_len:
        x_flat = jnp.pad(x_flat, ((0, 0), (0, 0), (0, S - flat_len)))

    # (Cout, Cin, kd, kh, kw) -> lane-dense (Cout, K3*Cin), row = k*Cin + c
    w2 = jnp.transpose(weight, (0, 2, 3, 4, 1)).reshape(Cout, K3 * Cin)
    w2 = w2.astype(jnp.bfloat16)

    kernel = functools.partial(
        _unet_mid_kernel, KD=KD, KH=KH, KW=KW, Hp=Hp, Wp=Wp, Cin=Cin,
        P_over=P_over, OD=OD, OH=OH, OW=OW, inv_n=1.0 / float(OD * OH * OW))

    out = pl.pallas_call(
        kernel,
        out_shape=jax.ShapeDtypeStruct((N, Cout, P_over), jnp.float32),
        grid_spec=pltpu.PrefetchScalarGridSpec(
            num_scalar_prefetch=0,
            grid=(N,),
            in_specs=[
                pl.BlockSpec((1, Cin, S), lambda n: (n, 0, 0)),
                pl.BlockSpec((Cout, K3 * Cin), lambda n: (0, 0)),
            ],
            out_specs=pl.BlockSpec((1, Cout, P_over), lambda n: (n, 0, 0)),
            scratch_shapes=[pltpu.VMEM((K3 * Cin, P_over), jnp.float32)],
        ),
        compiler_params=pltpu.CompilerParams(
            dimension_semantics=("parallel",)),
    )(x_flat, w2)

    # epilogue (fuses under jit): keep valid conv outputs, then
    # F.pad(x, (1, 0, 1, 0, 1, 0))
    y = out[:, :, :P_real].reshape(N, Cout, OD, Hp, Wp)[:, :, :, :OH, :OW]
    y = jnp.pad(y, ((0, 0), (0, 0), (1, 0), (1, 0), (1, 0)))
    return y                                                 # (N, Cout, D, H, W)


def _reference(x, skip_input, weight):
    """Pure-JAX reference reproducing the PyTorch module semantics."""
    xcat = jnp.concatenate([x, skip_input], axis=1)
    conv = jax.lax.conv_general_dilated(
        xcat, weight, window_strides=(1, 1, 1),
        padding=((1, 1), (1, 1), (1, 1)),
        dimension_numbers=("NCDHW", "OIDHW", "NCDHW"))
    mean = conv.mean(axis=(2, 3, 4), keepdims=True)
    var = ((conv - mean) ** 2).mean(axis=(2, 3, 4), keepdims=True)
    y = (conv - mean) / jnp.sqrt(var + 1e-5)
    y = jnp.where(y > 0, y, 0.2 * y)
    return jnp.pad(y, ((0, 0), (0, 0), (1, 0), (1, 0), (1, 0)))


if __name__ == "__main__":
    key = jax.random.PRNGKey(0)
    k1, k2, k3 = jax.random.split(key, 3)

    # small shapes consistent with the module: in_size = 2*C (concat), out_size = 8
    N, C, D, H, W = 2, 4, 8, 8, 8
    in_size, out_size = 2 * C, 8

    x = jax.random.normal(k1, (N, C, D, H, W), jnp.float32)
    skip = jax.random.normal(k2, (N, C, D, H, W), jnp.float32)
    # deterministic synthetic Conv3d weight: (out_size, in_size, 4, 4, 4), no bias
    weight = jax.random.normal(k3, (out_size, in_size, 4, 4, 4), jnp.float32) * 0.05

    fwd = jax.jit(unet_mid_forward)
    out = jax.block_until_ready(fwd(x, skip, weight))
    assert out.shape == (N, out_size, D, H, W), out.shape

    ref = jax.block_until_ready(_reference(x, skip, weight))
    max_err = float(jnp.max(jnp.abs(out - ref)))
    assert jnp.allclose(out, ref, atol=2e-2, rtol=2e-2), max_err

    print("KERNEL_OK")
</pallas_src>

<mosaic_0001>
module attributes {stable_mosaic.version = 11 : i64} {
  func.func @_unet_mid_kernel(%arg0: i32, %arg1: memref<1x8x1101xbf16, #tpu.memory_space<vmem>>, %arg2: memref<8x512xbf16, #tpu.memory_space<vmem>>, %arg3: memref<1x8x768xf32, #tpu.memory_space<vmem>>, %arg4: memref<512x768xf32, #tpu.memory_space<vmem>>) attributes {dimension_semantics = [#tpu.dimension_semantics<parallel>], iteration_bounds = array<i64: 2>, scalar_prefetch = 0 : i64, scratch_operands = 1 : i64, tpu.core_type = #tpu.core_type<tc>, window_params = [{transform_indices = @transform_0, window_bounds = array<i64: 1, 8, 1101>}, {pipeline_mode = #tpu.pipeline_mode<synchronous>, transform_indices = @transform_1, window_bounds = array<i64: 8, 512>}, {transform_indices = @transform_2, window_bounds = array<i64: 1, 8, 768>}]} {
    %c0 = arith.constant 0 : index
    %c0_0 = arith.constant 0 : index
    %c0_1 = arith.constant 0 : index
    %0 = vector.load %arg1[%c0, %c0_0, %c0_1] : memref<1x8x1101xbf16, #tpu.memory_space<vmem>>, vector<1x8x768xbf16>
    %1 = vector.shape_cast %0 : vector<1x8x768xbf16> to vector<8x768xbf16>
    %2 = arith.extf %1 : vector<8x768xbf16> to vector<8x768xf32>
    %c0_2 = arith.constant 0 : index
    %c0_3 = arith.constant 0 : index
    %3 = vector.load %arg4[%c0_2, %c0_3] : memref<512x768xf32, #tpu.memory_space<vmem>>, vector<8x768xf32>
    tpu.vector_store %arg4[%c0_2, %c0_3], %2 {strides = array<i32>} : memref<512x768xf32, #tpu.memory_space<vmem>>, vector<8x768xf32>,
    %c0_4 = arith.constant 0 : index
    %c0_5 = arith.constant 0 : index
    %c1 = arith.constant 1 : index
    %4 = vector.load %arg1[%c0_4, %c0_5, %c1] : memref<1x8x1101xbf16, #tpu.memory_space<vmem>>, vector<1x8x768xbf16>
    %5 = vector.shape_cast %4 : vector<1x8x768xbf16> to vector<8x768xbf16>
    %6 = arith.extf %5 : vector<8x768xbf16> to vector<8x768xf32>
    %c8 = arith.constant 8 : index
    %c0_6 = arith.constant 0 : index
    %7 = vector.load %arg4[%c8, %c0_6] : memref<512x768xf32, #tpu.memory_space<vmem>>, vector<8x768xf32>
    tpu.vector_store %arg4[%c8, %c0_6], %6 {strides = array<i32>} : memref<512x768xf32, #tpu.memory_space<vmem>>, vector<8x768xf32>,
    %c0_7 = arith.constant 0 : index
    %c0_8 = arith.constant 0 : index
    %c2 = arith.constant 2 : index
    %8 = vector.load %arg1[%c0_7, %c0_8, %c2] : memref<1x8x1101xbf16, #tpu.memory_space<vmem>>, vector<1x8x768xbf16>
    %9 = vector.shape_cast %8 : vector<1x8x768xbf16> to vector<8x768xbf16>
    %10 = arith.extf %9 : vector<8x768xbf16> to vector<8x768xf32>
    %c16 = arith.constant 16 : index
    %c0_9 = arith.constant 0 : index
    %11 = vector.load %arg4[%c16, %c0_9] : memref<512x768xf32, #tpu.memory_space<vmem>>, vector<8x768xf32>
    tpu.vector_store %arg4[%c16, %c0_9], %10 {strides = array<i32>} : memref<512x768xf32, #tpu.memory_space<vmem>>, vector<8x768xf32>,
    %c0_10 = arith.constant 0 : index
    %c0_11 = arith.constant 0 : index
    %c3 = arith.constant 3 : index
    %12 = vector.load %arg1[%c0_10, %c0_11, %c3] : memref<1x8x1101xbf16, #tpu.memory_space<vmem>>, vector<1x8x768xbf16>
    %13 = vector.shape_cast %12 : vector<1x8x768xbf16> to vector<8x768xbf16>
    %14 = arith.extf %13 : vector<8x768xbf16> to vector<8x768xf32>
    %c24 = arith.constant 24 : index
    %c0_12 = arith.constant 0 : index
    %15 = vector.load %arg4[%c24, %c0_12] : memref<512x768xf32, #tpu.memory_space<vmem>>, vector<8x768xf32>
    tpu.vector_store %arg4[%c24, %c0_12], %14 {strides = array<i32>} : memref<512x768xf32, #tpu.memory_space<vmem>>, vector<8x768xf32>,
    %c0_13 = arith.constant 0 : index
    %c0_14 = arith.constant 0 : index
    %c10 = arith.constant 10 : index
    %16 = vector.load %arg1[%c0_13, %c0_14, %c10] : memref<1x8x1101xbf16, #tpu.memory_space<vmem>>, vector<1x8x768xbf16>
    %17 = vector.shape_cast %16 : vector<1x8x768xbf16> to vector<8x768xbf16>
    %18 = arith.extf %17 : vector<8x768xbf16> to vector<8x768xf32>
    %c32 = arith.constant 32 : index
    %c0_15 = arith.constant 0 : index
    %19 = vector.load %arg4[%c32, %c0_15] : memref<512x768xf32, #tpu.memory_space<vmem>>, vector<8x768xf32>
    tpu.vector_store %arg4[%c32, %c0_15], %18 {strides = array<i32>} : memref<512x768xf32, #tpu.memory_space<vmem>>, vector<8x768xf32>,
    %c0_16 = arith.constant 0 : index
    %c0_17 = arith.constant 0 : index
    %c11 = arith.constant 11 : index
    %20 = vector.load %arg1[%c0_16, %c0_17, %c11] : memref<1x8x1101xbf16, #tpu.memory_space<vmem>>, vector<1x8x768xbf16>
    %21 = vector.shape_cast %20 : vector<1x8x768xbf16> to vector<8x768xbf16>
    %22 = arith.extf %21 : vector<8x768xbf16> to vector<8x768xf32>
    %c40 = arith.constant 40 : index
    %c0_18 = arith.constant 0 : index
    %23 = vector.load %arg4[%c40, %c0_18] : memref<512x768xf32, #tpu.memory_space<vmem>>, vector<8x768xf32>
    tpu.vector_store %arg4[%c40, %c0_18], %22 {strides = array<i32>} : memref<512x768xf32, #tpu.memory_space<vmem>>, vector<8x768xf32>,
    %c0_19 = arith.constant 0 : index
    %c0_20 = arith.constant 0 : index
    %c12 = arith.constant 12 : index
    %24 = vector.load %arg1[%c0_19, %c0_20, %c12] : memref<1x8x1101xbf16, #tpu.memory_space<vmem>>, vector<1x8x768xbf16>
    %25 = vector.shape_cast %24 : vector<1x8x768xbf16> to vector<8x768xbf16>
    %26 = arith.extf %25 : vector<8x768xbf16> to vector<8x768xf32>
    %c48 = arith.constant 48 : index
    %c0_21 = arith.constant 0 : index
    %27 = vector.load %arg4[%c48, %c0_21] : memref<512x768xf32, #tpu.memory_space<vmem>>, vector<8x768xf32>
    tpu.vector_store %arg4[%c48, %c0_21], %26 {strides = array<i32>} : memref<512x768xf32, #tpu.memory_space<vmem>>, vector<8x768xf32>,
    %c0_22 = arith.constant 0 : index
    %c0_23 = arith.constant 0 : index
    %c13 = arith.constant 13 : index
    %28 = vector.load %arg1[%c0_22, %c0_23, %c13] : memref<1x8x1101xbf16, #tpu.memory_space<vmem>>, vector<1x8x768xbf16>
    %29 = vector.shape_cast %28 : vector<1x8x768xbf16> to vector<8x768xbf16>
    %30 = arith.extf %29 : vector<8x768xbf16> to vector<8x768xf32>
    %c56 = arith.constant 56 : index
    %c0_24 = arith.constant 0 : index
    %31 = vector.load %arg4[%c56, %c0_24] : memref<512x768xf32, #tpu.memory_space<vmem>>, vector<8x768xf32>
    tpu.vector_store %arg4[%c56, %c0_24], %30 {strides = array<i32>} : memref<512x768xf32, #tpu.memory_space<vmem>>, vector<8x768xf32>,
    %c0_25 = arith.constant 0 : index
    %c0_26 = arith.constant 0 : index
    %c20 = arith.constant 20 : index
    %32 = vector.load %arg1[%c0_25, %c0_26, %c20] : memref<1x8x1101xbf16, #tpu.memory_space<vmem>>, vector<1x8x768xbf16>
    %33 = vector.shape_cast %32 : vector<1x8x768xbf16> to vector<8x768xbf16>
    %34 = arith.extf %33 : vector<8x768xbf16> to vector<8x768xf32>
    %c64 = arith.constant 64 : index
    %c0_27 = arith.constant 0 : index
    %35 = vector.load %arg4[%c64, %c0_27] : memref<512x768xf32, #tpu.memory_space<vmem>>, vector<8x768xf32>
    tpu.vector_store %arg4[%c64, %c0_27], %34 {strides = array<i32>} : memref<512x768xf32, #tpu.memory_space<vmem>>, vector<8x768xf32>,
    %c0_28 = arith.constant 0 : index
    %c0_29 = arith.constant 0 : index
    %c21 = arith.constant 21 : index
    %36 = vector.load %arg1[%c0_28, %c0_29, %c21] : memref<1x8x1101xbf16, #tpu.memory_space<vmem>>, vector<1x8x768xbf16>
    %37 = vector.shape_cast %36 : vector<1x8x768xbf16> to vector<8x768xbf16>
    %38 = arith.extf %37 : vector<8x768xbf16> to vector<8x768xf32>
    %c72 = arith.constant 72 : index
    %c0_30 = arith.constant 0 : index
    %39 = vector.load %arg4[%c72, %c0_30] : memref<512x768xf32, #tpu.memory_space<vmem>>, vector<8x768xf32>
    tpu.vector_store %arg4[%c72, %c0_30], %38 {strides = array<i32>} : memref<512x768xf32, #tpu.memory_space<vmem>>, vector<8x768xf32>,
    %c0_31 = arith.constant 0 : index
    %c0_32 = arith.constant 0 : index
    %c22 = arith.constant 22 : index
    %40 = vector.load %arg1[%c0_31, %c0_32, %c22] : memref<1x8x1101xbf16, #tpu.memory_space<vmem>>, vector<1x8x768xbf16>
    %41 = vector.shape_cast %40 : vector<1x8x768xbf16> to vector<8x768xbf16>
    %42 = arith.extf %41 : vector<8x768xbf16> to vector<8x768xf32>
    %c80 = arith.constant 80 : index
    %c0_33 = arith.constant 0 : index
    %43 = vector.load %arg4[%c80, %c0_33] : memref<512x768xf32, #tpu.memory_space<vmem>>, vector<8x768xf32>
    tpu.vector_store %arg4[%c80, %c0_33], %42 {strides = array<i32>} : memref<512x768xf32, #tpu.memory_space<vmem>>, vector<8x768xf32>,
    %c0_34 = arith.constant 0 : index
    %c0_35 = arith.constant 0 : index
    %c23 = arith.constant 23 : index
    %44 = vector.load %arg1[%c0_34, %c0_35, %c23] : memref<1x8x1101xbf16, #tpu.memory_space<vmem>>, vector<1x8x768xbf16>
    %45 = vector.shape_cast %44 : vector<1x8x768xbf16> to vector<8x768xbf16>
    %46 = arith.extf %45 : vector<8x768xbf16> to vector<8x768xf32>
    %c88 = arith.constant 88 : index
    %c0_36 = arith.constant 0 : index
    %47 = vector.load %arg4[%c88, %c0_36] : memref<512x768xf32, #tpu.memory_space<vmem>>, vector<8x768xf32>
    tpu.vector_store %arg4[%c88, %c0_36], %46 {strides = array<i32>} : memref<512x768xf32, #tpu.memory_space<vmem>>, vector<8x768xf32>,
    %c0_37 = arith.constant 0 : index
    %c0_38 = arith.constant 0 : index
    %c30 = arith.constant 30 : index
    %48 = vector.load %arg1[%c0_37, %c0_38, %c30] : memref<1x8x1101xbf16, #tpu.memory_space<vmem>>, vector<1x8x768xbf16>
    %49 = vector.shape_cast %48 : vector<1x8x768xbf16> to vector<8x768xbf16>
    %50 = arith.extf %49 : vector<8x768xbf16> to vector<8x768xf32>
    %c96 = arith.constant 96 : index
    %c0_39 = arith.constant 0 : index
    %51 = vector.load %arg4[%c96, %c0_39] : memref<512x768xf32, #tpu.memory_space<vmem>>, vector<8x768xf32>
    tpu.vector_store %arg4[%c96, %c0_39], %50 {strides = array<i32>} : memref<512x768xf32, #tpu.memory_space<vmem>>, vector<8x768xf32>,
    %c0_40 = arith.constant 0 : index
    %c0_41 = arith.constant 0 : index
    %c31 = arith.constant 31 : index
    %52 = vector.load %arg1[%c0_40, %c0_41, %c31] : memref<1x8x1101xbf16, #tpu.memory_space<vmem>>, vector<1x8x768xbf16>
    %53 = vector.shape_cast %52 : vector<1x8x768xbf16> to vector<8x768xbf16>
    %54 = arith.extf %53 : vector<8x768xbf16> to vector<8x768xf32>
    %c104 = arith.constant 104 : index
    %c0_42 = arith.constant 0 : index
    %55 = vector.load %arg4[%c104, %c0_42] : memref<512x768xf32, #tpu.memory_space<vmem>>, vector<8x768xf32>
    tpu.vector_store %arg4[%c104, %c0_42], %54 {strides = array<i32>} : memref<512x768xf32, #tpu.memory_space<vmem>>, vector<8x768xf32>,
    %c0_43 = arith.constant 0 : index
    %c0_44 = arith.constant 0 : index
    %c32_45 = arith.constant 32 : index
    %56 = vector.load %arg1[%c0_43, %c0_44, %c32_45] : memref<1x8x1101xbf16, #tpu.memory_space<vmem>>, vector<1x8x768xbf16>
    %57 = vector.shape_cast %56 : vector<1x8x768xbf16> to vector<8x768xbf16>
    %58 = arith.extf %57 : vector<8x768xbf16> to vector<8x768xf32>
    %c112 = arith.constant 112 : index
    %c0_46 = arith.constant 0 : index
    %59 = vector.load %arg4[%c112, %c0_46] : memref<512x768xf32, #tpu.memory_space<vmem>>, vector<8x768xf32>
    tpu.vector_store %arg4[%c112, %c0_46], %58 {strides = array<i32>} : memref<512x768xf32, #tpu.memory_space<vmem>>, vector<8x768xf32>,
    %c0_47 = arith.constant 0 : index
    %c0_48 = arith.constant 0 : index
    %c33 = arith.constant 33 : index
    %60 = vector.load %arg1[%c0_47, %c0_48, %c33] : memref<1x8x1101xbf16, #tpu.memory_space<vmem>>, vector<1x8x768xbf16>
    %61 = vector.shape_cast %60 : vector<1x8x768xbf16> to vector<8x768xbf16>
    %62 = arith.extf %61 : vector<8x768xbf16> to vector<8x768xf32>
    %c120 = arith.constant 120 : index
    %c0_49 = arith.constant 0 : index
    %63 = vector.load %arg4[%c120, %c0_49] : memref<512x768xf32, #tpu.memory_space<vmem>>, vector<8x768xf32>
    tpu.vector_store %arg4[%c120, %c0_49], %62 {strides = array<i32>} : memref<512x768xf32, #tpu.memory_space<vmem>>, vector<8x768xf32>,
    %c0_50 = arith.constant 0 : index
    %c0_51 = arith.constant 0 : index
    %c100 = arith.constant 100 : index
    %64 = vector.load %arg1[%c0_50, %c0_51, %c100] : memref<1x8x1101xbf16, #tpu.memory_space<vmem>>, vector<1x8x768xbf16>
    %65 = vector.shape_cast %64 : vector<1x8x768xbf16> to vector<8x768xbf16>
    %66 = arith.extf %65 : vector<8x768xbf16> to vector<8x768xf32>
    %c128 = arith.constant 128 : index
    %c0_52 = arith.constant 0 : index
    %67 = vector.load %arg4[%c128, %c0_52] : memref<512x768xf32, #tpu.memory_space<vmem>>, vector<8x768xf32>
    tpu.vector_store %arg4[%c128, %c0_52], %66 {strides = array<i32>} : memref<512x768xf32, #tpu.memory_space<vmem>>, vector<8x768xf32>,
    %c0_53 = arith.constant 0 : index
    %c0_54 = arith.constant 0 : index
    %c101 = arith.constant 101 : index
    %68 = vector.load %arg1[%c0_53, %c0_54, %c101] : memref<1x8x1101xbf16, #tpu.memory_space<vmem>>, vector<1x8x768xbf16>
    %69 = vector.shape_cast %68 : vector<1x8x768xbf16> to vector<8x768xbf16>
    %70 = arith.extf %69 : vector<8x768xbf16> to vector<8x768xf32>
    %c136 = arith.constant 136 : index
    %c0_55 = arith.constant 0 : index
    %71 = vector.load %arg4[%c136, %c0_55] : memref<512x768xf32, #tpu.memory_space<vmem>>, vector<8x768xf32>
    tpu.vector_store %arg4[%c136, %c0_55], %70 {strides = array<i32>} : memref<512x768xf32, #tpu.memory_space<vmem>>, vector<8x768xf32>,
    %c0_56 = arith.constant 0 : index
    %c0_57 = arith.constant 0 : index
    %c102 = arith.constant 102 : index
    %72 = vector.load %arg1[%c0_56, %c0_57, %c102] : memref<1x8x1101xbf16, #tpu.memory_space<vmem>>, vector<1x8x768xbf16>
    %73 = vector.shape_cast %72 : vector<1x8x768xbf16> to vector<8x768xbf16>
    %74 = arith.extf %73 : vector<8x768xbf16> to vector<8x768xf32>
    %c144 = arith.constant 144 : index
    %c0_58 = arith.constant 0 : index
    %75 = vector.load %arg4[%c144, %c0_58] : memref<512x768xf32, #tpu.memory_space<vmem>>, vector<8x768xf32>
    tpu.vector_store %arg4[%c144, %c0_58], %74 {strides = array<i32>} : memref<512x768xf32, #tpu.memory_space<vmem>>, vector<8x768xf32>,
    %c0_59 = arith.constant 0 : index
    %c0_60 = arith.constant 0 : index
    %c103 = arith.constant 103 : index
    %76 = vector.load %arg1[%c0_59, %c0_60, %c103] : memref<1x8x1101xbf16, #tpu.memory_space<vmem>>, vector<1x8x768xbf16>
    %77 = vector.shape_cast %76 : vector<1x8x768xbf16> to vector<8x768xbf16>
    %78 = arith.extf %77 : vector<8x768xbf16> to vector<8x768xf32>
    %c152 = arith.constant 152 : index
    %c0_61 = arith.constant 0 : index
    %79 = vector.load %arg4[%c152, %c0_61] : memref<512x768xf32, #tpu.memory_space<vmem>>, vector<8x768xf32>
    tpu.vector_store %arg4[%c152, %c0_61], %78 {strides = array<i32>} : memref<512x768xf32, #tpu.memory_space<vmem>>, vector<8x768xf32>,
    %c0_62 = arith.constant 0 : index
    %c0_63 = arith.constant 0 : index
    %c110 = arith.constant 110 : index
    %80 = vector.load %arg1[%c0_62, %c0_63, %c110] : memref<1x8x1101xbf16, #tpu.memory_space<vmem>>, vector<1x8x768xbf16>
    %81 = vector.shape_cast %80 : vector<1x8x768xbf16> to vector<8x768xbf16>
    %82 = arith.extf %81 : vector<8x768xbf16> to vector<8x768xf32>
    %c160 = arith.constant 160 : index
    %c0_64 = arith.constant 0 : index
    %83 = vector.load %arg4[%c160, %c0_64] : memref<512x768xf32, #tpu.memory_space<vmem>>, vector<8x768xf32>
    tpu.vector_store %arg4[%c160, %c0_64], %82 {strides = array<i32>} : memref<512x768xf32, #tpu.memory_space<vmem>>, vector<8x768xf32>,
    %c0_65 = arith.constant 0 : index
    %c0_66 = arith.constant 0 : index
    %c111 = arith.constant 111 : index
    %84 = vector.load %arg1[%c0_65, %c0_66, %c111] : memref<1x8x1101xbf16, #tpu.memory_space<vmem>>, vector<1x8x768xbf16>
    %85 = vector.shape_cast %84 : vector<1x8x768xbf16> to vector<8x768xbf16>
    %86 = arith.extf %85 : vector<8x768xbf16> to vector<8x768xf32>
    %c168 = arith.constant 168 : index
    %c0_67 = arith.constant 0 : index
    %87 = vector.load %arg4[%c168, %c0_67] : memref<512x768xf32, #tpu.memory_space<vmem>>, vector<8x768xf32>
    tpu.vector_store %arg4[%c168, %c0_67], %86 {strides = array<i32>} : memref<512x768xf32, #tpu.memory_space<vmem>>, vector<8x768xf32>,
    %c0_68 = arith.constant 0 : index
    %c0_69 = arith.constant 0 : index
    %c112_70 = arith.constant 112 : index
    %88 = vector.load %arg1[%c0_68, %c0_69, %c112_70] : memref<1x8x1101xbf16, #tpu.memory_space<vmem>>, vector<1x8x768xbf16>
    %89 = vector.shape_cast %88 : vector<1x8x768xbf16> to vector<8x768xbf16>
    %90 = arith.extf %89 : vector<8x768xbf16> to vector<8x768xf32>
    %c176 = arith.constant 176 : index
    %c0_71 = arith.constant 0 : index
    %91 = vector.load %arg4[%c176, %c0_71] : memref<512x768xf32, #tpu.memory_space<vmem>>, vector<8x768xf32>
    tpu.vector_store %arg4[%c176, %c0_71], %90 {strides = array<i32>} : memref<512x768xf32, #tpu.memory_space<vmem>>, vector<8x768xf32>,
    %c0_72 = arith.constant 0 : index
    %c0_73 = arith.constant 0 : index
    %c113 = arith.constant 113 : index
    %92 = vector.load %arg1[%c0_72, %c0_73, %c113] : memref<1x8x1101xbf16, #tpu.memory_space<vmem>>, vector<1x8x768xbf16>
    %93 = vector.shape_cast %92 : vector<1x8x768xbf16> to vector<8x768xbf16>
    %94 = arith.extf %93 : vector<8x768xbf16> to vector<8x768xf32>
    %c184 = arith.constant 184 : index
    %c0_74 = arith.constant 0 : index
    %95 = vector.load %arg4[%c184, %c0_74] : memref<512x768xf32, #tpu.memory_space<vmem>>, vector<8x768xf32>
    tpu.vector_store %arg4[%c184, %c0_74], %94 {strides = array<i32>} : memref<512x768xf32, #tpu.memory_space<vmem>>, vector<8x768xf32>,
    %c0_75 = arith.constant 0 : index
    %c0_76 = arith.constant 0 : index
    %c120_77 = arith.constant 120 : index
    %96 = vector.load %arg1[%c0_75, %c0_76, %c120_77] : memref<1x8x1101xbf16, #tpu.memory_space<vmem>>, vector<1x8x768xbf16>
    %97 = vector.shape_cast %96 : vector<1x8x768xbf16> to vector<8x768xbf16>
    %98 = arith.extf %97 : vector<8x768xbf16> to vector<8x768xf32>
    %c192 = arith.constant 192 : index
    %c0_78 = arith.constant 0 : index
    %99 = vector.load %arg4[%c192, %c0_78] : memref<512x768xf32, #tpu.memory_space<vmem>>, vector<8x768xf32>
    tpu.vector_store %arg4[%c192, %c0_78], %98 {strides = array<i32>} : memref<512x768xf32, #tpu.memory_space<vmem>>, vector<8x768xf32>,
    %c0_79 = arith.constant 0 : index
    %c0_80 = arith.constant 0 : index
    %c121 = arith.constant 121 : index
    %100 = vector.load %arg1[%c0_79, %c0_80, %c121] : memref<1x8x1101xbf16, #tpu.memory_space<vmem>>, vector<1x8x768xbf16>
    %101 = vector.shape_cast %100 : vector<1x8x768xbf16> to vector<8x768xbf16>
    %102 = arith.extf %101 : vector<8x768xbf16> to vector<8x768xf32>
    %c200 = arith.constant 200 : index
    %c0_81 = arith.constant 0 : index
    %103 = vector.load %arg4[%c200, %c0_81] : memref<512x768xf32, #tpu.memory_space<vmem>>, vector<8x768xf32>
    tpu.vector_store %arg4[%c200, %c0_81], %102 {strides = array<i32>} : memref<512x768xf32, #tpu.memory_space<vmem>>, vector<8x768xf32>,
    %c0_82 = arith.constant 0 : index
    %c0_83 = arith.constant 0 : index
    %c122 = arith.constant 122 : index
    %104 = vector.load %arg1[%c0_82, %c0_83, %c122] : memref<1x8x1101xbf16, #tpu.memory_space<vmem>>, vector<1x8x768xbf16>
    %105 = vector.shape_cast %104 : vector<1x8x768xbf16> to vector<8x768xbf16>
    %106 = arith.extf %105 : vector<8x768xbf16> to vector<8x768xf32>
    %c208 = arith.constant 208 : index
    %c0_84 = arith.constant 0 : index
    %107 = vector.load %arg4[%c208, %c0_84] : memref<512x768xf32, #tpu.memory_space<vmem>>, vector<8x768xf32>
    tpu.vector_store %arg4[%c208, %c0_84], %106 {strides = array<i32>} : memref<512x768xf32, #tpu.memory_space<vmem>>, vector<8x768xf32>,
    %c0_85 = arith.constant 0 : index
    %c0_86 = arith.constant 0 : index
    %c123 = arith.constant 123 : index
    %108 = vector.load %arg1[%c0_85, %c0_86, %c123] : memref<1x8x1101xbf16, #tpu.memory_space<vmem>>, vector<1x8x768xbf16>
    %109 = vector.shape_cast %108 : vector<1x8x768xbf16> to vector<8x768xbf16>
    %110 = arith.extf %109 : vector<8x768xbf16> to vector<8x768xf32>
    %c216 = arith.constant 216 : index
    %c0_87 = arith.constant 0 : index
    %111 = vector.load %arg4[%c216, %c0_87] : memref<512x768xf32, #tpu.memory_space<vmem>>, vector<8x768xf32>
    tpu.vector_store %arg4[%c216, %c0_87], %110 {strides = array<i32>} : memref<512x768xf32, #tpu.memory_space<vmem>>, vector<8x768xf32>,
    %c0_88 = arith.constant 0 : index
    %c0_89 = arith.constant 0 : index
    %c130 = arith.constant 130 : index
    %112 = vector.load %arg1[%c0_88, %c0_89, %c130] : memref<1x8x1101xbf16, #tpu.memory_space<vmem>>, vector<1x8x768xbf16>
    %113 = vector.shape_cast %112 : vector<1x8x768xbf16> to vector<8x768xbf16>
    %114 = arith.extf %113 : vector<8x768xbf16> to vector<8x768xf32>
    %c224 = arith.constant 224 : index
    %c0_90 = arith.constant 0 : index
    %115 = vector.load %arg4[%c224, %c0_90] : memref<512x768xf32, #tpu.memory_space<vmem>>, vector<8x768xf32>
    tpu.vector_store %arg4[%c224, %c0_90], %114 {strides = array<i32>} : memref<512x768xf32, #tpu.memory_space<vmem>>, vector<8x768xf32>,
    %c0_91 = arith.constant 0 : index
    %c0_92 = arith.constant 0 : index
    %c131 = arith.constant 131 : index
    %116 = vector.load %arg1[%c0_91, %c0_92, %c131] : memref<1x8x1101xbf16, #tpu.memory_space<vmem>>, vector<1x8x768xbf16>
    %117 = vector.shape_cast %116 : vector<1x8x768xbf16> to vector<8x768xbf16>
    %118 = arith.extf %117 : vector<8x768xbf16> to vector<8x768xf32>
    %c232 = arith.constant 232 : index
    %c0_93 = arith.constant 0 : index
    %119 = vector.load %arg4[%c232, %c0_93] : memref<512x768xf32, #tpu.memory_space<vmem>>, vector<8x768xf32>
    tpu.vector_store %arg4[%c232, %c0_93], %118 {strides = array<i32>} : memref<512x768xf32, #tpu.memory_space<vmem>>, vector<8x768xf32>,
    %c0_94 = arith.constant 0 : index
    %c0_95 = arith.constant 0 : index
    %c132 = arith.constant 132 : index
    %120 = vector.load %arg1[%c0_94, %c0_95, %c132] : memref<1x8x1101xbf16, #tpu.memory_space<vmem>>, vector<1x8x768xbf16>
    %121 = vector.shape_cast %120 : vector<1x8x768xbf16> to vector<8x768xbf16>
    %122 = arith.extf %121 : vector<8x768xbf16> to vector<8x768xf32>
    %c240 = arith.constant 240 : index
    %c0_96 = arith.constant 0 : index
    %123 = vector.load %arg4[%c240, %c0_96] : memref<512x768xf32, #tpu.memory_space<vmem>>, vector<8x768xf32>
    tpu.vector_store %arg4[%c240, %c0_96], %122 {strides = array<i32>} : memref<512x768xf32, #tpu.memory_space<vmem>>, vector<8x768xf32>,
    %c0_97 = arith.constant 0 : index
    %c0_98 = arith.constant 0 : index
    %c133 = arith.constant 133 : index
    %124 = vector.load %arg1[%c0_97, %c0_98, %c133] : memref<1x8x1101xbf16, #tpu.memory_space<vmem>>, vector<1x8x768xbf16>
    %125 = vector.shape_cast %124 : vector<1x8x768xbf16> to vector<8x768xbf16>
    %126 = arith.extf %125 : vector<8x768xbf16> to vector<8x768xf32>
    %c248 = arith.constant 248 : index
    %c0_99 = arith.constant 0 : index
    %127 = vector.load %arg4[%c248, %c0_99] : memref<512x768xf32, #tpu.memory_space<vmem>>, vector<8x768xf32>
    tpu.vector_store %arg4[%c248, %c0_99], %126 {strides = array<i32>} : memref<512x768xf32, #tpu.memory_space<vmem>>, vector<8x768xf32>,
    %c0_100 = arith.constant 0 : index
    %c0_101 = arith.constant 0 : index
    %c200_102 = arith.constant 200 : index
    %128 = vector.load %arg1[%c0_100, %c0_101, %c200_102] : memref<1x8x1101xbf16, #tpu.memory_space<vmem>>, vector<1x8x768xbf16>
    %129 = vector.shape_cast %128 : vector<1x8x768xbf16> to vector<8x768xbf16>
    %130 = arith.extf %129 : vector<8x768xbf16> to vector<8x768xf32>
    %c256 = arith.constant 256 : index
    %c0_103 = arith.constant 0 : index
    %131 = vector.load %arg4[%c256, %c0_103] : memref<512x768xf32, #tpu.memory_space<vmem>>, vector<8x768xf32>
    tpu.vector_store %arg4[%c256, %c0_103], %130 {strides = array<i32>} : memref<512x768xf32, #tpu.memory_space<vmem>>, vector<8x768xf32>,
    %c0_104 = arith.constant 0 : index
    %c0_105 = arith.constant 0 : index
    %c201 = arith.constant 201 : index
    %132 = vector.load %arg1[%c0_104, %c0_105, %c201] : memref<1x8x1101xbf16, #tpu.memory_space<vmem>>, vector<1x8x768xbf16>
    %133 = vector.shape_cast %132 : vector<1x8x768xbf16> to vector<8x768xbf16>
    %134 = arith.extf %133 : vector<8x768xbf16> to vector<8x768xf32>
    %c264 = arith.constant 264 : index
    %c0_106 = arith.constant 0 : index
    %135 = vector.load %arg4[%c264, %c0_106] : memref<512x768xf32, #tpu.memory_space<vmem>>, vector<8x768xf32>
    tpu.vector_store %arg4[%c264, %c0_106], %134 {strides = array<i32>} : memref<512x768xf32, #tpu.memory_space<vmem>>, vector<8x768xf32>,
    %c0_107 = arith.constant 0 : index
    %c0_108 = arith.constant 0 : index
    %c202 = arith.constant 202 : index
    %136 = vector.load %arg1[%c0_107, %c0_108, %c202] : memref<1x8x1101xbf16, #tpu.memory_space<vmem>>, vector<1x8x768xbf16>
    %137 = vector.shape_cast %136 : vector<1x8x768xbf16> to vector<8x768xbf16>
    %138 = arith.extf %137 : vector<8x768xbf16> to vector<8x768xf32>
    %c272 = arith.constant 272 : index
    %c0_109 = arith.constant 0 : index
    %139 = vector.load %arg4[%c272, %c0_109] : memref<512x768xf32, #tpu.memory_space<vmem>>, vector<8x768xf32>
    tpu.vector_store %arg4[%c272, %c0_109], %138 {strides = array<i32>} : memref<512x768xf32, #tpu.memory_space<vmem>>, vector<8x768xf32>,
    %c0_110 = arith.constant 0 : index
    %c0_111 = arith.constant 0 : index
    %c203 = arith.constant 203 : index
    %140 = vector.load %arg1[%c0_110, %c0_111, %c203] : memref<1x8x1101xbf16, #tpu.memory_space<vmem>>, vector<1x8x768xbf16>
    %141 = vector.shape_cast %140 : vector<1x8x768xbf16> to vector<8x768xbf16>
    %142 = arith.extf %141 : vector<8x768xbf16> to vector<8x768xf32>
    %c280 = arith.constant 280 : index
    %c0_112 = arith.constant 0 : index
    %143 = vector.load %arg4[%c280, %c0_112] : memref<512x768xf32, #tpu.memory_space<vmem>>, vector<8x768xf32>
    tpu.vector_store %arg4[%c280, %c0_112], %142 {strides = array<i32>} : memref<512x768xf32, #tpu.memory_space<vmem>>, vector<8x768xf32>,
    %c0_113 = arith.constant 0 : index
    %c0_114 = arith.constant 0 : index
    %c210 = arith.constant 210 : index
    %144 = vector.load %arg1[%c0_113, %c0_114, %c210] : memref<1x8x1101xbf16, #tpu.memory_space<vmem>>, vector<1x8x768xbf16>
    %145 = vector.shape_cast %144 : vector<1x8x768xbf16> to vector<8x768xbf16>
    %146 = arith.extf %145 : vector<8x768xbf16> to vector<8x768xf32>
    %c288 = arith.constant 288 : index
    %c0_115 = arith.constant 0 : index
    %147 = vector.load %arg4[%c288, %c0_115] : memref<512x768xf32, #tpu.memory_space<vmem>>, vector<8x768xf32>
    tpu.vector_store %arg4[%c288, %c0_115], %146 {strides = array<i32>} : memref<512x768xf32, #tpu.memory_space<vmem>>, vector<8x768xf32>,
    %c0_116 = arith.constant 0 : index
    %c0_117 = arith.constant 0 : index
    %c211 = arith.constant 211 : index
    %148 = vector.load %arg1[%c0_116, %c0_117, %c211] : memref<1x8x1101xbf16, #tpu.memory_space<vmem>>, vector<1x8x768xbf16>
    %149 = vector.shape_cast %148 : vector<1x8x768xbf16> to vector<8x768xbf16>
    %150 = arith.extf %149 : vector<8x768xbf16> to vector<8x768xf32>
    %c296 = arith.constant 296 : index
    %c0_118 = arith.constant 0 : index
    %151 = vector.load %arg4[%c296, %c0_118] : memref<512x768xf32, #tpu.memory_space<vmem>>, vector<8x768xf32>
    tpu.vector_store %arg4[%c296, %c0_118], %150 {strides = array<i32>} : memref<512x768xf32, #tpu.memory_space<vmem>>, vector<8x768xf32>,
    %c0_119 = arith.constant 0 : index
    %c0_120 = arith.constant 0 : index
    %c212 = arith.constant 212 : index
    %152 = vector.load %arg1[%c0_119, %c0_120, %c212] : memref<1x8x1101xbf16, #tpu.memory_space<vmem>>, vector<1x8x768xbf16>
    %153 = vector.shape_cast %152 : vector<1x8x768xbf16> to vector<8x768xbf16>
    %154 = arith.extf %153 : vector<8x768xbf16> to vector<8x768xf32>
    %c304 = arith.constant 304 : index
    %c0_121 = arith.constant 0 : index
    %155 = vector.load %arg4[%c304, %c0_121] : memref<512x768xf32, #tpu.memory_space<vmem>>, vector<8x768xf32>
    tpu.vector_store %arg4[%c304, %c0_121], %154 {strides = array<i32>} : memref<512x768xf32, #tpu.memory_space<vmem>>, vector<8x768xf32>,
    %c0_122 = arith.constant 0 : index
    %c0_123 = arith.constant 0 : index
    %c213 = arith.constant 213 : index
    %156 = vector.load %arg1[%c0_122, %c0_123, %c213] : memref<1x8x1101xbf16, #tpu.memory_space<vmem>>, vector<1x8x768xbf16>
    %157 = vector.shape_cast %156 : vector<1x8x768xbf16> to vector<8x768xbf16>
    %158 = arith.extf %157 : vector<8x768xbf16> to vector<8x768xf32>
    %c312 = arith.constant 312 : index
    %c0_124 = arith.constant 0 : index
    %159 = vector.load %arg4[%c312, %c0_124] : memref<512x768xf32, #tpu.memory_space<vmem>>, vector<8x768xf32>
    tpu.vector_store %arg4[%c312, %c0_124], %158 {strides = array<i32>} : memref<512x768xf32, #tpu.memory_space<vmem>>, vector<8x768xf32>,
    %c0_125 = arith.constant 0 : index
    %c0_126 = arith.constant 0 : index
    %c220 = arith.constant 220 : index
    %160 = vector.load %arg1[%c0_125, %c0_126, %c220] : memref<1x8x1101xbf16, #tpu.memory_space<vmem>>, vector<1x8x768xbf16>
    %161 = vector.shape_cast %160 : vector<1x8x768xbf16> to vector<8x768xbf16>
    %162 = arith.extf %161 : vector<8x768xbf16> to vector<8x768xf32>
    %c320 = arith.constant 320 : index
    %c0_127 = arith.constant 0 : index
    %163 = vector.load %arg4[%c320, %c0_127] : memref<512x768xf32, #tpu.memory_space<vmem>>, vector<8x768xf32>
    tpu.vector_store %arg4[%c320, %c0_127], %162 {strides = array<i32>} : memref<512x768xf32, #tpu.memory_space<vmem>>, vector<8x768xf32>,
    %c0_128 = arith.constant 0 : index
    %c0_129 = arith.constant 0 : index
    %c221 = arith.constant 221 : index
    %164 = vector.load %arg1[%c0_128, %c0_129, %c221] : memref<1x8x1101xbf16, #tpu.memory_space<vmem>>, vector<1x8x768xbf16>
    %165 = vector.shape_cast %164 : vector<1x8x768xbf16> to vector<8x768xbf16>
    %166 = arith.extf %165 : vector<8x768xbf16> to vector<8x768xf32>
    %c328 = arith.constant 328 : index
    %c0_130 = arith.constant 0 : index
    %167 = vector.load %arg4[%c328, %c0_130] : memref<512x768xf32, #tpu.memory_space<vmem>>, vector<8x768xf32>
    tpu.vector_store %arg4[%c328, %c0_130], %166 {strides = array<i32>} : memref<512x768xf32, #tpu.memory_space<vmem>>, vector<8x768xf32>,
    %c0_131 = arith.constant 0 : index
    %c0_132 = arith.constant 0 : index
    %c222 = arith.constant 222 : index
    %168 = vector.load %arg1[%c0_131, %c0_132, %c222] : memref<1x8x1101xbf16, #tpu.memory_space<vmem>>, vector<1x8x768xbf16>
    %169 = vector.shape_cast %168 : vector<1x8x768xbf16> to vector<8x768xbf16>
    %170 = arith.extf %169 : vector<8x768xbf16> to vector<8x768xf32>
    %c336 = arith.constant 336 : index
    %c0_133 = arith.constant 0 : index
    %171 = vector.load %arg4[%c336, %c0_133] : memref<512x768xf32, #tpu.memory_space<vmem>>, vector<8x768xf32>
    tpu.vector_store %arg4[%c336, %c0_133], %170 {strides = array<i32>} : memref<512x768xf32, #tpu.memory_space<vmem>>, vector<8x768xf32>,
    %c0_134 = arith.constant 0 : index
    %c0_135 = arith.constant 0 : index
    %c223 = arith.constant 223 : index
    %172 = vector.load %arg1[%c0_134, %c0_135, %c223] : memref<1x8x1101xbf16, #tpu.memory_space<vmem>>, vector<1x8x768xbf16>
    %173 = vector.shape_cast %172 : vector<1x8x768xbf16> to vector<8x768xbf16>
    %174 = arith.extf %173 : vector<8x768xbf16> to vector<8x768xf32>
    %c344 = arith.constant 344 : index
    %c0_136 = arith.constant 0 : index
    %175 = vector.load %arg4[%c344, %c0_136] : memref<512x768xf32, #tpu.memory_space<vmem>>, vector<8x768xf32>
    tpu.vector_store %arg4[%c344, %c0_136], %174 {strides = array<i32>} : memref<512x768xf32, #tpu.memory_space<vmem>>, vector<8x768xf32>,
    %c0_137 = arith.constant 0 : index
    %c0_138 = arith.constant 0 : index
    %c230 = arith.constant 230 : index
    %176 = vector.load %arg1[%c0_137, %c0_138, %c230] : memref<1x8x1101xbf16, #tpu.memory_space<vmem>>, vector<1x8x768xbf16>
    %177 = vector.shape_cast %176 : vector<1x8x768xbf16> to vector<8x768xbf16>
    %178 = arith.extf %177 : vector<8x768xbf16> to vector<8x768xf32>
    %c352 = arith.constant 352 : index
    %c0_139 = arith.constant 0 : index
    %179 = vector.load %arg4[%c352, %c0_139] : memref<512x768xf32, #tpu.memory_space<vmem>>, vector<8x768xf32>
    tpu.vector_store %arg4[%c352, %c0_139], %178 {strides = array<i32>} : memref<512x768xf32, #tpu.memory_space<vmem>>, vector<8x768xf32>,
    %c0_140 = arith.constant 0 : index
    %c0_141 = arith.constant 0 : index
    %c231 = arith.constant 231 : index
    %180 = vector.load %arg1[%c0_140, %c0_141, %c231] : memref<1x8x1101xbf16, #tpu.memory_space<vmem>>, vector<1x8x768xbf16>
    %181 = vector.shape_cast %180 : vector<1x8x768xbf16> to vector<8x768xbf16>
    %182 = arith.extf %181 : vector<8x768xbf16> to vector<8x768xf32>
    %c360 = arith.constant 360 : index
    %c0_142 = arith.constant 0 : index
    %183 = vector.load %arg4[%c360, %c0_142] : memref<512x768xf32, #tpu.memory_space<vmem>>, vector<8x768xf32>
    tpu.vector_store %arg4[%c360, %c0_142], %182 {strides = array<i32>} : memref<512x768xf32, #tpu.memory_space<vmem>>, vector<8x768xf32>,
    %c0_143 = arith.constant 0 : index
    %c0_144 = arith.constant 0 : index
    %c232_145 = arith.constant 232 : index
    %184 = vector.load %arg1[%c0_143, %c0_144, %c232_145] : memref<1x8x1101xbf16, #tpu.memory_space<vmem>>, vector<1x8x768xbf16>
    %185 = vector.shape_cast %184 : vector<1x8x768xbf16> to vector<8x768xbf16>
    %186 = arith.extf %185 : vector<8x768xbf16> to vector<8x768xf32>
    %c368 = arith.constant 368 : index
    %c0_146 = arith.constant 0 : index
    %187 = vector.load %arg4[%c368, %c0_146] : memref<512x768xf32, #tpu.memory_space<vmem>>, vector<8x768xf32>
    tpu.vector_store %arg4[%c368, %c0_146], %186 {strides = array<i32>} : memref<512x768xf32, #tpu.memory_space<vmem>>, vector<8x768xf32>,
    %c0_147 = arith.constant 0 : index
    %c0_148 = arith.constant 0 : index
    %c233 = arith.constant 233 : index
    %188 = vector.load %arg1[%c0_147, %c0_148, %c233] : memref<1x8x1101xbf16, #tpu.memory_space<vmem>>, vector<1x8x768xbf16>
    %189 = vector.shape_cast %188 : vector<1x8x768xbf16> to vector<8x768xbf16>
    %190 = arith.extf %189 : vector<8x768xbf16> to vector<8x768xf32>
    %c376 = arith.constant 376 : index
    %c0_149 = arith.constant 0 : index
    %191 = vector.load %arg4[%c376, %c0_149] : memref<512x768xf32, #tpu.memory_space<vmem>>, vector<8x768xf32>
    tpu.vector_store %arg4[%c376, %c0_149], %190 {strides = array<i32>} : memref<512x768xf32, #tpu.memory_space<vmem>>, vector<8x768xf32>,
    %c0_150 = arith.constant 0 : index
    %c0_151 = arith.constant 0 : index
    %c300 = arith.constant 300 : index
    %192 = vector.load %arg1[%c0_150, %c0_151, %c300] : memref<1x8x1101xbf16, #tpu.memory_space<vmem>>, vector<1x8x768xbf16>
    %193 = vector.shape_cast %192 : vector<1x8x768xbf16> to vector<8x768xbf16>
    %194 = arith.extf %193 : vector<8x768xbf16> to vector<8x768xf32>
    %c384 = arith.constant 384 : index
    %c0_152 = arith.constant 0 : index
    %195 = vector.load %arg4[%c384, %c0_152] : memref<512x768xf32, #tpu.memory_space<vmem>>, vector<8x768xf32>
    tpu.vector_store %arg4[%c384, %c0_152], %194 {strides = array<i32>} : memref<512x768xf32, #tpu.memory_space<vmem>>, vector<8x768xf32>,
    %c0_153 = arith.constant 0 : index
    %c0_154 = arith.constant 0 : index
    %c301 = arith.constant 301 : index
    %196 = vector.load %arg1[%c0_153, %c0_154, %c301] : memref<1x8x1101xbf16, #tpu.memory_space<vmem>>, vector<1x8x768xbf16>
    %197 = vector.shape_cast %196 : vector<1x8x768xbf16> to vector<8x768xbf16>
    %198 = arith.extf %197 : vector<8x768xbf16> to vector<8x768xf32>
    %c392 = arith.constant 392 : index
    %c0_155 = arith.constant 0 : index
    %199 = vector.load %arg4[%c392, %c0_155] : memref<512x768xf32, #tpu.memory_space<vmem>>, vector<8x768xf32>
    tpu.vector_store %arg4[%c392, %c0_155], %198 {strides = array<i32>} : memref<512x768xf32, #tpu.memory_space<vmem>>, vector<8x768xf32>,
    %c0_156 = arith.constant 0 : index
    %c0_157 = arith.constant 0 : index
    %c302 = arith.constant 302 : index
    %200 = vector.load %arg1[%c0_156, %c0_157, %c302] : memref<1x8x1101xbf16, #tpu.memory_space<vmem>>, vector<1x8x768xbf16>
    %201 = vector.shape_cast %200 : vector<1x8x768xbf16> to vector<8x768xbf16>
    %202 = arith.extf %201 : vector<8x768xbf16> to vector<8x768xf32>
    %c400 = arith.constant 400 : index
    %c0_158 = arith.constant 0 : index
    %203 = vector.load %arg4[%c400, %c0_158] : memref<512x768xf32, #tpu.memory_space<vmem>>, vector<8x768xf32>
    tpu.vector_store %arg4[%c400, %c0_158], %202 {strides = array<i32>} : memref<512x768xf32, #tpu.memory_space<vmem>>, vector<8x768xf32>,
    %c0_159 = arith.constant 0 : index
    %c0_160 = arith.constant 0 : index
    %c303 = arith.constant 303 : index
    %204 = vector.load %arg1[%c0_159, %c0_160, %c303] : memref<1x8x1101xbf16, #tpu.memory_space<vmem>>, vector<1x8x768xbf16>
    %205 = vector.shape_cast %204 : vector<1x8x768xbf16> to vector<8x768xbf16>
    %206 = arith.extf %205 : vector<8x768xbf16> to vector<8x768xf32>
    %c408 = arith.constant 408 : index
    %c0_161 = arith.constant 0 : index
    %207 = vector.load %arg4[%c408, %c0_161] : memref<512x768xf32, #tpu.memory_space<vmem>>, vector<8x768xf32>
    tpu.vector_store %arg4[%c408, %c0_161], %206 {strides = array<i32>} : memref<512x768xf32, #tpu.memory_space<vmem>>, vector<8x768xf32>,
    %c0_162 = arith.constant 0 : index
    %c0_163 = arith.constant 0 : index
    %c310 = arith.constant 310 : index
    %208 = vector.load %arg1[%c0_162, %c0_163, %c310] : memref<1x8x1101xbf16, #tpu.memory_space<vmem>>, vector<1x8x768xbf16>
    %209 = vector.shape_cast %208 : vector<1x8x768xbf16> to vector<8x768xbf16>
    %210 = arith.extf %209 : vector<8x768xbf16> to vector<8x768xf32>
    %c416 = arith.constant 416 : index
    %c0_164 = arith.constant 0 : index
    %211 = vector.load %arg4[%c416, %c0_164] : memref<512x768xf32, #tpu.memory_space<vmem>>, vector<8x768xf32>
    tpu.vector_store %arg4[%c416, %c0_164], %210 {strides = array<i32>} : memref<512x768xf32, #tpu.memory_space<vmem>>, vector<8x768xf32>,
    %c0_165 = arith.constant 0 : index
    %c0_166 = arith.constant 0 : index
    %c311 = arith.constant 311 : index
    %212 = vector.load %arg1[%c0_165, %c0_166, %c311] : memref<1x8x1101xbf16, #tpu.memory_space<vmem>>, vector<1x8x768xbf16>
    %213 = vector.shape_cast %212 : vector<1x8x768xbf16> to vector<8x768xbf16>
    %214 = arith.extf %213 : vector<8x768xbf16> to vector<8x768xf32>
    %c424 = arith.constant 424 : index
    %c0_167 = arith.constant 0 : index
    %215 = vector.load %arg4[%c424, %c0_167] : memref<512x768xf32, #tpu.memory_space<vmem>>, vector<8x768xf32>
    tpu.vector_store %arg4[%c424, %c0_167], %214 {strides = array<i32>} : memref<512x768xf32, #tpu.memory_space<vmem>>, vector<8x768xf32>,
    %c0_168 = arith.constant 0 : index
    %c0_169 = arith.constant 0 : index
    %c312_170 = arith.constant 312 : index
    %216 = vector.load %arg1[%c0_168, %c0_169, %c312_170] : memref<1x8x1101xbf16, #tpu.memory_space<vmem>>, vector<1x8x768xbf16>
    %217 = vector.shape_cast %216 : vector<1x8x768xbf16> to vector<8x768xbf16>
    %218 = arith.extf %217 : vector<8x768xbf16> to vector<8x768xf32>
    %c432 = arith.constant 432 : index
    %c0_171 = arith.constant 0 : index
    %219 = vector.load %arg4[%c432, %c0_171] : memref<512x768xf32, #tpu.memory_space<vmem>>, vector<8x768xf32>
    tpu.vector_store %arg4[%c432, %c0_171], %218 {strides = array<i32>} : memref<512x768xf32, #tpu.memory_space<vmem>>, vector<8x768xf32>,
    %c0_172 = arith.constant 0 : index
    %c0_173 = arith.constant 0 : index
    %c313 = arith.constant 313 : index
    %220 = vector.load %arg1[%c0_172, %c0_173, %c313] : memref<1x8x1101xbf16, #tpu.memory_space<vmem>>, vector<1x8x768xbf16>
    %221 = vector.shape_cast %220 : vector<1x8x768xbf16> to vector<8x768xbf16>
    %222 = arith.extf %221 : vector<8x768xbf16> to vector<8x768xf32>
    %c440 = arith.constant 440 : index
    %c0_174 = arith.constant 0 : index
    %223 = vector.load %arg4[%c440, %c0_174] : memref<512x768xf32, #tpu.memory_space<vmem>>, vector<8x768xf32>
    tpu.vector_store %arg4[%c440, %c0_174], %222 {strides = array<i32>} : memref<512x768xf32, #tpu.memory_space<vmem>>, vector<8x768xf32>,
    %c0_175 = arith.constant 0 : index
    %c0_176 = arith.constant 0 : index
    %c320_177 = arith.constant 320 : index
    %224 = vector.load %arg1[%c0_175, %c0_176, %c320_177] : memref<1x8x1101xbf16, #tpu.memory_space<vmem>>, vector<1x8x768xbf16>
    %225 = vector.shape_cast %224 : vector<1x8x768xbf16> to vector<8x768xbf16>
    %226 = arith.extf %225 : vector<8x768xbf16> to vector<8x768xf32>
    %c448 = arith.constant 448 : index
    %c0_178 = arith.constant 0 : index
    %227 = vector.load %arg4[%c448, %c0_178] : memref<512x768xf32, #tpu.memory_space<vmem>>, vector<8x768xf32>
    tpu.vector_store %arg4[%c448, %c0_178], %226 {strides = array<i32>} : memref<512x768xf32, #tpu.memory_space<vmem>>, vector<8x768xf32>,
    %c0_179 = arith.constant 0 : index
    %c0_180 = arith.constant 0 : index
    %c321 = arith.constant 321 : index
    %228 = vector.load %arg1[%c0_179, %c0_180, %c321] : memref<1x8x1101xbf16, #tpu.memory_space<vmem>>, vector<1x8x768xbf16>
    %229 = vector.shape_cast %228 : vector<1x8x768xbf16> to vector<8x768xbf16>
    %230 = arith.extf %229 : vector<8x768xbf16> to vector<8x768xf32>
    %c456 = arith.constant 456 : index
    %c0_181 = arith.constant 0 : index
    %231 = vector.load %arg4[%c456, %c0_181] : memref<512x768xf32, #tpu.memory_space<vmem>>, vector<8x768xf32>
    tpu.vector_store %arg4[%c456, %c0_181], %230 {strides = array<i32>} : memref<512x768xf32, #tpu.memory_space<vmem>>, vector<8x768xf32>,
    %c0_182 = arith.constant 0 : index
    %c0_183 = arith.constant 0 : index
    %c322 = arith.constant 322 : index
    %232 = vector.load %arg1[%c0_182, %c0_183, %c322] : memref<1x8x1101xbf16, #tpu.memory_space<vmem>>, vector<1x8x768xbf16>
    %233 = vector.shape_cast %232 : vector<1x8x768xbf16> to vector<8x768xbf16>
    %234 = arith.extf %233 : vector<8x768xbf16> to vector<8x768xf32>
    %c464 = arith.constant 464 : index
    %c0_184 = arith.constant 0 : index
    %235 = vector.load %arg4[%c464, %c0_184] : memref<512x768xf32, #tpu.memory_space<vmem>>, vector<8x768xf32>
    tpu.vector_store %arg4[%c464, %c0_184], %234 {strides = array<i32>} : memref<512x768xf32, #tpu.memory_space<vmem>>, vector<8x768xf32>,
    %c0_185 = arith.constant 0 : index
    %c0_186 = arith.constant 0 : index
    %c323 = arith.constant 323 : index
    %236 = vector.load %arg1[%c0_185, %c0_186, %c323] : memref<1x8x1101xbf16, #tpu.memory_space<vmem>>, vector<1x8x768xbf16>
    %237 = vector.shape_cast %236 : vector<1x8x768xbf16> to vector<8x768xbf16>
    %238 = arith.extf %237 : vector<8x768xbf16> to vector<8x768xf32>
    %c472 = arith.constant 472 : index
    %c0_187 = arith.constant 0 : index
    %239 = vector.load %arg4[%c472, %c0_187] : memref<512x768xf32, #tpu.memory_space<vmem>>, vector<8x768xf32>
    tpu.vector_store %arg4[%c472, %c0_187], %238 {strides = array<i32>} : memref<512x768xf32, #tpu.memory_space<vmem>>, vector<8x768xf32>,
    %c0_188 = arith.constant 0 : index
    %c0_189 = arith.constant 0 : index
    %c330 = arith.constant 330 : index
    %240 = vector.load %arg1[%c0_188, %c0_189, %c330] : memref<1x8x1101xbf16, #tpu.memory_space<vmem>>, vector<1x8x768xbf16>
    %241 = vector.shape_cast %240 : vector<1x8x768xbf16> to vector<8x768xbf16>
    %242 = arith.extf %241 : vector<8x768xbf16> to vector<8x768xf32>
    %c480 = arith.constant 480 : index
    %c0_190 = arith.constant 0 : index
    %243 = vector.load %arg4[%c480, %c0_190] : memref<512x768xf32, #tpu.memory_space<vmem>>, vector<8x768xf32>
    tpu.vector_store %arg4[%c480, %c0_190], %242 {strides = array<i32>} : memref<512x768xf32, #tpu.memory_space<vmem>>, vector<8x768xf32>,
    %c0_191 = arith.constant 0 : index
    %c0_192 = arith.constant 0 : index
    %c331 = arith.constant 331 : index
    %244 = vector.load %arg1[%c0_191, %c0_192, %c331] : memref<1x8x1101xbf16, #tpu.memory_space<vmem>>, vector<1x8x768xbf16>
    %245 = vector.shape_cast %244 : vector<1x8x768xbf16> to vector<8x768xbf16>
    %246 = arith.extf %245 : vector<8x768xbf16> to vector<8x768xf32>
    %c488 = arith.constant 488 : index
    %c0_193 = arith.constant 0 : index
    %247 = vector.load %arg4[%c488, %c0_193] : memref<512x768xf32, #tpu.memory_space<vmem>>, vector<8x768xf32>
    tpu.vector_store %arg4[%c488, %c0_193], %246 {strides = array<i32>} : memref<512x768xf32, #tpu.memory_space<vmem>>, vector<8x768xf32>,
    %c0_194 = arith.constant 0 : index
    %c0_195 = arith.constant 0 : index
    %c332 = arith.constant 332 : index
    %248 = vector.load %arg1[%c0_194, %c0_195, %c332] : memref<1x8x1101xbf16, #tpu.memory_space<vmem>>, vector<1x8x768xbf16>
    %249 = vector.shape_cast %248 : vector<1x8x768xbf16> to vector<8x768xbf16>
    %250 = arith.extf %249 : vector<8x768xbf16> to vector<8x768xf32>
    %c496 = arith.constant 496 : index
    %c0_196 = arith.constant 0 : index
    %251 = vector.load %arg4[%c496, %c0_196] : memref<512x768xf32, #tpu.memory_space<vmem>>, vector<8x768xf32>
    tpu.vector_store %arg4[%c496, %c0_196], %250 {strides = array<i32>} : memref<512x768xf32, #tpu.memory_space<vmem>>, vector<8x768xf32>,
    %c0_197 = arith.constant 0 : index
    %c0_198 = arith.constant 0 : index
    %c333 = arith.constant 333 : index
    %252 = vector.load %arg1[%c0_197, %c0_198, %c333] : memref<1x8x1101xbf16, #tpu.memory_space<vmem>>, vector<1x8x768xbf16>
    %253 = vector.shape_cast %252 : vector<1x8x768xbf16> to vector<8x768xbf16>
    %254 = arith.extf %253 : vector<8x768xbf16> to vector<8x768xf32>
    %c504 = arith.constant 504 : index
    %c0_199 = arith.constant 0 : index
    %255 = vector.load %arg4[%c504, %c0_199] : memref<512x768xf32, #tpu.memory_space<vmem>>, vector<8x768xf32>
    tpu.vector_store %arg4[%c504, %c0_199], %254 {strides = array<i32>} : memref<512x768xf32, #tpu.memory_space<vmem>>, vector<8x768xf32>,
    %c0_200 = arith.constant 0 : index
    %c0_201 = arith.constant 0 : index
    %256 = vector.load %arg2[%c0_200, %c0_201] : memref<8x512xbf16, #tpu.memory_space<vmem>>, vector<8x512xbf16>
    %c0_202 = arith.constant 0 : index
    %c0_203 = arith.constant 0 : index
    %257 = vector.load %arg4[%c0_202, %c0_203] : memref<512x768xf32, #tpu.memory_space<vmem>>, vector<512x768xf32>
    %258 = arith.truncf %257 : vector<512x768xf32> to vector<512x768xbf16>
    %cst = arith.constant dense<0.000000e+00> : vector<8x768xf32>
    %259 = tpu.matmul %256, %258, %cst {dimension_numbers = #tpu.dot_dimension_numbers<[1], [0], [0], [1], [0, 0, 1, 1], [], []>} : vector<8x512xbf16>, vector<512x768xbf16>, vector<8x768xf32> -> vector<8x768xf32>
    %260 = tpu.iota {dimensions = array<i32: 1>} : vector<1x768xi32>
    %c100_i32 = arith.constant 100 : i32
    %261 = vector.broadcast %c100_i32 : i32 to vector<1x768xi32>
    %262 = arith.cmpi sge, %260, %261 : vector<1x768xi32>
    %c100_i32_204 = arith.constant 100 : i32
    %263 = vector.broadcast %c100_i32_204 : i32 to vector<1x768xi32>
    %264 = arith.subi %260, %263 : vector<1x768xi32>
    %265 = arith.select %262, %264, %260 : vector<1x768xi1>, vector<1x768xi32>
    %c100_i32_205 = arith.constant 100 : i32
    %266 = vector.broadcast %c100_i32_205 : i32 to vector<1x768xi32>
    %267 = arith.cmpi sge, %265, %266 : vector<1x768xi32>
    %c100_i32_206 = arith.constant 100 : i32
    %268 = vector.broadcast %c100_i32_206 : i32 to vector<1x768xi32>
    %269 = arith.subi %265, %268 : vector<1x768xi32>
    %270 = arith.select %267, %269, %265 : vector<1x768xi1>, vector<1x768xi32>
    %c100_i32_207 = arith.constant 100 : i32
    %271 = vector.broadcast %c100_i32_207 : i32 to vector<1x768xi32>
    %272 = arith.cmpi sge, %270, %271 : vector<1x768xi32>
    %c100_i32_208 = arith.constant 100 : i32
    %273 = vector.broadcast %c100_i32_208 : i32 to vector<1x768xi32>
    %274 = arith.subi %270, %273 : vector<1x768xi32>
    %275 = arith.select %272, %274, %270 : vector<1x768xi1>, vector<1x768xi32>
    %c100_i32_209 = arith.constant 100 : i32
    %276 = vector.broadcast %c100_i32_209 : i32 to vector<1x768xi32>
    %277 = arith.cmpi sge, %275, %276 : vector<1x768xi32>
    %c100_i32_210 = arith.constant 100 : i32
    %278 = vector.broadcast %c100_i32_210 : i32 to vector<1x768xi32>
    %279 = arith.subi %275, %278 : vector<1x768xi32>
    %280 = arith.select %277, %279, %275 : vector<1x768xi1>, vector<1x768xi32>
    %c100_i32_211 = arith.constant 100 : i32
    %281 = vector.broadcast %c100_i32_211 : i32 to vector<1x768xi32>
    %282 = arith.cmpi sge, %280, %281 : vector<1x768xi32>
    %c100_i32_212 = arith.constant 100 : i32
    %283 = vector.broadcast %c100_i32_212 : i32 to vector<1x768xi32>
    %284 = arith.subi %280, %283 : vector<1x768xi32>
    %285 = arith.select %282, %284, %280 : vector<1x768xi1>, vector<1x768xi32>
    %c100_i32_213 = arith.constant 100 : i32
    %286 = vector.broadcast %c100_i32_213 : i32 to vector<1x768xi32>
    %287 = arith.cmpi sge, %285, %286 : vector<1x768xi32>
    %c100_i32_214 = arith.constant 100 : i32
    %288 = vector.broadcast %c100_i32_214 : i32 to vector<1x768xi32>
    %289 = arith.subi %285, %288 : vector<1x768xi32>
    %290 = arith.select %287, %289, %285 : vector<1x768xi1>, vector<1x768xi32>
    %c100_i32_215 = arith.constant 100 : i32
    %291 = vector.broadcast %c100_i32_215 : i32 to vector<1x768xi32>
    %292 = arith.cmpi sge, %290, %291 : vector<1x768xi32>
    %c100_i32_216 = arith.constant 100 : i32
    %293 = vector.broadcast %c100_i32_216 : i32 to vector<1x768xi32>
    %294 = arith.subi %290, %293 : vector<1x768xi32>
    %295 = arith.select %292, %294, %290 : vector<1x768xi1>, vector<1x768xi32>
    %c10_i32 = arith.constant 10 : i32
    %296 = vector.broadcast %c10_i32 : i32 to vector<1x768xi32>
    %297 = arith.cmpi sge, %295, %296 : vector<1x768xi32>
    %c10_i32_217 = arith.constant 10 : i32
    %298 = vector.broadcast %c10_i32_217 : i32 to vector<1x768xi32>
    %299 = arith.subi %295, %298 : vector<1x768xi32>
    %300 = arith.select %297, %299, %295 : vector<1x768xi1>, vector<1x768xi32>
    %c10_i32_218 = arith.constant 10 : i32
    %301 = vector.broadcast %c10_i32_218 : i32 to vector<1x768xi32>
    %302 = arith.cmpi sge, %300, %301 : vector<1x768xi32>
    %c10_i32_219 = arith.constant 10 : i32
    %303 = vector.broadcast %c10_i32_219 : i32 to vector<1x768xi32>
    %304 = arith.subi %300, %303 : vector<1x768xi32>
    %305 = arith.select %302, %304, %300 : vector<1x768xi1>, vector<1x768xi32>
    %c10_i32_220 = arith.constant 10 : i32
    %306 = vector.broadcast %c10_i32_220 : i32 to vector<1x768xi32>
    %307 = arith.cmpi sge, %305, %306 : vector<1x768xi32>
    %c10_i32_221 = arith.constant 10 : i32
    %308 = vector.broadcast %c10_i32_221 : i32 to vector<1x768xi32>
    %309 = arith.subi %305, %308 : vector<1x768xi32>
    %310 = arith.select %307, %309, %305 : vector<1x768xi1>, vector<1x768xi32>
    %c10_i32_222 = arith.constant 10 : i32
    %311 = vector.broadcast %c10_i32_222 : i32 to vector<1x768xi32>
    %312 = arith.cmpi sge, %310, %311 : vector<1x768xi32>
    %c10_i32_223 = arith.constant 10 : i32
    %313 = vector.broadcast %c10_i32_223 : i32 to vector<1x768xi32>
    %314 = arith.subi %310, %313 : vector<1x768xi32>
    %315 = arith.select %312, %314, %310 : vector<1x768xi1>, vector<1x768xi32>
    %c10_i32_224 = arith.constant 10 : i32
    %316 = vector.broadcast %c10_i32_224 : i32 to vector<1x768xi32>
    %317 = arith.cmpi sge, %315, %316 : vector<1x768xi32>
    %c10_i32_225 = arith.constant 10 : i32
    %318 = vector.broadcast %c10_i32_225 : i32 to vector<1x768xi32>
    %319 = arith.subi %315, %318 : vector<1x768xi32>
    %320 = arith.select %317, %319, %315 : vector<1x768xi1>, vector<1x768xi32>
    %c10_i32_226 = arith.constant 10 : i32
    %321 = vector.broadcast %c10_i32_226 : i32 to vector<1x768xi32>
    %322 = arith.cmpi sge, %320, %321 : vector<1x768xi32>
    %c10_i32_227 = arith.constant 10 : i32
    %323 = vector.broadcast %c10_i32_227 : i32 to vector<1x768xi32>
    %324 = arith.subi %320, %323 : vector<1x768xi32>
    %325 = arith.select %322, %324, %320 : vector<1x768xi1>, vector<1x768xi32>
    %c10_i32_228 = arith.constant 10 : i32
    %326 = vector.broadcast %c10_i32_228 : i32 to vector<1x768xi32>
    %327 = arith.cmpi sge, %325, %326 : vector<1x768xi32>
    %c10_i32_229 = arith.constant 10 : i32
    %328 = vector.broadcast %c10_i32_229 : i32 to vector<1x768xi32>
    %329 = arith.subi %325, %328 : vector<1x768xi32>
    %330 = arith.select %327, %329, %325 : vector<1x768xi1>, vector<1x768xi32>
    %c10_i32_230 = arith.constant 10 : i32
    %331 = vector.broadcast %c10_i32_230 : i32 to vector<1x768xi32>
    %332 = arith.cmpi sge, %330, %331 : vector<1x768xi32>
    %c10_i32_231 = arith.constant 10 : i32
    %333 = vector.broadcast %c10_i32_231 : i32 to vector<1x768xi32>
    %334 = arith.subi %330, %333 : vector<1x768xi32>
    %335 = arith.select %332, %334, %330 : vector<1x768xi1>, vector<1x768xi32>
    %c10_i32_232 = arith.constant 10 : i32
    %336 = vector.broadcast %c10_i32_232 : i32 to vector<1x768xi32>
    %337 = arith.cmpi sge, %335, %336 : vector<1x768xi32>
    %c10_i32_233 = arith.constant 10 : i32
    %338 = vector.broadcast %c10_i32_233 : i32 to vector<1x768xi32>
    %339 = arith.subi %335, %338 : vector<1x768xi32>
    %340 = arith.select %337, %339, %335 : vector<1x768xi1>, vector<1x768xi32>
    %c700_i32 = arith.constant 700 : i32
    %341 = vector.broadcast %c700_i32 : i32 to vector<1x768xi32>
    %342 = arith.cmpi slt, %260, %341 : vector<1x768xi32>
    %c70_i32 = arith.constant 70 : i32
    %343 = vector.broadcast %c70_i32 : i32 to vector<1x768xi32>
    %344 = arith.cmpi slt, %295, %343 : vector<1x768xi32>
    %345 = arith.andi %342, %344 : vector<1x768xi1>
    %c7_i32 = arith.constant 7 : i32
    %346 = vector.broadcast %c7_i32 : i32 to vector<1x768xi32>
    %347 = arith.cmpi slt, %340, %346 : vector<1x768xi32>
    %348 = arith.andi %345, %347 : vector<1x768xi1>
    %cst_234 = arith.constant 0.000000e+00 : f32
    %349 = vector.shape_cast %348 : vector<1x768xi1> to vector<1x768xi1>
    %350 = vector.broadcast %349 : vector<1x768xi1> to vector<8x768xi1>
    %351 = vector.broadcast %cst_234 : f32 to vector<8x768xf32>
    %352 = arith.select %350, %259, %351 : vector<8x768xi1>, vector<8x768xf32>
    %cst_235 = arith.constant dense<0.000000e+00> : vector<8xf32>
    %353 = vector.multi_reduction <add>, %352, %cst_235 [1] : vector<8x768xf32> to vector<8xf32>
    %354 = vector.shape_cast %353 : vector<8xf32> to vector<8x1xf32>
    %355 = arith.mulf %352, %352 : vector<8x768xf32>
    %cst_236 = arith.constant dense<0.000000e+00> : vector<8xf32>
    %356 = vector.multi_reduction <add>, %355, %cst_236 [1] : vector<8x768xf32> to vector<8xf32>
    %357 = vector.shape_cast %356 : vector<8xf32> to vector<8x1xf32>
    %cst_237 = arith.constant 0.002915452 : f32
    %358 = vector.broadcast %cst_237 : f32 to vector<8x1xf32>
    %359 = arith.mulf %354, %358 : vector<8x1xf32>
    %cst_238 = arith.constant 0.002915452 : f32
    %360 = vector.broadcast %cst_238 : f32 to vector<8x1xf32>
    %361 = arith.mulf %357, %360 : vector<8x1xf32>
    %362 = arith.mulf %359, %359 : vector<8x1xf32>
    %363 = arith.subf %361, %362 : vector<8x1xf32>
    %cst_239 = arith.constant 0.000000e+00 : f32
    %364 = vector.broadcast %cst_239 : f32 to vector<8x1xf32>
    %365 = arith.maximumf %363, %364 : vector<8x1xf32>
    %366 = vector.broadcast %359 : vector<8x1xf32> to vector<8x768xf32>
    %367 = arith.subf %259, %366 : vector<8x768xf32>
    %cst_240 = arith.constant 9.99999974E-6 : f32
    %368 = vector.broadcast %cst_240 : f32 to vector<8x1xf32>
    %369 = arith.addf %365, %368 : vector<8x1xf32>
    %370 = math.rsqrt %369 : vector<8x1xf32>
    %371 = vector.broadcast %370 : vector<8x1xf32> to vector<8x768xf32>
    %372 = arith.mulf %367, %371 : vector<8x768xf32>
    %cst_241 = arith.constant 0.000000e+00 : f32
    %373 = vector.broadcast %cst_241 : f32 to vector<8x768xf32>
    %374 = arith.cmpf ogt, %372, %373 : vector<8x768xf32>
    %cst_242 = arith.constant 2.000000e-01 : f32
    %375 = vector.broadcast %cst_242 : f32 to vector<8x768xf32>
    %376 = arith.mulf %375, %372 : vector<8x768xf32>
    %377 = arith.select %374, %372, %376 : vector<8x768xi1>, vector<8x768xf32>
    %c0_243 = arith.constant 0 : index
    %c0_244 = arith.constant 0 : index
    %c0_245 = arith.constant 0 : index
    %378 = vector.load %arg3[%c0_243, %c0_244, %c0_245] : memref<1x8x768xf32, #tpu.memory_space<vmem>>, vector<1x8x768xf32>
    %379 = vector.shape_cast %378 : vector<1x8x768xf32> to vector<8x768xf32>
    %380 = vector.shape_cast %377 : vector<8x768xf32> to vector<1x8x768xf32>
    tpu.vector_store %arg3[%c0_243, %c0_244, %c0_245], %380 {strides = array<i32>} : memref<1x8x768xf32, #tpu.memory_space<vmem>>, vector<1x8x768xf32>,
    return
  }
  func.func @transform_0(%arg0: i32) -> (i32, i32, i32) {
    %c0_i32 = arith.constant 0 : i32
    %c0_i32_0 = arith.constant 0 : i32
    %c0_i32_1 = arith.constant 0 : i32
    return %arg0, %c0_i32, %c0_i32_0 : i32, i32, i32
  }
  func.func @transform_1(%arg0: i32) -> (i32, i32) {
    %c0_i32 = arith.constant 0 : i32
    %c0_i32_0 = arith.constant 0 : i32
    %c0_i32_1 = arith.constant 0 : i32
    return %c0_i32, %c0_i32_0 : i32, i32
  }
  func.func @transform_2(%arg0: i32) -> (i32, i32, i32) {
    %c0_i32 = arith.constant 0 : i32
    %c0_i32_0 = arith.constant 0 : i32
    %c0_i32_1 = arith.constant 0 : i32
    return %arg0, %c0_i32, %c0_i32_0 : i32, i32, i32
  }
}

</mosaic_0001>

<llo_original>
// kernel: unet_mid_forward.1
$region0: #{unet_mid_forward.1}
  #allocation0 [shape = 'u32[]', space=smem, size = 0x4, offset = 0x4, fixed_abs, tag = 'smem constant byte address 0x4 - core index']
  #allocation1 [shape = 'u32[72,128]{1,0:T(1,128)}', space=vmem, size = 0x9000, scoped, tag = 'internal scratch']
  #allocation2 [shape = 'f32[512,768]{1,0:T(8,128)}', space=vmem, size = 0x180000, scoped, tag = 'scratch operand']
  %s0 = inlined_call_operand.vmem [shape: bf16[2,8,1101], index: 0, kind: input, shape index: {}]
  %s1 = inlined_call_operand.vmem [shape: bf16[8,512], index: 1, kind: input, shape index: {}]
  %s2 = inlined_call_operand.vmem [shape: f32[2,8,768], index: 2, kind: output, shape index: {}]
  %s3 = sld [smem:[#allocation0]]
  $region41: #{unet_mid_forward.1} parent=0
    _
  %s5 = ssub.s32 1, %s3
  %s6 = scalar_select 0, %s5, %s3
  loop: start=0, step=1, limit=4
  $region2: #{unet_mid_forward.1} parent=0 // loop_pre_header
    _
  $region3: #{unet_mid_forward.1} parent=0 // loop_header
    %s8 = sphi 0, %s12
    %p9 = scmp.ge.s32.totalorder %s8, 4
    %s18 = sphi 0, %s20
    %s21 = sphi 0, %s18
    %s22 = sphi 0, %s21
    %s38 = sphi 0, %s22
    %s42 = sphi 0, %s42
    %s44 = sphi 0, %s42
    %s45 = sphi 0, %s44
    %s59 = sphi 0, %s45
    %s65 = sphi 0, %s67
    %s68 = sphi 0, %s65
    %s69 = sphi 0, %s68
    %s85 = sphi 0, %s69
  $region4: #{unet_mid_forward.1} parent=0 // loop_header_branch
    %11 = sbr.rel (%p9) target = $region8
  $region5: #{unet_mid_forward.1} parent=0 // loop_body
    %s13 = ssub.s32 %s8, 1
    %s14 = ssub.s32 %s8, 2
    %s15 = sadd.s32 %s8, 1
    %s16 = ssub.s32 %s8, %s15
    %p17 = scmp.eq.s32.totalorder %s16, 0
    %s19 = sadd.s32 %s18, 1
    %s20 = scalar_select %p17, %s18, %s19
    %p23 = pneg %p17
    %p24 = scmp.eq.s32.totalorder %s8, 1
    %p25 = por %p23, %p24
    %p26 = scmp.ne.s32.totalorder %s18, %s21
    %p27 = scmp.eq.s32.totalorder %s8, 0
    %p28 = por %p26, %p27
    %p29 = scmp.ne.s32.totalorder %s18, %s21
    %p30 = scmp.eq.s32.totalorder %s13, 1
    %p31 = por %p29, %p30
    %p32 = scmp.ne.s32.totalorder %s21, %s22
    %p33 = scmp.eq.s32.totalorder %s13, 0
    %p34 = por %p32, %p33
    %p35 = scmp.ne.s32.totalorder %s21, %s22
    %p36 = scmp.eq.s32.totalorder %s14, 1
    %p37 = por %p35, %p36
    %p39 = scmp.ne.s32.totalorder %s22, %s38
    %p40 = scmp.eq.s32.totalorder %s14, 0
    %p41 = por %p39, %p40
    %s43 = sadd.s32 %s42, 1
    %p46 = scmp.eq.s32.totalorder %s8, 1
    %p47 = scmp.ne.s32.totalorder %s42, %s44
    %p48 = scmp.eq.s32.totalorder %s8, 0
    %p49 = por %p47, %p48
    %p50 = scmp.ne.s32.totalorder %s42, %s44
    %p51 = scmp.eq.s32.totalorder %s13, 1
    %p52 = por %p50, %p51
    %p53 = scmp.ne.s32.totalorder %s44, %s45
    %p54 = scmp.eq.s32.totalorder %s13, 0
    %p55 = por %p53, %p54
    %p56 = scmp.ne.s32.totalorder %s44, %s45
    %p57 = scmp.eq.s32.totalorder %s14, 1
    %p58 = por %p56, %p57
    %p60 = scmp.ne.s32.totalorder %s45, %s59
    %p61 = scmp.eq.s32.totalorder %s14, 0
    %p62 = por %p60, %p61
    %s63 = ssub.s32 %s8, %s15
    %p64 = scmp.eq.s32.totalorder %s63, 0
    %s66 = sadd.s32 %s65, 1
    %s67 = scalar_select %p64, %s65, %s66
    %p70 = pneg %p64
    %p71 = scmp.eq.s32.totalorder %s8, 1
    %p72 = por %p70, %p71
    %p73 = scmp.ne.s32.totalorder %s65, %s68
    %p74 = scmp.eq.s32.totalorder %s8, 0
    %p75 = por %p73, %p74
    %p76 = scmp.ne.s32.totalorder %s65, %s68
    %p77 = scmp.eq.s32.totalorder %s13, 1
    %p78 = por %p76, %p77
    %p79 = scmp.ne.s32.totalorder %s68, %s69
    %p80 = scmp.eq.s32.totalorder %s13, 0
    %p81 = por %p79, %p80
    %p82 = scmp.ne.s32.totalorder %s68, %s69
    %p83 = scmp.eq.s32.totalorder %s14, 1
    %p84 = por %p82, %p83
    %p86 = scmp.ne.s32.totalorder %s69, %s85
    %p87 = scmp.eq.s32.totalorder %s14, 0
    %p88 = por %p86, %p87
    %p89 = scmp.le.s32.totalorder 1, %s8
    %p90 = scmp.lt.s32.totalorder %s8, 3
    %p91 = pnand %p89, %p90
    %p92 = pneg %p91
    // Predicated region
    $region9: #{unet_mid_forward.1} parent=5 // pred_check
      _
    $region10: #{unet_mid_forward.1} parent=5 // pred_check_branch
      %94 = sbr.rel (%p91) target = $region12
    $region11: #{unet_mid_forward.1} parent=5 // pred_region
      %s95 = ssub.s32 %s8, 1
      // Predicated region
      $region13: #{unet_mid_forward.1} parent=11 // pred_check
        %p96 = pneg %p55
      $region14: #{unet_mid_forward.1} parent=11 // pred_check_branch
        %98 = sbr.rel (%p96) target = $region16
      $region15: #{unet_mid_forward.1} parent=11 // pred_region
        _
      $region16: #{unet_mid_forward.1} parent=11 // pred_fallthru
        _
    $region12: #{unet_mid_forward.1} parent=5 // pred_fallthru
      _
    %p99 = scmp.lt.s32.totalorder %s8, 2
    // Predicated region
    $region17: #{unet_mid_forward.1} parent=5 // pred_check
      %p100 = pneg %p99
    $region18: #{unet_mid_forward.1} parent=5 // pred_check_branch
      %102 = sbr.rel (%p100) target = $region20
    $region19: #{unet_mid_forward.1} parent=5 // pred_region
      // Predicated region
      $region21: #{unet_mid_forward.1} parent=19 // pred_check
        %p103 = pneg %p28
      $region22: #{unet_mid_forward.1} parent=19 // pred_check_branch
        %105 = sbr.rel (%p103) target = $region24
      $region23: #{unet_mid_forward.1} parent=19 // pred_region
        %p106 = scmp.lt.s32.totalorder %s8, 1
        %s107 = scalar_select %p106, %s8, 1
        %s108 = smul.addr %s107, 9
        %s109 = smul.addr %s108, 4
        %s110 = scalar_lea.vmem %s0, %s109
      $region24: #{unet_mid_forward.1} parent=19 // pred_fallthru
        _
    $region20: #{unet_mid_forward.1} parent=5 // pred_fallthru
      _
    %p111 = scmp.le.s32.totalorder 1, %s8
    %p112 = scmp.lt.s32.totalorder %s8, 3
    %p113 = pnand %p111, %p112
    %p114 = pneg %p113
    // Predicated region
    $region25: #{unet_mid_forward.1} parent=5 // pred_check
      _
    $region26: #{unet_mid_forward.1} parent=5 // pred_check_branch
      %116 = sbr.rel (%p113) target = $region28
    $region27: #{unet_mid_forward.1} parent=5 // pred_region
      %s117 = ssub.s32 %s8, 1
      %p118 = scmp.lt.s32.totalorder %s13, 1
      %s119 = scalar_select %p118, %s13, 1
      %s120 = smul.addr %s119, 9
      %s121 = smul.addr %s120, 4
      %s122 = scalar_lea.vmem %s0, %s121
      %p123 = pneg %p34
      %p124 = pneg %p31
      %p125 = pneg %p55
      %p126 = pneg %p52
      %p127 = pneg %p81
      %p128 = pneg %p78
      %p129 = scmp.lt.s32.totalorder %s13, 1
      %s130 = scalar_select %p129, %s13, 1
      %s131 = smul.addr %s130, 6
      %s132 = smul.addr %s131, 8
      %s133 = scalar_lea.vmem %s2, %s132
      %p134 = scmp.lt.s32.totalorder %s13, 1
      %s135 = scalar_select %p134, %s13, 1
      %s136 = smul.addr %s135, 9
      %s137 = smul.addr %s136, 4
      %s138 = scalar_lea.vmem %s0, %s137
      %p139 = scmp.lt.s32.totalorder %s13, 1
      %s140 = scalar_select %p139, %s13, 1
      %s141 = smul.addr %s140, 6
      %s142 = smul.addr %s141, 8
      %s143 = scalar_lea.vmem %s2, %s142
      %v144 = vld [vmem:[%s138] sm:$0xff]
      %v145 = vld [vmem:[%s138 + $0x8] sm:$0xff]
      %v146 = vld [vmem:[%s138 + $0x10] sm:$0xff]
      %v147 = vunpack.c.l.bf16 %v144
      %v148 = vunpack.c.h.bf16 %v144
      %v149 = vunpack.c.l.bf16 %v145
      %v150 = vunpack.c.h.bf16 %v145
      %v151 = vunpack.c.l.bf16 %v146
      %v152 = vunpack.c.h.bf16 %v146
      %153 = vst [vmem:[#allocation2] sm:$0xff] %v147
      %154 = vst [vmem:[#allocation2 + $0x8] sm:$0xff] %v148
      %155 = vst [vmem:[#allocation2 + $0x10] sm:$0xff] %v149
      %156 = vst [vmem:[#allocation2 + $0x18] sm:$0xff] %v150
      %157 = vst [vmem:[#allocation2 + $0x20] sm:$0xff] %v151
      %158 = vst [vmem:[#allocation2 + $0x28] sm:$0xff] %v152
      %v159 = vld [vmem:[%s138] sm:$0xff]
      %v160 = vld [vmem:[%s138 + $0x8] sm:$0xff]
      %v161 = vld [vmem:[%s138 + $0x10] sm:$0xff]
      %v162 = vld [vmem:[%s138 + $0x18] sm:$0xf]
      %v163 = vunpack.c.l.bf16 %v159
      %v164 = vunpack.c.h.bf16 %v159
      %v165 = vunpack.c.l.bf16 %v160
      %v166 = vunpack.c.h.bf16 %v160
      %v167 = vunpack.c.l.bf16 %v161
      %v168 = vunpack.c.h.bf16 %v161
      %v169 = vunpack.c.l.bf16 %v162
      %177 = vrot.lane.b32.xlu0 %v163, 127
      %v178 = vpop.permute.xlu0 %177
      %179 = vrot.lane.b32.xlu0 %v164, 127
      %v180 = vpop.permute.xlu0 %179
      %181 = vrot.lane.b32.xlu0 %v165, 127
      %v182 = vpop.permute.xlu0 %181
      %183 = vrot.lane.b32.xlu0 %v166, 127
      %v184 = vpop.permute.xlu0 %183
      %185 = vrot.lane.b32.xlu0 %v167, 127
      %v186 = vpop.permute.xlu0 %185
      %187 = vrot.lane.b32.xlu0 %v168, 127
      %v188 = vpop.permute.xlu0 %187
      %189 = vrot.lane.b32.xlu0 %v169, 127
      %v190 = vpop.permute.xlu0 %189
      %vm191 = vcmask 1039360
      %v192 = vsel %vm191, %v178, %v180
      %v193 = vsel %vm191, %v180, %v182
      %v194 = vsel %vm191, %v182, %v184
      %v195 = vsel %vm191, %v184, %v186
      %v196 = vsel %vm191, %v186, %v188
      %v197 = vsel %vm191, %v188, %v190
      %204 = vst [vmem:[#allocation2 + $0x30] sm:$0xff] %v192
      %205 = vst [vmem:[#allocation2 + $0x38] sm:$0xff] %v193
      %206 = vst [vmem:[#allocation2 + $0x40] sm:$0xff] %v194
      %207 = vst [vmem:[#allocation2 + $0x48] sm:$0xff] %v195
      %208 = vst [vmem:[#allocation2 + $0x50] sm:$0xff] %v196
      %209 = vst [vmem:[#allocation2 + $0x58] sm:$0xff] %v197
      %v210 = vld [vmem:[%s138] sm:$0xff]
      %v211 = vld [vmem:[%s138 + $0x8] sm:$0xff]
      %v212 = vld [vmem:[%s138 + $0x10] sm:$0xff]
      %v213 = vld [vmem:[%s138 + $0x18] sm:$0xf]
      %v214 = vunpack.c.l.bf16 %v210
      %v215 = vunpack.c.h.bf16 %v210
      %v216 = vunpack.c.l.bf16 %v211
      %v217 = vunpack.c.h.bf16 %v211
      %v218 = vunpack.c.l.bf16 %v212
      %v219 = vunpack.c.h.bf16 %v212
      %v220 = vunpack.c.l.bf16 %v213
      %228 = vrot.lane.b32.xlu0 %v214, 126
      %v229 = vpop.permute.xlu0 %228
      %230 = vrot.lane.b32.xlu0 %v215, 126
      %v231 = vpop.permute.xlu0 %230
      %232 = vrot.lane.b32.xlu0 %v216, 126
      %v233 = vpop.permute.xlu0 %232
      %234 = vrot.lane.b32.xlu0 %v217, 126
      %v235 = vpop.permute.xlu0 %234
      %236 = vrot.lane.b32.xlu0 %v218, 126
      %v237 = vpop.permute.xlu0 %236
      %238 = vrot.lane.b32.xlu0 %v219, 126
      %v239 = vpop.permute.xlu0 %238
      %240 = vrot.lane.b32.xlu0 %v220, 126
      %v241 = vpop.permute.xlu0 %240
      %vm242 = vcmask 1031168
      %v243 = vsel %vm242, %v229, %v231
      %v244 = vsel %vm242, %v231, %v233
      %v245 = vsel %vm242, %v233, %v235
      %v246 = vsel %vm242, %v235, %v237
      %v247 = vsel %vm242, %v237, %v239
      %v248 = vsel %vm242, %v239, %v241
      %255 = vst [vmem:[#allocation2 + $0x60] sm:$0xff] %v243
      %256 = vst [vmem:[#allocation2 + $0x68] sm:$0xff] %v244
      %257 = vst [vmem:[#allocation2 + $0x70] sm:$0xff] %v245
      %258 = vst [vmem:[#allocation2 + $0x78] sm:$0xff] %v246
      %259 = vst [vmem:[#allocation2 + $0x80] sm:$0xff] %v247
      %260 = vst [vmem:[#allocation2 + $0x88] sm:$0xff] %v248
      %v261 = vld [vmem:[%s138] sm:$0xff]
      %v262 = vld [vmem:[%s138 + $0x8] sm:$0xff]
      %v263 = vld [vmem:[%s138 + $0x10] sm:$0xff]
      %v264 = vld [vmem:[%s138 + $0x18] sm:$0xf]
      %v265 = vunpack.c.l.bf16 %v261
      %v266 = vunpack.c.h.bf16 %v261
      %v267 = vunpack.c.l.bf16 %v262
      %v268 = vunpack.c.h.bf16 %v262
      %v269 = vunpack.c.l.bf16 %v263
      %v270 = vunpack.c.h.bf16 %v263
      %v271 = vunpack.c.l.bf16 %v264
      %279 = vrot.lane.b32.xlu0 %v265, 125
      %v280 = vpop.permute.xlu0 %279
      %281 = vrot.lane.b32.xlu0 %v266, 125
      %v282 = vpop.permute.xlu0 %281
      %283 = vrot.lane.b32.xlu0 %v267, 125
      %v284 = vpop.permute.xlu0 %283
      %285 = vrot.lane.b32.xlu0 %v268, 125
      %v286 = vpop.permute.xlu0 %285
      %287 = vrot.lane.b32.xlu0 %v269, 125
      %v288 = vpop.permute.xlu0 %287
      %289 = vrot.lane.b32.xlu0 %v270, 125
      %v290 = vpop.permute.xlu0 %289
      %291 = vrot.lane.b32.xlu0 %v271, 125
      %v292 = vpop.permute.xlu0 %291
      %vm293 = vcmask 1022976
      %v294 = vsel %vm293, %v280, %v282
      %v295 = vsel %vm293, %v282, %v284
      %v296 = vsel %vm293, %v284, %v286
      %v297 = vsel %vm293, %v286, %v288
      %v298 = vsel %vm293, %v288, %v290
      %v299 = vsel %vm293, %v290, %v292
      %306 = vst [vmem:[#allocation2 + $0x90] sm:$0xff] %v294
      %307 = vst [vmem:[#allocation2 + $0x98] sm:$0xff] %v295
      %308 = vst [vmem:[#allocation2 + $0xa0] sm:$0xff] %v296
      %309 = vst [vmem:[#allocation2 + $0xa8] sm:$0xff] %v297
      %310 = vst [vmem:[#allocation2 + $0xb0] sm:$0xff] %v298
      %311 = vst [vmem:[#allocation2 + $0xb8] sm:$0xff] %v299
      %v312 = vld [vmem:[%s138] sm:$0xff]
      %v313 = vld [vmem:[%s138 + $0x8] sm:$0xff]
      %v314 = vld [vmem:[%s138 + $0x10] sm:$0xff]
      %v315 = vld [vmem:[%s138 + $0x18] sm:$0xf]
      %v316 = vunpack.c.l.bf16 %v312
      %v317 = vunpack.c.h.bf16 %v312
      %v318 = vunpack.c.l.bf16 %v313
      %v319 = vunpack.c.h.bf16 %v313
      %v320 = vunpack.c.l.bf16 %v314
      %v321 = vunpack.c.h.bf16 %v314
      %v322 = vunpack.c.l.bf16 %v315
      %330 = vrot.lane.b32.xlu0 %v316, 118
      %v331 = vpop.permute.xlu0 %330
      %332 = vrot.lane.b32.xlu0 %v317, 118
      %v333 = vpop.permute.xlu0 %332
      %334 = vrot.lane.b32.xlu0 %v318, 118
      %v335 = vpop.permute.xlu0 %334
      %336 = vrot.lane.b32.xlu0 %v319, 118
      %v337 = vpop.permute.xlu0 %336
      %338 = vrot.lane.b32.xlu0 %v320, 118
      %v339 = vpop.permute.xlu0 %338
      %340 = vrot.lane.b32.xlu0 %v321, 118
      %v341 = vpop.permute.xlu0 %340
      %342 = vrot.lane.b32.xlu0 %v322, 118
      %v343 = vpop.permute.xlu0 %342
      %vm344 = vcmask 965632
      %v345 = vsel %vm344, %v331, %v333
      %v346 = vsel %vm344, %v333, %v335
      %v347 = vsel %vm344, %v335, %v337
      %v348 = vsel %vm344, %v337, %v339
      %v349 = vsel %vm344, %v339, %v341
      %v350 = vsel %vm344, %v341, %v343
      %357 = vst [vmem:[#allocation2 + $0xc0] sm:$0xff] %v345
      %358 = vst [vmem:[#allocation2 + $0xc8] sm:$0xff] %v346
      %359 = vst [vmem:[#allocation2 + $0xd0] sm:$0xff] %v347
      %360 = vst [vmem:[#allocation2 + $0xd8] sm:$0xff] %v348
      %361 = vst [vmem:[#allocation2 + $0xe0] sm:$0xff] %v349
      %362 = vst [vmem:[#allocation2 + $0xe8] sm:$0xff] %v350
      %v363 = vld [vmem:[%s138] sm:$0xff]
      %v364 = vld [vmem:[%s138 + $0x8] sm:$0xff]
      %v365 = vld [vmem:[%s138 + $0x10] sm:$0xff]
      %v366 = vld [vmem:[%s138 + $0x18] sm:$0xf]
      %v367 = vunpack.c.l.bf16 %v363
      %v368 = vunpack.c.h.bf16 %v363
      %v369 = vunpack.c.l.bf16 %v364
      %v370 = vunpack.c.h.bf16 %v364
      %v371 = vunpack.c.l.bf16 %v365
      %v372 = vunpack.c.h.bf16 %v365
      %v373 = vunpack.c.l.bf16 %v366
      %381 = vrot.lane.b32.xlu0 %v367, 117
      %v382 = vpop.permute.xlu0 %381
      %383 = vrot.lane.b32.xlu0 %v368, 117
      %v384 = vpop.permute.xlu0 %383
      %385 = vrot.lane.b32.xlu0 %v369, 117
      %v386 = vpop.permute.xlu0 %385
      %387 = vrot.lane.b32.xlu0 %v370, 117
      %v388 = vpop.permute.xlu0 %387
      %389 = vrot.lane.b32.xlu0 %v371, 117
      %v390 = vpop.permute.xlu0 %389
      %391 = vrot.lane.b32.xlu0 %v372, 117
      %v392 = vpop.permute.xlu0 %391
      %393 = vrot.lane.b32.xlu0 %v373, 117
      %v394 = vpop.permute.xlu0 %393
      %vm395 = vcmask 957440
      %v396 = vsel %vm395, %v382, %v384
      %v397 = vsel %vm395, %v384, %v386
      %v398 = vsel %vm395, %v386, %v388
      %v399 = vsel %vm395, %v388, %v390
      %v400 = vsel %vm395, %v390, %v392
      %v401 = vsel %vm395, %v392, %v394
      %408 = vst [vmem:[#allocation2 + $0xf0] sm:$0xff] %v396
      %409 = vst [vmem:[#allocation2 + $0xf8] sm:$0xff] %v397
      %410 = vst [vmem:[#allocation2 + $0x100] sm:$0xff] %v398
      %411 = vst [vmem:[#allocation2 + $0x108] sm:$0xff] %v399
      %412 = vst [vmem:[#allocation2 + $0x110] sm:$0xff] %v400
      %413 = vst [vmem:[#allocation2 + $0x118] sm:$0xff] %v401
      %v414 = vld [vmem:[%s138] sm:$0xff]
      %v415 = vld [vmem:[%s138 + $0x8] sm:$0xff]
      %v416 = vld [vmem:[%s138 + $0x10] sm:$0xff]
      %v417 = vld [vmem:[%s138 + $0x18] sm:$0xf]
      %v418 = vunpack.c.l.bf16 %v414
      %v419 = vunpack.c.h.bf16 %v414
      %v420 = vunpack.c.l.bf16 %v415
      %v421 = vunpack.c.h.bf16 %v415
      %v422 = vunpack.c.l.bf16 %v416
      %v423 = vunpack.c.h.bf16 %v416
      %v424 = vunpack.c.l.bf16 %v417
      %432 = vrot.lane.b32.xlu0 %v418, 116
      %v433 = vpop.permute.xlu0 %432
      %434 = vrot.lane.b32.xlu0 %v419, 116
      %v435 = vpop.permute.xlu0 %434
      %436 = vrot.lane.b32.xlu0 %v420, 116
      %v437 = vpop.permute.xlu0 %436
      %438 = vrot.lane.b32.xlu0 %v421, 116
      %v439 = vpop.permute.xlu0 %438
      %440 = vrot.lane.b32.xlu0 %v422, 116
      %v441 = vpop.permute.xlu0 %440
      %442 = vrot.lane.b32.xlu0 %v423, 116
      %v443 = vpop.permute.xlu0 %442
      %444 = vrot.lane.b32.xlu0 %v424, 116
      %v445 = vpop.permute.xlu0 %444
      %vm446 = vcmask 949248
      %v447 = vsel %vm446, %v433, %v435
      %v448 = vsel %vm446, %v435, %v437
      %v449 = vsel %vm446, %v437, %v439
      %v450 = vsel %vm446, %v439, %v441
      %v451 = vsel %vm446, %v441, %v443
      %v452 = vsel %vm446, %v443, %v445
      %459 = vst [vmem:[#allocation2 + $0x120] sm:$0xff] %v447
      %460 = vst [vmem:[#allocation2 + $0x128] sm:$0xff] %v448
      %461 = vst [vmem:[#allocation2 + $0x130] sm:$0xff] %v449
      %462 = vst [vmem:[#allocation2 + $0x138] sm:$0xff] %v450
      %463 = vst [vmem:[#allocation2 + $0x140] sm:$0xff] %v451
      %464 = vst [vmem:[#allocation2 + $0x148] sm:$0xff] %v452
      %v465 = vld [vmem:[%s138] sm:$0xff]
      %v466 = vld [vmem:[%s138 + $0x8] sm:$0xff]
      %v467 = vld [vmem:[%s138 + $0x10] sm:$0xff]
      %v468 = vld [vmem:[%s138 + $0x18] sm:$0xf]
      %v469 = vunpack.c.l.bf16 %v465
      %v470 = vunpack.c.h.bf16 %v465
      %v471 = vunpack.c.l.bf16 %v466
      %v472 = vunpack.c.h.bf16 %v466
      %v473 = vunpack.c.l.bf16 %v467
      %v474 = vunpack.c.h.bf16 %v467
      %v475 = vunpack.c.l.bf16 %v468
      %483 = vrot.lane.b32.xlu0 %v469, 115
      %v484 = vpop.permute.xlu0 %483
      %485 = vrot.lane.b32.xlu0 %v470, 115
      %v486 = vpop.permute.xlu0 %485
      %487 = vrot.lane.b32.xlu0 %v471, 115
      %v488 = vpop.permute.xlu0 %487
      %489 = vrot.lane.b32.xlu0 %v472, 115
      %v490 = vpop.permute.xlu0 %489
      %491 = vrot.lane.b32.xlu0 %v473, 115
      %v492 = vpop.permute.xlu0 %491
      %493 = vrot.lane.b32.xlu0 %v474, 115
      %v494 = vpop.permute.xlu0 %493
      %495 = vrot.lane.b32.xlu0 %v475, 115
      %v496 = vpop.permute.xlu0 %495
      %vm497 = vcmask 941056
      %v498 = vsel %vm497, %v484, %v486
      %v499 = vsel %vm497, %v486, %v488
      %v500 = vsel %vm497, %v488, %v490
      %v501 = vsel %vm497, %v490, %v492
      %v502 = vsel %vm497, %v492, %v494
      %v503 = vsel %vm497, %v494, %v496
      %510 = vst [vmem:[#allocation2 + $0x150] sm:$0xff] %v498
      %511 = vst [vmem:[#allocation2 + $0x158] sm:$0xff] %v499
      %512 = vst [vmem:[#allocation2 + $0x160] sm:$0xff] %v500
      %513 = vst [vmem:[#allocation2 + $0x168] sm:$0xff] %v501
      %514 = vst [vmem:[#allocation2 + $0x170] sm:$0xff] %v502
      %515 = vst [vmem:[#allocation2 + $0x178] sm:$0xff] %v503
      %v516 = vld [vmem:[%s138] sm:$0xff]
      %v517 = vld [vmem:[%s138 + $0x8] sm:$0xff]
      %v518 = vld [vmem:[%s138 + $0x10] sm:$0xff]
      %v519 = vld [vmem:[%s138 + $0x18] sm:$0xf]
      %v520 = vunpack.c.l.bf16 %v516
      %v521 = vunpack.c.h.bf16 %v516
      %v522 = vunpack.c.l.bf16 %v517
      %v523 = vunpack.c.h.bf16 %v517
      %v524 = vunpack.c.l.bf16 %v518
      %v525 = vunpack.c.h.bf16 %v518
      %v526 = vunpack.c.l.bf16 %v519
      %534 = vrot.lane.b32.xlu0 %v520, 108
      %v535 = vpop.permute.xlu0 %534
      %536 = vrot.lane.b32.xlu0 %v521, 108
      %v537 = vpop.permute.xlu0 %536
      %538 = vrot.lane.b32.xlu0 %v522, 108
      %v539 = vpop.permute.xlu0 %538
      %540 = vrot.lane.b32.xlu0 %v523, 108
      %v541 = vpop.permute.xlu0 %540
      %542 = vrot.lane.b32.xlu0 %v524, 108
      %v543 = vpop.permute.xlu0 %542
      %544 = vrot.lane.b32.xlu0 %v525, 108
      %v545 = vpop.permute.xlu0 %544
      %546 = vrot.lane.b32.xlu0 %v526, 108
      %v547 = vpop.permute.xlu0 %546
      %vm548 = vcmask 883712
      %v549 = vsel %vm548, %v535, %v537
      %v550 = vsel %vm548, %v537, %v539
      %v551 = vsel %vm548, %v539, %v541
      %v552 = vsel %vm548, %v541, %v543
      %v553 = vsel %vm548, %v543, %v545
      %v554 = vsel %vm548, %v545, %v547
      %561 = vst [vmem:[#allocation2 + $0x180] sm:$0xff] %v549
      %562 = vst [vmem:[#allocation2 + $0x188] sm:$0xff] %v550
      %563 = vst [vmem:[#allocation2 + $0x190] sm:$0xff] %v551
      %564 = vst [vmem:[#allocation2 + $0x198] sm:$0xff] %v552
      %565 = vst [vmem:[#allocation2 + $0x1a0] sm:$0xff] %v553
      %566 = vst [vmem:[#allocation2 + $0x1a8] sm:$0xff] %v554
      %v567 = vld [vmem:[%s138] sm:$0xff]
      %v568 = vld [vmem:[%s138 + $0x8] sm:$0xff]
      %v569 = vld [vmem:[%s138 + $0x10] sm:$0xff]
      %v570 = vld [vmem:[%s138 + $0x18] sm:$0xf]
      %v571 = vunpack.c.l.bf16 %v567
      %v572 = vunpack.c.h.bf16 %v567
      %v573 = vunpack.c.l.bf16 %v568
      %v574 = vunpack.c.h.bf16 %v568
      %v575 = vunpack.c.l.bf16 %v569
      %v576 = vunpack.c.h.bf16 %v569
      %v577 = vunpack.c.l.bf16 %v570
      %585 = vrot.lane.b32.xlu0 %v571, 107
      %v586 = vpop.permute.xlu0 %585
      %587 = vrot.lane.b32.xlu0 %v572, 107
      %v588 = vpop.permute.xlu0 %587
      %589 = vrot.lane.b32.xlu0 %v573, 107
      %v590 = vpop.permute.xlu0 %589
      %591 = vrot.lane.b32.xlu0 %v574, 107
      %v592 = vpop.permute.xlu0 %591
      %593 = vrot.lane.b32.xlu0 %v575, 107
      %v594 = vpop.permute.xlu0 %593
      %595 = vrot.lane.b32.xlu0 %v576, 107
      %v596 = vpop.permute.xlu0 %595
      %597 = vrot.lane.b32.xlu0 %v577, 107
      %v598 = vpop.permute.xlu0 %597
      %vm599 = vcmask 875520
      %v600 = vsel %vm599, %v586, %v588
      %v601 = vsel %vm599, %v588, %v590
      %v602 = vsel %vm599, %v590, %v592
      %v603 = vsel %vm599, %v592, %v594
      %v604 = vsel %vm599, %v594, %v596
      %v605 = vsel %vm599, %v596, %v598
      %612 = vst [vmem:[#allocation2 + $0x1b0] sm:$0xff] %v600
      %613 = vst [vmem:[#allocation2 + $0x1b8] sm:$0xff] %v601
      %614 = vst [vmem:[#allocation2 + $0x1c0] sm:$0xff] %v602
      %615 = vst [vmem:[#allocation2 + $0x1c8] sm:$0xff] %v603
      %616 = vst [vmem:[#allocation2 + $0x1d0] sm:$0xff] %v604
      %617 = vst [vmem:[#allocation2 + $0x1d8] sm:$0xff] %v605
      %v618 = vld [vmem:[%s138] sm:$0xff]
      %v619 = vld [vmem:[%s138 + $0x8] sm:$0xff]
      %v620 = vld [vmem:[%s138 + $0x10] sm:$0xff]
      %v621 = vld [vmem:[%s138 + $0x18] sm:$0xf]
      %v622 = vunpack.c.l.bf16 %v618
      %v623 = vunpack.c.h.bf16 %v618
      %v624 = vunpack.c.l.bf16 %v619
      %v625 = vunpack.c.h.bf16 %v619
      %v626 = vunpack.c.l.bf16 %v620
      %v627 = vunpack.c.h.bf16 %v620
      %v628 = vunpack.c.l.bf16 %v621
      %636 = vrot.lane.b32.xlu0 %v622, 106
      %v637 = vpop.permute.xlu0 %636
      %638 = vrot.lane.b32.xlu0 %v623, 106
      %v639 = vpop.permute.xlu0 %638
      %640 = vrot.lane.b32.xlu0 %v624, 106
      %v641 = vpop.permute.xlu0 %640
      %642 = vrot.lane.b32.xlu0 %v625, 106
      %v643 = vpop.permute.xlu0 %642
      %644 = vrot.lane.b32.xlu0 %v626, 106
      %v645 = vpop.permute.xlu0 %644
      %646 = vrot.lane.b32.xlu0 %v627, 106
      %v647 = vpop.permute.xlu0 %646
      %648 = vrot.lane.b32.xlu0 %v628, 106
      %v649 = vpop.permute.xlu0 %648
      %vm650 = vcmask 867328
      %v651 = vsel %vm650, %v637, %v639
      %v652 = vsel %vm650, %v639, %v641
      %v653 = vsel %vm650, %v641, %v643
      %v654 = vsel %vm650, %v643, %v645
      %v655 = vsel %vm650, %v645, %v647
      %v656 = vsel %vm650, %v647, %v649
      %663 = vst [vmem:[#allocation2 + $0x1e0] sm:$0xff] %v651
      %664 = vst [vmem:[#allocation2 + $0x1e8] sm:$0xff] %v652
      %665 = vst [vmem:[#allocation2 + $0x1f0] sm:$0xff] %v653
      %666 = vst [vmem:[#allocation2 + $0x1f8] sm:$0xff] %v654
      %667 = vst [vmem:[#allocation2 + $0x200] sm:$0xff] %v655
      %668 = vst [vmem:[#allocation2 + $0x208] sm:$0xff] %v656
      %v669 = vld [vmem:[%s138] sm:$0xff]
      %v670 = vld [vmem:[%s138 + $0x8] sm:$0xff]
      %v671 = vld [vmem:[%s138 + $0x10] sm:$0xff]
      %v672 = vld [vmem:[%s138 + $0x18] sm:$0xf]
      %v673 = vunpack.c.l.bf16 %v669
      %v674 = vunpack.c.h.bf16 %v669
      %v675 = vunpack.c.l.bf16 %v670
      %v676 = vunpack.c.h.bf16 %v670
      %v677 = vunpack.c.l.bf16 %v671
      %v678 = vunpack.c.h.bf16 %v671
      %v679 = vunpack.c.l.bf16 %v672
      %687 = vrot.lane.b32.xlu0 %v673, 105
      %v688 = vpop.permute.xlu0 %687
      %689 = vrot.lane.b32.xlu0 %v674, 105
      %v690 = vpop.permute.xlu0 %689
      %691 = vrot.lane.b32.xlu0 %v675, 105
      %v692 = vpop.permute.xlu0 %691
      %693 = vrot.lane.b32.xlu0 %v676, 105
      %v694 = vpop.permute.xlu0 %693
      %695 = vrot.lane.b32.xlu0 %v677, 105
      %v696 = vpop.permute.xlu0 %695
      %697 = vrot.lane.b32.xlu0 %v678, 105
      %v698 = vpop.permute.xlu0 %697
      %699 = vrot.lane.b32.xlu0 %v679, 105
      %v700 = vpop.permute.xlu0 %699
      %vm701 = vcmask 859136
      %v702 = vsel %vm701, %v688, %v690
      %v703 = vsel %vm701, %v690, %v692
      %v704 = vsel %vm701, %v692, %v694
      %v705 = vsel %vm701, %v694, %v696
      %v706 = vsel %vm701, %v696, %v698
      %v707 = vsel %vm701, %v698, %v700
      %714 = vst [vmem:[#allocation2 + $0x210] sm:$0xff] %v702
      %715 = vst [vmem:[#allocation2 + $0x218] sm:$0xff] %v703
      %716 = vst [vmem:[#allocation2 + $0x220] sm:$0xff] %v704
      %717 = vst [vmem:[#allocation2 + $0x228] sm:$0xff] %v705
      %718 = vst [vmem:[#allocation2 + $0x230] sm:$0xff] %v706
      %719 = vst [vmem:[#allocation2 + $0x238] sm:$0xff] %v707
      %v720 = vld [vmem:[%s138] sm:$0xff]
      %v721 = vld [vmem:[%s138 + $0x8] sm:$0xff]
      %v722 = vld [vmem:[%s138 + $0x10] sm:$0xff]
      %v723 = vld [vmem:[%s138 + $0x18] sm:$0xf]
      %v724 = vunpack.c.l.bf16 %v720
      %v725 = vunpack.c.h.bf16 %v720
      %v726 = vunpack.c.l.bf16 %v721
      %v727 = vunpack.c.h.bf16 %v721
      %v728 = vunpack.c.l.bf16 %v722
      %v729 = vunpack.c.h.bf16 %v722
      %v730 = vunpack.c.l.bf16 %v723
      %738 = vrot.lane.b32.xlu0 %v724, 98
      %v739 = vpop.permute.xlu0 %738
      %740 = vrot.lane.b32.xlu0 %v725, 98
      %v741 = vpop.permute.xlu0 %740
      %742 = vrot.lane.b32.xlu0 %v726, 98
      %v743 = vpop.permute.xlu0 %742
      %744 = vrot.lane.b32.xlu0 %v727, 98
      %v745 = vpop.permute.xlu0 %744
      %746 = vrot.lane.b32.xlu0 %v728, 98
      %v747 = vpop.permute.xlu0 %746
      %748 = vrot.lane.b32.xlu0 %v729, 98
      %v749 = vpop.permute.xlu0 %748
      %750 = vrot.lane.b32.xlu0 %v730, 98
      %v751 = vpop.permute.xlu0 %750
      %vm752 = vcmask 801792
      %v753 = vsel %vm752, %v739, %v741
      %v754 = vsel %vm752, %v741, %v743
      %v755 = vsel %vm752, %v743, %v745
      %v756 = vsel %vm752, %v745, %v747
      %v757 = vsel %vm752, %v747, %v749
      %v758 = vsel %vm752, %v749, %v751
      %765 = vst [vmem:[#allocation2 + $0x240] sm:$0xff] %v753
      %766 = vst [vmem:[#allocation2 + $0x248] sm:$0xff] %v754
      %767 = vst [vmem:[#allocation2 + $0x250] sm:$0xff] %v755
      %768 = vst [vmem:[#allocation2 + $0x258] sm:$0xff] %v756
      %769 = vst [vmem:[#allocation2 + $0x260] sm:$0xff] %v757
      %770 = vst [vmem:[#allocation2 + $0x268] sm:$0xff] %v758
      %v771 = vld [vmem:[%s138] sm:$0xff]
      %v772 = vld [vmem:[%s138 + $0x8] sm:$0xff]
      %v773 = vld [vmem:[%s138 + $0x10] sm:$0xff]
      %v774 = vld [vmem:[%s138 + $0x18] sm:$0xf]
      %v775 = vunpack.c.l.bf16 %v771
      %v776 = vunpack.c.h.bf16 %v771
      %v777 = vunpack.c.l.bf16 %v772
      %v778 = vunpack.c.h.bf16 %v772
      %v779 = vunpack.c.l.bf16 %v773
      %v780 = vunpack.c.h.bf16 %v773
      %v781 = vunpack.c.l.bf16 %v774
      %789 = vrot.lane.b32.xlu0 %v775, 97
      %v790 = vpop.permute.xlu0 %789
      %791 = vrot.lane.b32.xlu0 %v776, 97
      %v792 = vpop.permute.xlu0 %791
      %793 = vrot.lane.b32.xlu0 %v777, 97
      %v794 = vpop.permute.xlu0 %793
      %795 = vrot.lane.b32.xlu0 %v778, 97
      %v796 = vpop.permute.xlu0 %795
      %797 = vrot.lane.b32.xlu0 %v779, 97
      %v798 = vpop.permute.xlu0 %797
      %799 = vrot.lane.b32.xlu0 %v780, 97
      %v800 = vpop.permute.xlu0 %799
      %801 = vrot.lane.b32.xlu0 %v781, 97
      %v802 = vpop.permute.xlu0 %801
      %vm803 = vcmask 793600
      %v804 = vsel %vm803, %v790, %v792
      %v805 = vsel %vm803, %v792, %v794
      %v806 = vsel %vm803, %v794, %v796
      %v807 = vsel %vm803, %v796, %v798
      %v808 = vsel %vm803, %v798, %v800
      %v809 = vsel %vm803, %v800, %v802
      %816 = vst [vmem:[#allocation2 + $0x270] sm:$0xff] %v804
      %817 = vst [vmem:[#allocation2 + $0x278] sm:$0xff] %v805
      %818 = vst [vmem:[#allocation2 + $0x280] sm:$0xff] %v806
      %819 = vst [vmem:[#allocation2 + $0x288] sm:$0xff] %v807
      %820 = vst [vmem:[#allocation2 + $0x290] sm:$0xff] %v808
      %821 = vst [vmem:[#allocation2 + $0x298] sm:$0xff] %v809
      %v822 = vld [vmem:[%s138] sm:$0xff]
      %v823 = vld [vmem:[%s138 + $0x8] sm:$0xff]
      %v824 = vld [vmem:[%s138 + $0x10] sm:$0xff]
      %v825 = vld [vmem:[%s138 + $0x18] sm:$0xf]
      %v826 = vunpack.c.l.bf16 %v822
      %v827 = vunpack.c.h.bf16 %v822
      %v828 = vunpack.c.l.bf16 %v823
      %v829 = vunpack.c.h.bf16 %v823
      %v830 = vunpack.c.l.bf16 %v824
      %v831 = vunpack.c.h.bf16 %v824
      %v832 = vunpack.c.l.bf16 %v825
      %840 = vrot.lane.b32.xlu0 %v826, 96
      %v841 = vpop.permute.xlu0 %840
      %842 = vrot.lane.b32.xlu0 %v827, 96
      %v843 = vpop.permute.xlu0 %842
      %844 = vrot.lane.b32.xlu0 %v828, 96
      %v845 = vpop.permute.xlu0 %844
      %846 = vrot.lane.b32.xlu0 %v829, 96
      %v847 = vpop.permute.xlu0 %846
      %848 = vrot.lane.b32.xlu0 %v830, 96
      %v849 = vpop.permute.xlu0 %848
      %850 = vrot.lane.b32.xlu0 %v831, 96
      %v851 = vpop.permute.xlu0 %850
      %852 = vrot.lane.b32.xlu0 %v832, 96
      %v853 = vpop.permute.xlu0 %852
      %vm854 = vcmask 785408
      %v855 = vsel %vm854, %v841, %v843
      %v856 = vsel %vm854, %v843, %v845
      %v857 = vsel %vm854, %v845, %v847
      %v858 = vsel %vm854, %v847, %v849
      %v859 = vsel %vm854, %v849, %v851
      %v860 = vsel %vm854, %v851, %v853
      %867 = vst [vmem:[#allocation2 + $0x2a0] sm:$0xff] %v855
      %868 = vst [vmem:[#allocation2 + $0x2a8] sm:$0xff] %v856
      %869 = vst [vmem:[#allocation2 + $0x2b0] sm:$0xff] %v857
      %870 = vst [vmem:[#allocation2 + $0x2b8] sm:$0xff] %v858
      %871 = vst [vmem:[#allocation2 + $0x2c0] sm:$0xff] %v859
      %872 = vst [vmem:[#allocation2 + $0x2c8] sm:$0xff] %v860
      %v873 = vld [vmem:[%s138] sm:$0xff]
      %v874 = vld [vmem:[%s138 + $0x8] sm:$0xff]
      %v875 = vld [vmem:[%s138 + $0x10] sm:$0xff]
      %v876 = vld [vmem:[%s138 + $0x18] sm:$0xf]
      %v877 = vunpack.c.l.bf16 %v873
      %v878 = vunpack.c.h.bf16 %v873
      %v879 = vunpack.c.l.bf16 %v874
      %v880 = vunpack.c.h.bf16 %v874
      %v881 = vunpack.c.l.bf16 %v875
      %v882 = vunpack.c.h.bf16 %v875
      %v883 = vunpack.c.l.bf16 %v876
      %891 = vrot.lane.b32.xlu0 %v877, 95
      %v892 = vpop.permute.xlu0 %891
      %893 = vrot.lane.b32.xlu0 %v878, 95
      %v894 = vpop.permute.xlu0 %893
      %895 = vrot.lane.b32.xlu0 %v879, 95
      %v896 = vpop.permute.xlu0 %895
      %897 = vrot.lane.b32.xlu0 %v880, 95
      %v898 = vpop.permute.xlu0 %897
      %899 = vrot.lane.b32.xlu0 %v881, 95
      %v900 = vpop.permute.xlu0 %899
      %901 = vrot.lane.b32.xlu0 %v882, 95
      %v902 = vpop.permute.xlu0 %901
      %903 = vrot.lane.b32.xlu0 %v883, 95
      %v904 = vpop.permute.xlu0 %903
      %vm905 = vcmask 777216
      %v906 = vsel %vm905, %v892, %v894
      %v907 = vsel %vm905, %v894, %v896
      %v908 = vsel %vm905, %v896, %v898
      %v909 = vsel %vm905, %v898, %v900
      %v910 = vsel %vm905, %v900, %v902
      %v911 = vsel %vm905, %v902, %v904
      %918 = vst [vmem:[#allocation2 + $0x2d0] sm:$0xff] %v906
      %919 = vst [vmem:[#allocation2 + $0x2d8] sm:$0xff] %v907
      %920 = vst [vmem:[#allocation2 + $0x2e0] sm:$0xff] %v908
      %921 = vst [vmem:[#allocation2 + $0x2e8] sm:$0xff] %v909
      %922 = vst [vmem:[#allocation2 + $0x2f0] sm:$0xff] %v910
      %923 = vst [vmem:[#allocation2 + $0x2f8] sm:$0xff] %v911
      %v924 = vld [vmem:[%s138] sm:$0xff]
      %v925 = vld [vmem:[%s138 + $0x8] sm:$0xff]
      %v926 = vld [vmem:[%s138 + $0x10] sm:$0xff]
      %v927 = vld [vmem:[%s138 + $0x18] sm:$0xf]
      %v928 = vunpack.c.l.bf16 %v924
      %v929 = vunpack.c.h.bf16 %v924
      %v930 = vunpack.c.l.bf16 %v925
      %v931 = vunpack.c.h.bf16 %v925
      %v932 = vunpack.c.l.bf16 %v926
      %v933 = vunpack.c.h.bf16 %v926
      %v934 = vunpack.c.l.bf16 %v927
      %942 = vrot.lane.b32.xlu0 %v928, 28
      %v943 = vpop.permute.xlu0 %942
      %944 = vrot.lane.b32.xlu0 %v929, 28
      %v945 = vpop.permute.xlu0 %944
      %946 = vrot.lane.b32.xlu0 %v930, 28
      %v947 = vpop.permute.xlu0 %946
      %948 = vrot.lane.b32.xlu0 %v931, 28
      %v949 = vpop.permute.xlu0 %948
      %950 = vrot.lane.b32.xlu0 %v932, 28
      %v951 = vpop.permute.xlu0 %950
      %952 = vrot.lane.b32.xlu0 %v933, 28
      %v953 = vpop.permute.xlu0 %952
      %954 = vrot.lane.b32.xlu0 %v934, 28
      %v955 = vpop.permute.xlu0 %954
      %vm956 = vcmask 228352
      %v957 = vsel %vm956, %v943, %v945
      %v958 = vsel %vm956, %v945, %v947
      %v959 = vsel %vm956, %v947, %v949
      %v960 = vsel %vm956, %v949, %v951
      %v961 = vsel %vm956, %v951, %v953
      %v962 = vsel %vm956, %v953, %v955
      %969 = vst [vmem:[#allocation2 + $0x300] sm:$0xff] %v957
      %970 = vst [vmem:[#allocation2 + $0x308] sm:$0xff] %v958
      %971 = vst [vmem:[#allocation2 + $0x310] sm:$0xff] %v959
      %972 = vst [vmem:[#allocation2 + $0x318] sm:$0xff] %v960
      %973 = vst [vmem:[#allocation2 + $0x320] sm:$0xff] %v961
      %974 = vst [vmem:[#allocation2 + $0x328] sm:$0xff] %v962
      %v975 = vld [vmem:[%s138] sm:$0xff]
      %v976 = vld [vmem:[%s138 + $0x8] sm:$0xff]
      %v977 = vld [vmem:[%s138 + $0x10] sm:$0xff]
      %v978 = vld [vmem:[%s138 + $0x18] sm:$0xf]
      %v979 = vunpack.c.l.bf16 %v975
      %v980 = vunpack.c.h.bf16 %v975
      %v981 = vunpack.c.l.bf16 %v976
      %v982 = vunpack.c.h.bf16 %v976
      %v983 = vunpack.c.l.bf16 %v977
      %v984 = vunpack.c.h.bf16 %v977
      %v985 = vunpack.c.l.bf16 %v978
      %993 = vrot.lane.b32.xlu0 %v979, 27
      %v994 = vpop.permute.xlu0 %993
      %995 = vrot.lane.b32.xlu0 %v980, 27
      %v996 = vpop.permute.xlu0 %995
      %997 = vrot.lane.b32.xlu0 %v981, 27
      %v998 = vpop.permute.xlu0 %997
      %999 = vrot.lane.b32.xlu0 %v982, 27
      %v1000 = vpop.permute.xlu0 %999
      %1001 = vrot.lane.b32.xlu0 %v983, 27
      %v1002 = vpop.permute.xlu0 %1001
      %1003 = vrot.lane.b32.xlu0 %v984, 27
      %v1004 = vpop.permute.xlu0 %1003
      %1005 = vrot.lane.b32.xlu0 %v985, 27
      %v1006 = vpop.permute.xlu0 %1005
      %vm1007 = vcmask 220160
      %v1008 = vsel %vm1007, %v994, %v996
      %v1009 = vsel %vm1007, %v996, %v998
      %v1010 = vsel %vm1007, %v998, %v1000
      %v1011 = vsel %vm1007, %v1000, %v1002
      %v1012 = vsel %vm1007, %v1002, %v1004
      %v1013 = vsel %vm1007, %v1004, %v1006
      %1020 = vst [vmem:[#allocation2 + $0x330] sm:$0xff] %v1008
      %1021 = vst [vmem:[#allocation2 + $0x338] sm:$0xff] %v1009
      %1022 = vst [vmem:[#allocation2 + $0x340] sm:$0xff] %v1010
      %1023 = vst [vmem:[#allocation2 + $0x348] sm:$0xff] %v1011
      %1024 = vst [vmem:[#allocation2 + $0x350] sm:$0xff] %v1012
      %1025 = vst [vmem:[#allocation2 + $0x358] sm:$0xff] %v1013
      %v1026 = vld [vmem:[%s138] sm:$0xff]
      %v1027 = vld [vmem:[%s138 + $0x8] sm:$0xff]
      %v1028 = vld [vmem:[%s138 + $0x10] sm:$0xff]
      %v1029 = vld [vmem:[%s138 + $0x18] sm:$0xf]
      %v1030 = vunpack.c.l.bf16 %v1026
      %v1031 = vunpack.c.h.bf16 %v1026
      %v1032 = vunpack.c.l.bf16 %v1027
      %v1033 = vunpack.c.h.bf16 %v1027
      %v1034 = vunpack.c.l.bf16 %v1028
      %v1035 = vunpack.c.h.bf16 %v1028
      %v1036 = vunpack.c.l.bf16 %v1029
      %1044 = vrot.lane.b32.xlu0 %v1030, 26
      %v1045 = vpop.permute.xlu0 %1044
      %1046 = vrot.lane.b32.xlu0 %v1031, 26
      %v1047 = vpop.permute.xlu0 %1046
      %1048 = vrot.lane.b32.xlu0 %v1032, 26
      %v1049 = vpop.permute.xlu0 %1048
      %1050 = vrot.lane.b32.xlu0 %v1033, 26
      %v1051 = vpop.permute.xlu0 %1050
      %1052 = vrot.lane.b32.xlu0 %v1034, 26
      %v1053 = vpop.permute.xlu0 %1052
      %1054 = vrot.lane.b32.xlu0 %v1035, 26
      %v1055 = vpop.permute.xlu0 %1054
      %1056 = vrot.lane.b32.xlu0 %v1036, 26
      %v1057 = vpop.permute.xlu0 %1056
      %vm1058 = vcmask 211968
      %v1059 = vsel %vm1058, %v1045, %v1047
      %v1060 = vsel %vm1058, %v1047, %v1049
      %v1061 = vsel %vm1058, %v1049, %v1051
      %v1062 = vsel %vm1058, %v1051, %v1053
      %v1063 = vsel %vm1058, %v1053, %v1055
      %v1064 = vsel %vm1058, %v1055, %v1057
      %1071 = vst [vmem:[#allocation2 + $0x360] sm:$0xff] %v1059
      %1072 = vst [vmem:[#allocation2 + $0x368] sm:$0xff] %v1060
      %1073 = vst [vmem:[#allocation2 + $0x370] sm:$0xff] %v1061
      %1074 = vst [vmem:[#allocation2 + $0x378] sm:$0xff] %v1062
      %1075 = vst [vmem:[#allocation2 + $0x380] sm:$0xff] %v1063
      %1076 = vst [vmem:[#allocation2 + $0x388] sm:$0xff] %v1064
      %v1077 = vld [vmem:[%s138] sm:$0xff]
      %v1078 = vld [vmem:[%s138 + $0x8] sm:$0xff]
      %v1079 = vld [vmem:[%s138 + $0x10] sm:$0xff]
      %v1080 = vld [vmem:[%s138 + $0x18] sm:$0xf]
      %v1081 = vunpack.c.l.bf16 %v1077
      %v1082 = vunpack.c.h.bf16 %v1077
      %v1083 = vunpack.c.l.bf16 %v1078
      %v1084 = vunpack.c.h.bf16 %v1078
      %v1085 = vunpack.c.l.bf16 %v1079
      %v1086 = vunpack.c.h.bf16 %v1079
      %v1087 = vunpack.c.l.bf16 %v1080
      %1095 = vrot.lane.b32.xlu0 %v1081, 25
      %v1096 = vpop.permute.xlu0 %1095
      %1097 = vrot.lane.b32.xlu0 %v1082, 25
      %v1098 = vpop.permute.xlu0 %1097
      %1099 = vrot.lane.b32.xlu0 %v1083, 25
      %v1100 = vpop.permute.xlu0 %1099
      %1101 = vrot.lane.b32.xlu0 %v1084, 25
      %v1102 = vpop.permute.xlu0 %1101
      %1103 = vrot.lane.b32.xlu0 %v1085, 25
      %v1104 = vpop.permute.xlu0 %1103
      %1105 = vrot.lane.b32.xlu0 %v1086, 25
      %v1106 = vpop.permute.xlu0 %1105
      %1107 = vrot.lane.b32.xlu0 %v1087, 25
      %v1108 = vpop.permute.xlu0 %1107
      %vm1109 = vcmask 203776
      %v1110 = vsel %vm1109, %v1096, %v1098
      %v1111 = vsel %vm1109, %v1098, %v1100
      %v1112 = vsel %vm1109, %v1100, %v1102
      %v1113 = vsel %vm1109, %v1102, %v1104
      %v1114 = vsel %vm1109, %v1104, %v1106
      %v1115 = vsel %vm1109, %v1106, %v1108
      %1122 = vst [vmem:[#allocation2 + $0x390] sm:$0xff] %v1110
      %1123 = vst [vmem:[#allocation2 + $0x398] sm:$0xff] %v1111
      %1124 = vst [vmem:[#allocation2 + $0x3a0] sm:$0xff] %v1112
      %1125 = vst [vmem:[#allocation2 + $0x3a8] sm:$0xff] %v1113
      %1126 = vst [vmem:[#allocation2 + $0x3b0] sm:$0xff] %v1114
      %1127 = vst [vmem:[#allocation2 + $0x3b8] sm:$0xff] %v1115
      %v1128 = vld [vmem:[%s138] sm:$0xff]
      %v1129 = vld [vmem:[%s138 + $0x8] sm:$0xff]
      %v1130 = vld [vmem:[%s138 + $0x10] sm:$0xff]
      %v1131 = vld [vmem:[%s138 + $0x18] sm:$0xf]
      %v1132 = vunpack.c.l.bf16 %v1128
      %v1133 = vunpack.c.h.bf16 %v1128
      %v1134 = vunpack.c.l.bf16 %v1129
      %v1135 = vunpack.c.h.bf16 %v1129
      %v1136 = vunpack.c.l.bf16 %v1130
      %v1137 = vunpack.c.h.bf16 %v1130
      %v1138 = vunpack.c.l.bf16 %v1131
      %1146 = vrot.lane.b32.xlu0 %v1132, 18
      %v1147 = vpop.permute.xlu0 %1146
      %1148 = vrot.lane.b32.xlu0 %v1133, 18
      %v1149 = vpop.permute.xlu0 %1148
      %1150 = vrot.lane.b32.xlu0 %v1134, 18
      %v1151 = vpop.permute.xlu0 %1150
      %1152 = vrot.lane.b32.xlu0 %v1135, 18
      %v1153 = vpop.permute.xlu0 %1152
      %1154 = vrot.lane.b32.xlu0 %v1136, 18
      %v1155 = vpop.permute.xlu0 %1154
      %1156 = vrot.lane.b32.xlu0 %v1137, 18
      %v1157 = vpop.permute.xlu0 %1156
      %1158 = vrot.lane.b32.xlu0 %v1138, 18
      %v1159 = vpop.permute.xlu0 %1158
      %vm1160 = vcmask 146432
      %v1161 = vsel %vm1160, %v1147, %v1149
      %v1162 = vsel %vm1160, %v1149, %v1151
      %v1163 = vsel %vm1160, %v1151, %v1153
      %v1164 = vsel %vm1160, %v1153, %v1155
      %v1165 = vsel %vm1160, %v1155, %v1157
      %v1166 = vsel %vm1160, %v1157, %v1159
      %1173 = vst [vmem:[#allocation2 + $0x3c0] sm:$0xff] %v1161
      %1174 = vst [vmem:[#allocation2 + $0x3c8] sm:$0xff] %v1162
      %1175 = vst [vmem:[#allocation2 + $0x3d0] sm:$0xff] %v1163
      %1176 = vst [vmem:[#allocation2 + $0x3d8] sm:$0xff] %v1164
      %1177 = vst [vmem:[#allocation2 + $0x3e0] sm:$0xff] %v1165
      %1178 = vst [vmem:[#allocation2 + $0x3e8] sm:$0xff] %v1166
      %v1179 = vld [vmem:[%s138] sm:$0xff]
      %v1180 = vld [vmem:[%s138 + $0x8] sm:$0xff]
      %v1181 = vld [vmem:[%s138 + $0x10] sm:$0xff]
      %v1182 = vld [vmem:[%s138 + $0x18] sm:$0xf]
      %v1183 = vunpack.c.l.bf16 %v1179
      %v1184 = vunpack.c.h.bf16 %v1179
      %v1185 = vunpack.c.l.bf16 %v1180
      %v1186 = vunpack.c.h.bf16 %v1180
      %v1187 = vunpack.c.l.bf16 %v1181
      %v1188 = vunpack.c.h.bf16 %v1181
      %v1189 = vunpack.c.l.bf16 %v1182
      %1197 = vrot.lane.b32.xlu0 %v1183, 17
      %v1198 = vpop.permute.xlu0 %1197
      %1199 = vrot.lane.b32.xlu0 %v1184, 17
      %v1200 = vpop.permute.xlu0 %1199
      %1201 = vrot.lane.b32.xlu0 %v1185, 17
      %v1202 = vpop.permute.xlu0 %1201
      %1203 = vrot.lane.b32.xlu0 %v1186, 17
      %v1204 = vpop.permute.xlu0 %1203
      %1205 = vrot.lane.b32.xlu0 %v1187, 17
      %v1206 = vpop.permute.xlu0 %1205
      %1207 = vrot.lane.b32.xlu0 %v1188, 17
      %v1208 = vpop.permute.xlu0 %1207
      %1209 = vrot.lane.b32.xlu0 %v1189, 17
      %v1210 = vpop.permute.xlu0 %1209
      %vm1211 = vcmask 138240
      %v1212 = vsel %vm1211, %v1198, %v1200
      %v1213 = vsel %vm1211, %v1200, %v1202
      %v1214 = vsel %vm1211, %v1202, %v1204
      %v1215 = vsel %vm1211, %v1204, %v1206
      %v1216 = vsel %vm1211, %v1206, %v1208
      %v1217 = vsel %vm1211, %v1208, %v1210
      %1224 = vst [vmem:[#allocation2 + $0x3f0] sm:$0xff] %v1212
      %1225 = vst [vmem:[#allocation2 + $0x3f8] sm:$0xff] %v1213
      %1226 = vst [vmem:[#allocation2 + $0x400] sm:$0xff] %v1214
      %1227 = vst [vmem:[#allocation2 + $0x408] sm:$0xff] %v1215
      %1228 = vst [vmem:[#allocation2 + $0x410] sm:$0xff] %v1216
      %1229 = vst [vmem:[#allocation2 + $0x418] sm:$0xff] %v1217
      %v1230 = vld [vmem:[%s138] sm:$0xff]
      %v1231 = vld [vmem:[%s138 + $0x8] sm:$0xff]
      %v1232 = vld [vmem:[%s138 + $0x10] sm:$0xff]
      %v1233 = vld [vmem:[%s138 + $0x18] sm:$0xf]
      %v1234 = vunpack.c.l.bf16 %v1230
      %v1235 = vunpack.c.h.bf16 %v1230
      %v1236 = vunpack.c.l.bf16 %v1231
      %v1237 = vunpack.c.h.bf16 %v1231
      %v1238 = vunpack.c.l.bf16 %v1232
      %v1239 = vunpack.c.h.bf16 %v1232
      %v1240 = vunpack.c.l.bf16 %v1233
      %1248 = vrot.lane.b32.xlu0 %v1234, 16
      %v1249 = vpop.permute.xlu0 %1248
      %1250 = vrot.lane.b32.xlu0 %v1235, 16
      %v1251 = vpop.permute.xlu0 %1250
      %1252 = vrot.lane.b32.xlu0 %v1236, 16
      %v1253 = vpop.permute.xlu0 %1252
      %1254 = vrot.lane.b32.xlu0 %v1237, 16
      %v1255 = vpop.permute.xlu0 %1254
      %1256 = vrot.lane.b32.xlu0 %v1238, 16
      %v1257 = vpop.permute.xlu0 %1256
      %1258 = vrot.lane.b32.xlu0 %v1239, 16
      %v1259 = vpop.permute.xlu0 %1258
      %1260 = vrot.lane.b32.xlu0 %v1240, 16
      %v1261 = vpop.permute.xlu0 %1260
      %vm1262 = vcmask 130048
      %v1263 = vsel %vm1262, %v1249, %v1251
      %v1264 = vsel %vm1262, %v1251, %v1253
      %v1265 = vsel %vm1262, %v1253, %v1255
      %v1266 = vsel %vm1262, %v1255, %v1257
      %v1267 = vsel %vm1262, %v1257, %v1259
      %v1268 = vsel %vm1262, %v1259, %v1261
      %1275 = vst [vmem:[#allocation2 + $0x420] sm:$0xff] %v1263
      %1276 = vst [vmem:[#allocation2 + $0x428] sm:$0xff] %v1264
      %1277 = vst [vmem:[#allocation2 + $0x430] sm:$0xff] %v1265
      %1278 = vst [vmem:[#allocation2 + $0x438] sm:$0xff] %v1266
      %1279 = vst [vmem:[#allocation2 + $0x440] sm:$0xff] %v1267
      %1280 = vst [vmem:[#allocation2 + $0x448] sm:$0xff] %v1268
      %v1281 = vld [vmem:[%s138] sm:$0xff]
      %v1282 = vld [vmem:[%s138 + $0x8] sm:$0xff]
      %v1283 = vld [vmem:[%s138 + $0x10] sm:$0xff]
      %v1284 = vld [vmem:[%s138 + $0x18] sm:$0xf]
      %v1285 = vunpack.c.l.bf16 %v1281
      %v1286 = vunpack.c.h.bf16 %v1281
      %v1287 = vunpack.c.l.bf16 %v1282
      %v1288 = vunpack.c.h.bf16 %v1282
      %v1289 = vunpack.c.l.bf16 %v1283
      %v1290 = vunpack.c.h.bf16 %v1283
      %v1291 = vunpack.c.l.bf16 %v1284
      %1299 = vrot.lane.b32.xlu0 %v1285, 15
      %v1300 = vpop.permute.xlu0 %1299
      %1301 = vrot.lane.b32.xlu0 %v1286, 15
      %v1302 = vpop.permute.xlu0 %1301
      %1303 = vrot.lane.b32.xlu0 %v1287, 15
      %v1304 = vpop.permute.xlu0 %1303
      %1305 = vrot.lane.b32.xlu0 %v1288, 15
      %v1306 = vpop.permute.xlu0 %1305
      %1307 = vrot.lane.b32.xlu0 %v1289, 15
      %v1308 = vpop.permute.xlu0 %1307
      %1309 = vrot.lane.b32.xlu0 %v1290, 15
      %v1310 = vpop.permute.xlu0 %1309
      %1311 = vrot.lane.b32.xlu0 %v1291, 15
      %v1312 = vpop.permute.xlu0 %1311
      %vm1313 = vcmask 121856
      %v1314 = vsel %vm1313, %v1300, %v1302
      %v1315 = vsel %vm1313, %v1302, %v1304
      %v1316 = vsel %vm1313, %v1304, %v1306
      %v1317 = vsel %vm1313, %v1306, %v1308
      %v1318 = vsel %vm1313, %v1308, %v1310
      %v1319 = vsel %vm1313, %v1310, %v1312
      %1326 = vst [vmem:[#allocation2 + $0x450] sm:$0xff] %v1314
      %1327 = vst [vmem:[#allocation2 + $0x458] sm:$0xff] %v1315
      %1328 = vst [vmem:[#allocation2 + $0x460] sm:$0xff] %v1316
      %1329 = vst [vmem:[#allocation2 + $0x468] sm:$0xff] %v1317
      %1330 = vst [vmem:[#allocation2 + $0x470] sm:$0xff] %v1318
      %1331 = vst [vmem:[#allocation2 + $0x478] sm:$0xff] %v1319
      %v1332 = vld [vmem:[%s138] sm:$0xff]
      %v1333 = vld [vmem:[%s138 + $0x8] sm:$0xff]
      %v1334 = vld [vmem:[%s138 + $0x10] sm:$0xff]
      %v1335 = vld [vmem:[%s138 + $0x18] sm:$0xf]
      %v1336 = vunpack.c.l.bf16 %v1332
      %v1337 = vunpack.c.h.bf16 %v1332
      %v1338 = vunpack.c.l.bf16 %v1333
      %v1339 = vunpack.c.h.bf16 %v1333
      %v1340 = vunpack.c.l.bf16 %v1334
      %v1341 = vunpack.c.h.bf16 %v1334
      %v1342 = vunpack.c.l.bf16 %v1335
      %1350 = vrot.lane.b32.xlu0 %v1336, 8
      %v1351 = vpop.permute.xlu0 %1350
      %1352 = vrot.lane.b32.xlu0 %v1337, 8
      %v1353 = vpop.permute.xlu0 %1352
      %1354 = vrot.lane.b32.xlu0 %v1338, 8
      %v1355 = vpop.permute.xlu0 %1354
      %1356 = vrot.lane.b32.xlu0 %v1339, 8
      %v1357 = vpop.permute.xlu0 %1356
      %1358 = vrot.lane.b32.xlu0 %v1340, 8
      %v1359 = vpop.permute.xlu0 %1358
      %1360 = vrot.lane.b32.xlu0 %v1341, 8
      %v1361 = vpop.permute.xlu0 %1360
      %1362 = vrot.lane.b32.xlu0 %v1342, 8
      %v1363 = vpop.permute.xlu0 %1362
      %vm1364 = vcmask 64512
      %v1365 = vsel %vm1364, %v1351, %v1353
      %v1366 = vsel %vm1364, %v1353, %v1355
      %v1367 = vsel %vm1364, %v1355, %v1357
      %v1368 = vsel %vm1364, %v1357, %v1359
      %v1369 = vsel %vm1364, %v1359, %v1361
      %v1370 = vsel %vm1364, %v1361, %v1363
      %1377 = vst [vmem:[#allocation2 + $0x480] sm:$0xff] %v1365
      %1378 = vst [vmem:[#allocation2 + $0x488] sm:$0xff] %v1366
      %1379 = vst [vmem:[#allocation2 + $0x490] sm:$0xff] %v1367
      %1380 = vst [vmem:[#allocation2 + $0x498] sm:$0xff] %v1368
      %1381 = vst [vmem:[#allocation2 + $0x4a0] sm:$0xff] %v1369
      %1382 = vst [vmem:[#allocation2 + $0x4a8] sm:$0xff] %v1370
      %v1383 = vld [vmem:[%s138] sm:$0xff]
      %v1384 = vld [vmem:[%s138 + $0x8] sm:$0xff]
      %v1385 = vld [vmem:[%s138 + $0x10] sm:$0xff]
      %v1386 = vld [vmem:[%s138 + $0x18] sm:$0xf]
      %v1387 = vunpack.c.l.bf16 %v1383
      %v1388 = vunpack.c.h.bf16 %v1383
      %v1389 = vunpack.c.l.bf16 %v1384
      %v1390 = vunpack.c.h.bf16 %v1384
      %v1391 = vunpack.c.l.bf16 %v1385
      %v1392 = vunpack.c.h.bf16 %v1385
      %v1393 = vunpack.c.l.bf16 %v1386
      %1401 = vrot.lane.b32.xlu0 %v1387, 7
      %v1402 = vpop.permute.xlu0 %1401
      %1403 = vrot.lane.b32.xlu0 %v1388, 7
      %v1404 = vpop.permute.xlu0 %1403
      %1405 = vrot.lane.b32.xlu0 %v1389, 7
      %v1406 = vpop.permute.xlu0 %1405
      %1407 = vrot.lane.b32.xlu0 %v1390, 7
      %v1408 = vpop.permute.xlu0 %1407
      %1409 = vrot.lane.b32.xlu0 %v1391, 7
      %v1410 = vpop.permute.xlu0 %1409
      %1411 = vrot.lane.b32.xlu0 %v1392, 7
      %v1412 = vpop.permute.xlu0 %1411
      %1413 = vrot.lane.b32.xlu0 %v1393, 7
      %v1414 = vpop.permute.xlu0 %1413
      %vm1415 = vcmask 56320
      %v1416 = vsel %vm1415, %v1402, %v1404
      %v1417 = vsel %vm1415, %v1404, %v1406
      %v1418 = vsel %vm1415, %v1406, %v1408
      %v1419 = vsel %vm1415, %v1408, %v1410
      %v1420 = vsel %vm1415, %v1410, %v1412
      %v1421 = vsel %vm1415, %v1412, %v1414
      %1428 = vst [vmem:[#allocation2 + $0x4b0] sm:$0xff] %v1416
      %1429 = vst [vmem:[#allocation2 + $0x4b8] sm:$0xff] %v1417
      %1430 = vst [vmem:[#allocation2 + $0x4c0] sm:$0xff] %v1418
      %1431 = vst [vmem:[#allocation2 + $0x4c8] sm:$0xff] %v1419
      %1432 = vst [vmem:[#allocation2 + $0x4d0] sm:$0xff] %v1420
      %1433 = vst [vmem:[#allocation2 + $0x4d8] sm:$0xff] %v1421
      %v1434 = vld [vmem:[%s138] sm:$0xff]
      %v1435 = vld [vmem:[%s138 + $0x8] sm:$0xff]
      %v1436 = vld [vmem:[%s138 + $0x10] sm:$0xff]
      %v1437 = vld [vmem:[%s138 + $0x18] sm:$0xf]
      %v1438 = vunpack.c.l.bf16 %v1434
      %v1439 = vunpack.c.h.bf16 %v1434
      %v1440 = vunpack.c.l.bf16 %v1435
      %v1441 = vunpack.c.h.bf16 %v1435
      %v1442 = vunpack.c.l.bf16 %v1436
      %v1443 = vunpack.c.h.bf16 %v1436
      %v1444 = vunpack.c.l.bf16 %v1437
      %1452 = vrot.lane.b32.xlu0 %v1438, 6
      %v1453 = vpop.permute.xlu0 %1452
      %1454 = vrot.lane.b32.xlu0 %v1439, 6
      %v1455 = vpop.permute.xlu0 %1454
      %1456 = vrot.lane.b32.xlu0 %v1440, 6
      %v1457 = vpop.permute.xlu0 %1456
      %1458 = vrot.lane.b32.xlu0 %v1441, 6
      %v1459 = vpop.permute.xlu0 %1458
      %1460 = vrot.lane.b32.xlu0 %v1442, 6
      %v1461 = vpop.permute.xlu0 %1460
      %1462 = vrot.lane.b32.xlu0 %v1443, 6
      %v1463 = vpop.permute.xlu0 %1462
      %1464 = vrot.lane.b32.xlu0 %v1444, 6
      %v1465 = vpop.permute.xlu0 %1464
      %vm1466 = vcmask 48128
      %v1467 = vsel %vm1466, %v1453, %v1455
      %v1468 = vsel %vm1466, %v1455, %v1457
      %v1469 = vsel %vm1466, %v1457, %v1459
      %v1470 = vsel %vm1466, %v1459, %v1461
      %v1471 = vsel %vm1466, %v1461, %v1463
      %v1472 = vsel %vm1466, %v1463, %v1465
      %1479 = vst [vmem:[#allocation2 + $0x4e0] sm:$0xff] %v1467
      %1480 = vst [vmem:[#allocation2 + $0x4e8] sm:$0xff] %v1468
      %1481 = vst [vmem:[#allocation2 + $0x4f0] sm:$0xff] %v1469
      %1482 = vst [vmem:[#allocation2 + $0x4f8] sm:$0xff] %v1470
      %1483 = vst [vmem:[#allocation2 + $0x500] sm:$0xff] %v1471
      %1484 = vst [vmem:[#allocation2 + $0x508] sm:$0xff] %v1472
      %v1485 = vld [vmem:[%s138] sm:$0xff]
      %v1486 = vld [vmem:[%s138 + $0x8] sm:$0xff]
      %v1487 = vld [vmem:[%s138 + $0x10] sm:$0xff]
      %v1488 = vld [vmem:[%s138 + $0x18] sm:$0xf]
      %v1489 = vunpack.c.l.bf16 %v1485
      %v1490 = vunpack.c.h.bf16 %v1485
      %v1491 = vunpack.c.l.bf16 %v1486
      %v1492 = vunpack.c.h.bf16 %v1486
      %v1493 = vunpack.c.l.bf16 %v1487
      %v1494 = vunpack.c.h.bf16 %v1487
      %v1495 = vunpack.c.l.bf16 %v1488
      %1503 = vrot.lane.b32.xlu0 %v1489, 5
      %v1504 = vpop.permute.xlu0 %1503
      %1505 = vrot.lane.b32.xlu0 %v1490, 5
      %v1506 = vpop.permute.xlu0 %1505
      %1507 = vrot.lane.b32.xlu0 %v1491, 5
      %v1508 = vpop.permute.xlu0 %1507
      %1509 = vrot.lane.b32.xlu0 %v1492, 5
      %v1510 = vpop.permute.xlu0 %1509
      %1511 = vrot.lane.b32.xlu0 %v1493, 5
      %v1512 = vpop.permute.xlu0 %1511
      %1513 = vrot.lane.b32.xlu0 %v1494, 5
      %v1514 = vpop.permute.xlu0 %1513
      %1515 = vrot.lane.b32.xlu0 %v1495, 5
      %v1516 = vpop.permute.xlu0 %1515
      %vm1517 = vcmask 39936
      %v1518 = vsel %vm1517, %v1504, %v1506
      %v1519 = vsel %vm1517, %v1506, %v1508
      %v1520 = vsel %vm1517, %v1508, %v1510
      %v1521 = vsel %vm1517, %v1510, %v1512
      %v1522 = vsel %vm1517, %v1512, %v1514
      %v1523 = vsel %vm1517, %v1514, %v1516
      %1530 = vst [vmem:[#allocation2 + $0x510] sm:$0xff] %v1518
      %1531 = vst [vmem:[#allocation2 + $0x518] sm:$0xff] %v1519
      %1532 = vst [vmem:[#allocation2 + $0x520] sm:$0xff] %v1520
      %1533 = vst [vmem:[#allocation2 + $0x528] sm:$0xff] %v1521
      %1534 = vst [vmem:[#allocation2 + $0x530] sm:$0xff] %v1522
      %1535 = vst [vmem:[#allocation2 + $0x538] sm:$0xff] %v1523
      %v1536 = vld [vmem:[%s138 + $0x4] sm:$0xff]
      %v1537 = vld [vmem:[%s138 + $0xc] sm:$0xff]
      %v1538 = vld [vmem:[%s138 + $0x14] sm:$0xff]
      %v1539 = vld [vmem:[%s138 + $0x1c] sm:$0xf]
      %v1540 = vunpack.c.l.bf16 %v1536
      %v1541 = vunpack.c.h.bf16 %v1536
      %v1542 = vunpack.c.l.bf16 %v1537
      %v1543 = vunpack.c.h.bf16 %v1537
      %v1544 = vunpack.c.l.bf16 %v1538
      %v1545 = vunpack.c.h.bf16 %v1538
      %v1546 = vunpack.c.l.bf16 %v1539
      %1554 = vrot.lane.b32.xlu0 %v1540, 126
      %v1555 = vpop.permute.xlu0 %1554
      %1556 = vrot.lane.b32.xlu0 %v1541, 126
      %v1557 = vpop.permute.xlu0 %1556
      %1558 = vrot.lane.b32.xlu0 %v1542, 126
      %v1559 = vpop.permute.xlu0 %1558
      %1560 = vrot.lane.b32.xlu0 %v1543, 126
      %v1561 = vpop.permute.xlu0 %1560
      %1562 = vrot.lane.b32.xlu0 %v1544, 126
      %v1563 = vpop.permute.xlu0 %1562
      %1564 = vrot.lane.b32.xlu0 %v1545, 126
      %v1565 = vpop.permute.xlu0 %1564
      %1566 = vrot.lane.b32.xlu0 %v1546, 126
      %v1567 = vpop.permute.xlu0 %1566
      %v1568 = vsel %vm242, %v1555, %v1557
      %v1569 = vsel %vm242, %v1557, %v1559
      %v1570 = vsel %vm242, %v1559, %v1561
      %v1571 = vsel %vm242, %v1561, %v1563
      %v1572 = vsel %vm242, %v1563, %v1565
      %v1573 = vsel %vm242, %v1565, %v1567
      %1580 = vst [vmem:[#allocation2 + $0x540] sm:$0xff] %v1568
      %1581 = vst [vmem:[#allocation2 + $0x548] sm:$0xff] %v1569
      %1582 = vst [vmem:[#allocation2 + $0x550] sm:$0xff] %v1570
      %1583 = vst [vmem:[#allocation2 + $0x558] sm:$0xff] %v1571
      %1584 = vst [vmem:[#allocation2 + $0x560] sm:$0xff] %v1572
      %1585 = vst [vmem:[#allocation2 + $0x568] sm:$0xff] %v1573
      %v1586 = vld [vmem:[%s138 + $0x4] sm:$0xff]
      %v1587 = vld [vmem:[%s138 + $0xc] sm:$0xff]
      %v1588 = vld [vmem:[%s138 + $0x14] sm:$0xff]
      %v1589 = vld [vmem:[%s138 + $0x1c] sm:$0xf]
      %v1590 = vunpack.c.l.bf16 %v1586
      %v1591 = vunpack.c.h.bf16 %v1586
      %v1592 = vunpack.c.l.bf16 %v1587
      %v1593 = vunpack.c.h.bf16 %v1587
      %v1594 = vunpack.c.l.bf16 %v1588
      %v1595 = vunpack.c.h.bf16 %v1588
      %v1596 = vunpack.c.l.bf16 %v1589
      %1604 = vrot.lane.b32.xlu0 %v1590, 125
      %v1605 = vpop.permute.xlu0 %1604
      %1606 = vrot.lane.b32.xlu0 %v1591, 125
      %v1607 = vpop.permute.xlu0 %1606
      %1608 = vrot.lane.b32.xlu0 %v1592, 125
      %v1609 = vpop.permute.xlu0 %1608
      %1610 = vrot.lane.b32.xlu0 %v1593, 125
      %v1611 = vpop.permute.xlu0 %1610
      %1612 = vrot.lane.b32.xlu0 %v1594, 125
      %v1613 = vpop.permute.xlu0 %1612
      %1614 = vrot.lane.b32.xlu0 %v1595, 125
      %v1615 = vpop.permute.xlu0 %1614
      %1616 = vrot.lane.b32.xlu0 %v1596, 125
      %v1617 = vpop.permute.xlu0 %1616
      %v1618 = vsel %vm293, %v1605, %v1607
      %v1619 = vsel %vm293, %v1607, %v1609
      %v1620 = vsel %vm293, %v1609, %v1611
      %v1621 = vsel %vm293, %v1611, %v1613
      %v1622 = vsel %vm293, %v1613, %v1615
      %v1623 = vsel %vm293, %v1615, %v1617
      %1630 = vst [vmem:[#allocation2 + $0x570] sm:$0xff] %v1618
      %1631 = vst [vmem:[#allocation2 + $0x578] sm:$0xff] %v1619
      %1632 = vst [vmem:[#allocation2 + $0x580] sm:$0xff] %v1620
      %1633 = vst [vmem:[#allocation2 + $0x588] sm:$0xff] %v1621
      %1634 = vst [vmem:[#allocation2 + $0x590] sm:$0xff] %v1622
      %1635 = vst [vmem:[#allocation2 + $0x598] sm:$0xff] %v1623
      %v1636 = vld [vmem:[%s138 + $0x4] sm:$0xff]
      %v1637 = vld [vmem:[%s138 + $0xc] sm:$0xff]
      %v1638 = vld [vmem:[%s138 + $0x14] sm:$0xff]
      %v1639 = vld [vmem:[%s138 + $0x1c] sm:$0xf]
      %v1640 = vunpack.c.l.bf16 %v1636
      %v1641 = vunpack.c.h.bf16 %v1636
      %v1642 = vunpack.c.l.bf16 %v1637
      %v1643 = vunpack.c.h.bf16 %v1637
      %v1644 = vunpack.c.l.bf16 %v1638
      %v1645 = vunpack.c.h.bf16 %v1638
      %v1646 = vunpack.c.l.bf16 %v1639
      %1654 = vrot.lane.b32.xlu0 %v1640, 124
      %v1655 = vpop.permute.xlu0 %1654
      %1656 = vrot.lane.b32.xlu0 %v1641, 124
      %v1657 = vpop.permute.xlu0 %1656
      %1658 = vrot.lane.b32.xlu0 %v1642, 124
      %v1659 = vpop.permute.xlu0 %1658
      %1660 = vrot.lane.b32.xlu0 %v1643, 124
      %v1661 = vpop.permute.xlu0 %1660
      %1662 = vrot.lane.b32.xlu0 %v1644, 124
      %v1663 = vpop.permute.xlu0 %1662
      %1664 = vrot.lane.b32.xlu0 %v1645, 124
      %v1665 = vpop.permute.xlu0 %1664
      %1666 = vrot.lane.b32.xlu0 %v1646, 124
      %v1667 = vpop.permute.xlu0 %1666
      %vm1668 = vcmask 1014784
      %v1669 = vsel %vm1668, %v1655, %v1657
      %v1670 = vsel %vm1668, %v1657, %v1659
      %v1671 = vsel %vm1668, %v1659, %v1661
      %v1672 = vsel %vm1668, %v1661, %v1663
      %v1673 = vsel %vm1668, %v1663, %v1665
      %v1674 = vsel %vm1668, %v1665, %v1667
      %1681 = vst [vmem:[#allocation2 + $0x5a0] sm:$0xff] %v1669
      %1682 = vst [vmem:[#allocation2 + $0x5a8] sm:$0xff] %v1670
      %1683 = vst [vmem:[#allocation2 + $0x5b0] sm:$0xff] %v1671
      %1684 = vst [vmem:[#allocation2 + $0x5b8] sm:$0xff] %v1672
      %1685 = vst [vmem:[#allocation2 + $0x5c0] sm:$0xff] %v1673
      %1686 = vst [vmem:[#allocation2 + $0x5c8] sm:$0xff] %v1674
      %v1687 = vld [vmem:[%s138 + $0x4] sm:$0xff]
      %v1688 = vld [vmem:[%s138 + $0xc] sm:$0xff]
      %v1689 = vld [vmem:[%s138 + $0x14] sm:$0xff]
      %v1690 = vld [vmem:[%s138 + $0x1c] sm:$0xf]
      %v1691 = vunpack.c.l.bf16 %v1687
      %v1692 = vunpack.c.h.bf16 %v1687
      %v1693 = vunpack.c.l.bf16 %v1688
      %v1694 = vunpack.c.h.bf16 %v1688
      %v1695 = vunpack.c.l.bf16 %v1689
      %v1696 = vunpack.c.h.bf16 %v1689
      %v1697 = vunpack.c.l.bf16 %v1690
      %1705 = vrot.lane.b32.xlu0 %v1691, 123
      %v1706 = vpop.permute.xlu0 %1705
      %1707 = vrot.lane.b32.xlu0 %v1692, 123
      %v1708 = vpop.permute.xlu0 %1707
      %1709 = vrot.lane.b32.xlu0 %v1693, 123
      %v1710 = vpop.permute.xlu0 %1709
      %1711 = vrot.lane.b32.xlu0 %v1694, 123
      %v1712 = vpop.permute.xlu0 %1711
      %1713 = vrot.lane.b32.xlu0 %v1695, 123
      %v1714 = vpop.permute.xlu0 %1713
      %1715 = vrot.lane.b32.xlu0 %v1696, 123
      %v1716 = vpop.permute.xlu0 %1715
      %1717 = vrot.lane.b32.xlu0 %v1697, 123
      %v1718 = vpop.permute.xlu0 %1717
      %vm1719 = vcmask 1006592
      %v1720 = vsel %vm1719, %v1706, %v1708
      %v1721 = vsel %vm1719, %v1708, %v1710
      %v1722 = vsel %vm1719, %v1710, %v1712
      %v1723 = vsel %vm1719, %v1712, %v1714
      %v1724 = vsel %vm1719, %v1714, %v1716
      %v1725 = vsel %vm1719, %v1716, %v1718
      %1732 = vst [vmem:[#allocation2 + $0x5d0] sm:$0xff] %v1720
      %1733 = vst [vmem:[#allocation2 + $0x5d8] sm:$0xff] %v1721
      %1734 = vst [vmem:[#allocation2 + $0x5e0] sm:$0xff] %v1722
      %1735 = vst [vmem:[#allocation2 + $0x5e8] sm:$0xff] %v1723
      %1736 = vst [vmem:[#allocation2 + $0x5f0] sm:$0xff] %v1724
      %1737 = vst [vmem:[#allocation2 + $0x5f8] sm:$0xff] %v1725
      %v1738 = vld [vmem:[%s138 + $0x4] sm:$0xff]
      %v1739 = vld [vmem:[%s138 + $0xc] sm:$0xff]
      %v1740 = vld [vmem:[%s138 + $0x14] sm:$0xff]
      %v1741 = vld [vmem:[%s138 + $0x1c] sm:$0xf]
      %v1742 = vunpack.c.l.bf16 %v1738
      %v1743 = vunpack.c.h.bf16 %v1738
      %v1744 = vunpack.c.l.bf16 %v1739
      %v1745 = vunpack.c.h.bf16 %v1739
      %v1746 = vunpack.c.l.bf16 %v1740
      %v1747 = vunpack.c.h.bf16 %v1740
      %v1748 = vunpack.c.l.bf16 %v1741
      %1756 = vrot.lane.b32.xlu0 %v1742, 56
      %v1757 = vpop.permute.xlu0 %1756
      %1758 = vrot.lane.b32.xlu0 %v1743, 56
      %v1759 = vpop.permute.xlu0 %1758
      %1760 = vrot.lane.b32.xlu0 %v1744, 56
      %v1761 = vpop.permute.xlu0 %1760
      %1762 = vrot.lane.b32.xlu0 %v1745, 56
      %v1763 = vpop.permute.xlu0 %1762
      %1764 = vrot.lane.b32.xlu0 %v1746, 56
      %v1765 = vpop.permute.xlu0 %1764
      %1766 = vrot.lane.b32.xlu0 %v1747, 56
      %v1767 = vpop.permute.xlu0 %1766
      %1768 = vrot.lane.b32.xlu0 %v1748, 56
      %v1769 = vpop.permute.xlu0 %1768
      %vm1770 = vcmask 457728
      %v1771 = vsel %vm1770, %v1757, %v1759
      %v1772 = vsel %vm1770, %v1759, %v1761
      %v1773 = vsel %vm1770, %v1761, %v1763
      %v1774 = vsel %vm1770, %v1763, %v1765
      %v1775 = vsel %vm1770, %v1765, %v1767
      %v1776 = vsel %vm1770, %v1767, %v1769
      %1783 = vst [vmem:[#allocation2 + $0x600] sm:$0xff] %v1771
      %1784 = vst [vmem:[#allocation2 + $0x608] sm:$0xff] %v1772
      %1785 = vst [vmem:[#allocation2 + $0x610] sm:$0xff] %v1773
      %1786 = vst [vmem:[#allocation2 + $0x618] sm:$0xff] %v1774
      %1787 = vst [vmem:[#allocation2 + $0x620] sm:$0xff] %v1775
      %1788 = vst [vmem:[#allocation2 + $0x628] sm:$0xff] %v1776
      %v1789 = vld [vmem:[%s138 + $0x4] sm:$0xff]
      %v1790 = vld [vmem:[%s138 + $0xc] sm:$0xff]
      %v1791 = vld [vmem:[%s138 + $0x14] sm:$0xff]
      %v1792 = vld [vmem:[%s138 + $0x1c] sm:$0xf]
      %v1793 = vunpack.c.l.bf16 %v1789
      %v1794 = vunpack.c.h.bf16 %v1789
      %v1795 = vunpack.c.l.bf16 %v1790
      %v1796 = vunpack.c.h.bf16 %v1790
      %v1797 = vunpack.c.l.bf16 %v1791
      %v1798 = vunpack.c.h.bf16 %v1791
      %v1799 = vunpack.c.l.bf16 %v1792
      %1807 = vrot.lane.b32.xlu0 %v1793, 55
      %v1808 = vpop.permute.xlu0 %1807
      %1809 = vrot.lane.b32.xlu0 %v1794, 55
      %v1810 = vpop.permute.xlu0 %1809
      %1811 = vrot.lane.b32.xlu0 %v1795, 55
      %v1812 = vpop.permute.xlu0 %1811
      %1813 = vrot.lane.b32.xlu0 %v1796, 55
      %v1814 = vpop.permute.xlu0 %1813
      %1815 = vrot.lane.b32.xlu0 %v1797, 55
      %v1816 = vpop.permute.xlu0 %1815
      %1817 = vrot.lane.b32.xlu0 %v1798, 55
      %v1818 = vpop.permute.xlu0 %1817
      %1819 = vrot.lane.b32.xlu0 %v1799, 55
      %v1820 = vpop.permute.xlu0 %1819
      %vm1821 = vcmask 449536
      %v1822 = vsel %vm1821, %v1808, %v1810
      %v1823 = vsel %vm1821, %v1810, %v1812
      %v1824 = vsel %vm1821, %v1812, %v1814
      %v1825 = vsel %vm1821, %v1814, %v1816
      %v1826 = vsel %vm1821, %v1816, %v1818
      %v1827 = vsel %vm1821, %v1818, %v1820
      %1834 = vst [vmem:[#allocation2 + $0x630] sm:$0xff] %v1822
      %1835 = vst [vmem:[#allocation2 + $0x638] sm:$0xff] %v1823
      %1836 = vst [vmem:[#allocation2 + $0x640] sm:$0xff] %v1824
      %1837 = vst [vmem:[#allocation2 + $0x648] sm:$0xff] %v1825
      %1838 = vst [vmem:[#allocation2 + $0x650] sm:$0xff] %v1826
      %1839 = vst [vmem:[#allocation2 + $0x658] sm:$0xff] %v1827
      %v1840 = vld [vmem:[%s138 + $0x4] sm:$0xff]
      %v1841 = vld [vmem:[%s138 + $0xc] sm:$0xff]
      %v1842 = vld [vmem:[%s138 + $0x14] sm:$0xff]
      %v1843 = vld [vmem:[%s138 + $0x1c] sm:$0xf]
      %v1844 = vunpack.c.l.bf16 %v1840
      %v1845 = vunpack.c.h.bf16 %v1840
      %v1846 = vunpack.c.l.bf16 %v1841
      %v1847 = vunpack.c.h.bf16 %v1841
      %v1848 = vunpack.c.l.bf16 %v1842
      %v1849 = vunpack.c.h.bf16 %v1842
      %v1850 = vunpack.c.l.bf16 %v1843
      %1858 = vrot.lane.b32.xlu0 %v1844, 54
      %v1859 = vpop.permute.xlu0 %1858
      %1860 = vrot.lane.b32.xlu0 %v1845, 54
      %v1861 = vpop.permute.xlu0 %1860
      %1862 = vrot.lane.b32.xlu0 %v1846, 54
      %v1863 = vpop.permute.xlu0 %1862
      %1864 = vrot.lane.b32.xlu0 %v1847, 54
      %v1865 = vpop.permute.xlu0 %1864
      %1866 = vrot.lane.b32.xlu0 %v1848, 54
      %v1867 = vpop.permute.xlu0 %1866
      %1868 = vrot.lane.b32.xlu0 %v1849, 54
      %v1869 = vpop.permute.xlu0 %1868
      %1870 = vrot.lane.b32.xlu0 %v1850, 54
      %v1871 = vpop.permute.xlu0 %1870
      %vm1872 = vcmask 441344
      %v1873 = vsel %vm1872, %v1859, %v1861
      %v1874 = vsel %vm1872, %v1861, %v1863
      %v1875 = vsel %vm1872, %v1863, %v1865
      %v1876 = vsel %vm1872, %v1865, %v1867
      %v1877 = vsel %vm1872, %v1867, %v1869
      %v1878 = vsel %vm1872, %v1869, %v1871
      %1885 = vst [vmem:[#allocation2 + $0x660] sm:$0xff] %v1873
      %1886 = vst [vmem:[#allocation2 + $0x668] sm:$0xff] %v1874
      %1887 = vst [vmem:[#allocation2 + $0x670] sm:$0xff] %v1875
      %1888 = vst [vmem:[#allocation2 + $0x678] sm:$0xff] %v1876
      %1889 = vst [vmem:[#allocation2 + $0x680] sm:$0xff] %v1877
      %1890 = vst [vmem:[#allocation2 + $0x688] sm:$0xff] %v1878
      %v1891 = vld [vmem:[%s138 + $0x4] sm:$0xff]
      %v1892 = vld [vmem:[%s138 + $0xc] sm:$0xff]
      %v1893 = vld [vmem:[%s138 + $0x14] sm:$0xff]
      %v1894 = vld [vmem:[%s138 + $0x1c] sm:$0xf]
      %v1895 = vunpack.c.l.bf16 %v1891
      %v1896 = vunpack.c.h.bf16 %v1891
      %v1897 = vunpack.c.l.bf16 %v1892
      %v1898 = vunpack.c.h.bf16 %v1892
      %v1899 = vunpack.c.l.bf16 %v1893
      %v1900 = vunpack.c.h.bf16 %v1893
      %v1901 = vunpack.c.l.bf16 %v1894
      %1909 = vrot.lane.b32.xlu0 %v1895, 53
      %v1910 = vpop.permute.xlu0 %1909
      %1911 = vrot.lane.b32.xlu0 %v1896, 53
      %v1912 = vpop.permute.xlu0 %1911
      %1913 = vrot.lane.b32.xlu0 %v1897, 53
      %v1914 = vpop.permute.xlu0 %1913
      %1915 = vrot.lane.b32.xlu0 %v1898, 53
      %v1916 = vpop.permute.xlu0 %1915
      %1917 = vrot.lane.b32.xlu0 %v1899, 53
      %v1918 = vpop.permute.xlu0 %1917
      %1919 = vrot.lane.b32.xlu0 %v1900, 53
      %v1920 = vpop.permute.xlu0 %1919
      %1921 = vrot.lane.b32.xlu0 %v1901, 53
      %v1922 = vpop.permute.xlu0 %1921
      %vm1923 = vcmask 433152
      %v1924 = vsel %vm1923, %v1910, %v1912
      %v1925 = vsel %vm1923, %v1912, %v1914
      %v1926 = vsel %vm1923, %v1914, %v1916
      %v1927 = vsel %vm1923, %v1916, %v1918
      %v1928 = vsel %vm1923, %v1918, %v1920
      %v1929 = vsel %vm1923, %v1920, %v1922
      %1936 = vst [vmem:[#allocation2 + $0x690] sm:$0xff] %v1924
      %1937 = vst [vmem:[#allocation2 + $0x698] sm:$0xff] %v1925
      %1938 = vst [vmem:[#allocation2 + $0x6a0] sm:$0xff] %v1926
      %1939 = vst [vmem:[#allocation2 + $0x6a8] sm:$0xff] %v1927
      %1940 = vst [vmem:[#allocation2 + $0x6b0] sm:$0xff] %v1928
      %1941 = vst [vmem:[#allocation2 + $0x6b8] sm:$0xff] %v1929
      %v1942 = vld [vmem:[%s138 + $0x4] sm:$0xff]
      %v1943 = vld [vmem:[%s138 + $0xc] sm:$0xff]
      %v1944 = vld [vmem:[%s138 + $0x14] sm:$0xff]
      %v1945 = vld [vmem:[%s138 + $0x1c] sm:$0xf]
      %v1946 = vunpack.c.l.bf16 %v1942
      %v1947 = vunpack.c.h.bf16 %v1942
      %v1948 = vunpack.c.l.bf16 %v1943
      %v1949 = vunpack.c.h.bf16 %v1943
      %v1950 = vunpack.c.l.bf16 %v1944
      %v1951 = vunpack.c.h.bf16 %v1944
      %v1952 = vunpack.c.l.bf16 %v1945
      %1960 = vrot.lane.b32.xlu0 %v1946, 46
      %v1961 = vpop.permute.xlu0 %1960
      %1962 = vrot.lane.b32.xlu0 %v1947, 46
      %v1963 = vpop.permute.xlu0 %1962
      %1964 = vrot.lane.b32.xlu0 %v1948, 46
      %v1965 = vpop.permute.xlu0 %1964
      %1966 = vrot.lane.b32.xlu0 %v1949, 46
      %v1967 = vpop.permute.xlu0 %1966
      %1968 = vrot.lane.b32.xlu0 %v1950, 46
      %v1969 = vpop.permute.xlu0 %1968
      %1970 = vrot.lane.b32.xlu0 %v1951, 46
      %v1971 = vpop.permute.xlu0 %1970
      %1972 = vrot.lane.b32.xlu0 %v1952, 46
      %v1973 = vpop.permute.xlu0 %1972
      %vm1974 = vcmask 375808
      %v1975 = vsel %vm1974, %v1961, %v1963
      %v1976 = vsel %vm1974, %v1963, %v1965
      %v1977 = vsel %vm1974, %v1965, %v1967
      %v1978 = vsel %vm1974, %v1967, %v1969
      %v1979 = vsel %vm1974, %v1969, %v1971
      %v1980 = vsel %vm1974, %v1971, %v1973
      %1987 = vst [vmem:[#allocation2 + $0x6c0] sm:$0xff] %v1975
      %1988 = vst [vmem:[#allocation2 + $0x6c8] sm:$0xff] %v1976
      %1989 = vst [vmem:[#allocation2 + $0x6d0] sm:$0xff] %v1977
      %1990 = vst [vmem:[#allocation2 + $0x6d8] sm:$0xff] %v1978
      %1991 = vst [vmem:[#allocation2 + $0x6e0] sm:$0xff] %v1979
      %1992 = vst [vmem:[#allocation2 + $0x6e8] sm:$0xff] %v1980
      %v1993 = vld [vmem:[%s138 + $0x4] sm:$0xff]
      %v1994 = vld [vmem:[%s138 + $0xc] sm:$0xff]
      %v1995 = vld [vmem:[%s138 + $0x14] sm:$0xff]
      %v1996 = vld [vmem:[%s138 + $0x1c] sm:$0xf]
      %v1997 = vunpack.c.l.bf16 %v1993
      %v1998 = vunpack.c.h.bf16 %v1993
      %v1999 = vunpack.c.l.bf16 %v1994
      %v2000 = vunpack.c.h.bf16 %v1994
      %v2001 = vunpack.c.l.bf16 %v1995
      %v2002 = vunpack.c.h.bf16 %v1995
      %v2003 = vunpack.c.l.bf16 %v1996
      %2011 = vrot.lane.b32.xlu0 %v1997, 45
      %v2012 = vpop.permute.xlu0 %2011
      %2013 = vrot.lane.b32.xlu0 %v1998, 45
      %v2014 = vpop.permute.xlu0 %2013
      %2015 = vrot.lane.b32.xlu0 %v1999, 45
      %v2016 = vpop.permute.xlu0 %2015
      %2017 = vrot.lane.b32.xlu0 %v2000, 45
      %v2018 = vpop.permute.xlu0 %2017
      %2019 = vrot.lane.b32.xlu0 %v2001, 45
      %v2020 = vpop.permute.xlu0 %2019
      %2021 = vrot.lane.b32.xlu0 %v2002, 45
      %v2022 = vpop.permute.xlu0 %2021
      %2023 = vrot.lane.b32.xlu0 %v2003, 45
      %v2024 = vpop.permute.xlu0 %2023
      %vm2025 = vcmask 367616
      %v2026 = vsel %vm2025, %v2012, %v2014
      %v2027 = vsel %vm2025, %v2014, %v2016
      %v2028 = vsel %vm2025, %v2016, %v2018
      %v2029 = vsel %vm2025, %v2018, %v2020
      %v2030 = vsel %vm2025, %v2020, %v2022
      %v2031 = vsel %vm2025, %v2022, %v2024
      %2038 = vst [vmem:[#allocation2 + $0x6f0] sm:$0xff] %v2026
      %2039 = vst [vmem:[#allocation2 + $0x6f8] sm:$0xff] %v2027
      %2040 = vst [vmem:[#allocation2 + $0x700] sm:$0xff] %v2028
      %2041 = vst [vmem:[#allocation2 + $0x708] sm:$0xff] %v2029
      %2042 = vst [vmem:[#allocation2 + $0x710] sm:$0xff] %v2030
      %2043 = vst [vmem:[#allocation2 + $0x718] sm:$0xff] %v2031
      %v2044 = vld [vmem:[%s138 + $0x4] sm:$0xff]
      %v2045 = vld [vmem:[%s138 + $0xc] sm:$0xff]
      %v2046 = vld [vmem:[%s138 + $0x14] sm:$0xff]
      %v2047 = vld [vmem:[%s138 + $0x1c] sm:$0xf]
      %v2048 = vunpack.c.l.bf16 %v2044
      %v2049 = vunpack.c.h.bf16 %v2044
      %v2050 = vunpack.c.l.bf16 %v2045
      %v2051 = vunpack.c.h.bf16 %v2045
      %v2052 = vunpack.c.l.bf16 %v2046
      %v2053 = vunpack.c.h.bf16 %v2046
      %v2054 = vunpack.c.l.bf16 %v2047
      %2062 = vrot.lane.b32.xlu0 %v2048, 44
      %v2063 = vpop.permute.xlu0 %2062
      %2064 = vrot.lane.b32.xlu0 %v2049, 44
      %v2065 = vpop.permute.xlu0 %2064
      %2066 = vrot.lane.b32.xlu0 %v2050, 44
      %v2067 = vpop.permute.xlu0 %2066
      %2068 = vrot.lane.b32.xlu0 %v2051, 44
      %v2069 = vpop.permute.xlu0 %2068
      %2070 = vrot.lane.b32.xlu0 %v2052, 44
      %v2071 = vpop.permute.xlu0 %2070
      %2072 = vrot.lane.b32.xlu0 %v2053, 44
      %v2073 = vpop.permute.xlu0 %2072
      %2074 = vrot.lane.b32.xlu0 %v2054, 44
      %v2075 = vpop.permute.xlu0 %2074
      %vm2076 = vcmask 359424
      %v2077 = vsel %vm2076, %v2063, %v2065
      %v2078 = vsel %vm2076, %v2065, %v2067
      %v2079 = vsel %vm2076, %v2067, %v2069
      %v2080 = vsel %vm2076, %v2069, %v2071
      %v2081 = vsel %vm2076, %v2071, %v2073
      %v2082 = vsel %vm2076, %v2073, %v2075
      %2089 = vst [vmem:[#allocation2 + $0x720] sm:$0xff] %v2077
      %2090 = vst [vmem:[#allocation2 + $0x728] sm:$0xff] %v2078
      %2091 = vst [vmem:[#allocation2 + $0x730] sm:$0xff] %v2079
      %2092 = vst [vmem:[#allocation2 + $0x738] sm:$0xff] %v2080
      %2093 = vst [vmem:[#allocation2 + $0x740] sm:$0xff] %v2081
      %2094 = vst [vmem:[#allocation2 + $0x748] sm:$0xff] %v2082
      %v2095 = vld [vmem:[%s138 + $0x4] sm:$0xff]
      %v2096 = vld [vmem:[%s138 + $0xc] sm:$0xff]
      %v2097 = vld [vmem:[%s138 + $0x14] sm:$0xff]
      %v2098 = vld [vmem:[%s138 + $0x1c] sm:$0xf]
      %v2099 = vunpack.c.l.bf16 %v2095
      %v2100 = vunpack.c.h.bf16 %v2095
      %v2101 = vunpack.c.l.bf16 %v2096
      %v2102 = vunpack.c.h.bf16 %v2096
      %v2103 = vunpack.c.l.bf16 %v2097
      %v2104 = vunpack.c.h.bf16 %v2097
      %v2105 = vunpack.c.l.bf16 %v2098
      %2113 = vrot.lane.b32.xlu0 %v2099, 43
      %v2114 = vpop.permute.xlu0 %2113
      %2115 = vrot.lane.b32.xlu0 %v2100, 43
      %v2116 = vpop.permute.xlu0 %2115
      %2117 = vrot.lane.b32.xlu0 %v2101, 43
      %v2118 = vpop.permute.xlu0 %2117
      %2119 = vrot.lane.b32.xlu0 %v2102, 43
      %v2120 = vpop.permute.xlu0 %2119
      %2121 = vrot.lane.b32.xlu0 %v2103, 43
      %v2122 = vpop.permute.xlu0 %2121
      %2123 = vrot.lane.b32.xlu0 %v2104, 43
      %v2124 = vpop.permute.xlu0 %2123
      %2125 = vrot.lane.b32.xlu0 %v2105, 43
      %v2126 = vpop.permute.xlu0 %2125
      %vm2127 = vcmask 351232
      %v2128 = vsel %vm2127, %v2114, %v2116
      %v2129 = vsel %vm2127, %v2116, %v2118
      %v2130 = vsel %vm2127, %v2118, %v2120
      %v2131 = vsel %vm2127, %v2120, %v2122
      %v2132 = vsel %vm2127, %v2122, %v2124
      %v2133 = vsel %vm2127, %v2124, %v2126
      %2140 = vst [vmem:[#allocation2 + $0x750] sm:$0xff] %v2128
      %2141 = vst [vmem:[#allocation2 + $0x758] sm:$0xff] %v2129
      %2142 = vst [vmem:[#allocation2 + $0x760] sm:$0xff] %v2130
      %2143 = vst [vmem:[#allocation2 + $0x768] sm:$0xff] %v2131
      %2144 = vst [vmem:[#allocation2 + $0x770] sm:$0xff] %v2132
      %2145 = vst [vmem:[#allocation2 + $0x778] sm:$0xff] %v2133
      %v2146 = vld [vmem:[%s138 + $0x4] sm:$0xff]
      %v2147 = vld [vmem:[%s138 + $0xc] sm:$0xff]
      %v2148 = vld [vmem:[%s138 + $0x14] sm:$0xff]
      %v2149 = vld [vmem:[%s138 + $0x1c] sm:$0xf]
      %v2150 = vunpack.c.l.bf16 %v2146
      %v2151 = vunpack.c.h.bf16 %v2146
      %v2152 = vunpack.c.l.bf16 %v2147
      %v2153 = vunpack.c.h.bf16 %v2147
      %v2154 = vunpack.c.l.bf16 %v2148
      %v2155 = vunpack.c.h.bf16 %v2148
      %v2156 = vunpack.c.l.bf16 %v2149
      %2164 = vrot.lane.b32.xlu0 %v2150, 36
      %v2165 = vpop.permute.xlu0 %2164
      %2166 = vrot.lane.b32.xlu0 %v2151, 36
      %v2167 = vpop.permute.xlu0 %2166
      %2168 = vrot.lane.b32.xlu0 %v2152, 36
      %v2169 = vpop.permute.xlu0 %2168
      %2170 = vrot.lane.b32.xlu0 %v2153, 36
      %v2171 = vpop.permute.xlu0 %2170
      %2172 = vrot.lane.b32.xlu0 %v2154, 36
      %v2173 = vpop.permute.xlu0 %2172
      %2174 = vrot.lane.b32.xlu0 %v2155, 36
      %v2175 = vpop.permute.xlu0 %2174
      %2176 = vrot.lane.b32.xlu0 %v2156, 36
      %v2177 = vpop.permute.xlu0 %2176
      %vm2178 = vcmask 293888
      %v2179 = vsel %vm2178, %v2165, %v2167
      %v2180 = vsel %vm2178, %v2167, %v2169
      %v2181 = vsel %vm2178, %v2169, %v2171
      %v2182 = vsel %vm2178, %v2171, %v2173
      %v2183 = vsel %vm2178, %v2173, %v2175
      %v2184 = vsel %vm2178, %v2175, %v2177
      %2191 = vst [vmem:[#allocation2 + $0x780] sm:$0xff] %v2179
      %2192 = vst [vmem:[#allocation2 + $0x788] sm:$0xff] %v2180
      %2193 = vst [vmem:[#allocation2 + $0x790] sm:$0xff] %v2181
      %2194 = vst [vmem:[#allocation2 + $0x798] sm:$0xff] %v2182
      %2195 = vst [vmem:[#allocation2 + $0x7a0] sm:$0xff] %v2183
      %2196 = vst [vmem:[#allocation2 + $0x7a8] sm:$0xff] %v2184
      %v2197 = vld [vmem:[%s138 + $0x4] sm:$0xff]
      %v2198 = vld [vmem:[%s138 + $0xc] sm:$0xff]
      %v2199 = vld [vmem:[%s138 + $0x14] sm:$0xff]
      %v2200 = vld [vmem:[%s138 + $0x1c] sm:$0xf]
      %v2201 = vunpack.c.l.bf16 %v2197
      %v2202 = vunpack.c.h.bf16 %v2197
      %v2203 = vunpack.c.l.bf16 %v2198
      %v2204 = vunpack.c.h.bf16 %v2198
      %v2205 = vunpack.c.l.bf16 %v2199
      %v2206 = vunpack.c.h.bf16 %v2199
      %v2207 = vunpack.c.l.bf16 %v2200
      %2215 = vrot.lane.b32.xlu0 %v2201, 35
      %v2216 = vpop.permute.xlu0 %2215
      %2217 = vrot.lane.b32.xlu0 %v2202, 35
      %v2218 = vpop.permute.xlu0 %2217
      %2219 = vrot.lane.b32.xlu0 %v2203, 35
      %v2220 = vpop.permute.xlu0 %2219
      %2221 = vrot.lane.b32.xlu0 %v2204, 35
      %v2222 = vpop.permute.xlu0 %2221
      %2223 = vrot.lane.b32.xlu0 %v2205, 35
      %v2224 = vpop.permute.xlu0 %2223
      %2225 = vrot.lane.b32.xlu0 %v2206, 35
      %v2226 = vpop.permute.xlu0 %2225
      %2227 = vrot.lane.b32.xlu0 %v2207, 35
      %v2228 = vpop.permute.xlu0 %2227
      %vm2229 = vcmask 285696
      %v2230 = vsel %vm2229, %v2216, %v2218
      %v2231 = vsel %vm2229, %v2218, %v2220
      %v2232 = vsel %vm2229, %v2220, %v2222
      %v2233 = vsel %vm2229, %v2222, %v2224
      %v2234 = vsel %vm2229, %v2224, %v2226
      %v2235 = vsel %vm2229, %v2226, %v2228
      %2242 = vst [vmem:[#allocation2 + $0x7b0] sm:$0xff] %v2230
      %2243 = vst [vmem:[#allocation2 + $0x7b8] sm:$0xff] %v2231
      %2244 = vst [vmem:[#allocation2 + $0x7c0] sm:$0xff] %v2232
      %2245 = vst [vmem:[#allocation2 + $0x7c8] sm:$0xff] %v2233
      %2246 = vst [vmem:[#allocation2 + $0x7d0] sm:$0xff] %v2234
      %2247 = vst [vmem:[#allocation2 + $0x7d8] sm:$0xff] %v2235
      %v2248 = vld [vmem:[%s138 + $0x4] sm:$0xff]
      %v2249 = vld [vmem:[%s138 + $0xc] sm:$0xff]
      %v2250 = vld [vmem:[%s138 + $0x14] sm:$0xff]
      %v2251 = vld [vmem:[%s138 + $0x1c] sm:$0xf]
      %v2252 = vunpack.c.l.bf16 %v2248
      %v2253 = vunpack.c.h.bf16 %v2248
      %v2254 = vunpack.c.l.bf16 %v2249
      %v2255 = vunpack.c.h.bf16 %v2249
      %v2256 = vunpack.c.l.bf16 %v2250
      %v2257 = vunpack.c.h.bf16 %v2250
      %v2258 = vunpack.c.l.bf16 %v2251
      %2266 = vrot.lane.b32.xlu0 %v2252, 34
      %v2267 = vpop.permute.xlu0 %2266
      %2268 = vrot.lane.b32.xlu0 %v2253, 34
      %v2269 = vpop.permute.xlu0 %2268
      %2270 = vrot.lane.b32.xlu0 %v2254, 34
      %v2271 = vpop.permute.xlu0 %2270
      %2272 = vrot.lane.b32.xlu0 %v2255, 34
      %v2273 = vpop.permute.xlu0 %2272
      %2274 = vrot.lane.b32.xlu0 %v2256, 34
      %v2275 = vpop.permute.xlu0 %2274
      %2276 = vrot.lane.b32.xlu0 %v2257, 34
      %v2277 = vpop.permute.xlu0 %2276
      %2278 = vrot.lane.b32.xlu0 %v2258, 34
      %v2279 = vpop.permute.xlu0 %2278
      %vm2280 = vcmask 277504
      %v2281 = vsel %vm2280, %v2267, %v2269
      %v2282 = vsel %vm2280, %v2269, %v2271
      %v2283 = vsel %vm2280, %v2271, %v2273
      %v2284 = vsel %vm2280, %v2273, %v2275
      %v2285 = vsel %vm2280, %v2275, %v2277
      %v2286 = vsel %vm2280, %v2277, %v2279
      %2293 = vst [vmem:[#allocation2 + $0x7e0] sm:$0xff] %v2281
      %2294 = vst [vmem:[#allocation2 + $0x7e8] sm:$0xff] %v2282
      %2295 = vst [vmem:[#allocation2 + $0x7f0] sm:$0xff] %v2283
      %2296 = vst [vmem:[#allocation2 + $0x7f8] sm:$0xff] %v2284
      %2297 = vst [vmem:[#allocation2 + $0x800] sm:$0xff] %v2285
      %2298 = vst [vmem:[#allocation2 + $0x808] sm:$0xff] %v2286
      %v2299 = vld [vmem:[%s138 + $0x4] sm:$0xff]
      %v2300 = vld [vmem:[%s138 + $0xc] sm:$0xff]
      %v2301 = vld [vmem:[%s138 + $0x14] sm:$0xff]
      %v2302 = vld [vmem:[%s138 + $0x1c] sm:$0xf]
      %v2303 = vunpack.c.l.bf16 %v2299
      %v2304 = vunpack.c.h.bf16 %v2299
      %v2305 = vunpack.c.l.bf16 %v2300
      %v2306 = vunpack.c.h.bf16 %v2300
      %v2307 = vunpack.c.l.bf16 %v2301
      %v2308 = vunpack.c.h.bf16 %v2301
      %v2309 = vunpack.c.l.bf16 %v2302
      %2317 = vrot.lane.b32.xlu0 %v2303, 33
      %v2318 = vpop.permute.xlu0 %2317
      %2319 = vrot.lane.b32.xlu0 %v2304, 33
      %v2320 = vpop.permute.xlu0 %2319
      %2321 = vrot.lane.b32.xlu0 %v2305, 33
      %v2322 = vpop.permute.xlu0 %2321
      %2323 = vrot.lane.b32.xlu0 %v2306, 33
      %v2324 = vpop.permute.xlu0 %2323
      %2325 = vrot.lane.b32.xlu0 %v2307, 33
      %v2326 = vpop.permute.xlu0 %2325
      %2327 = vrot.lane.b32.xlu0 %v2308, 33
      %v2328 = vpop.permute.xlu0 %2327
      %2329 = vrot.lane.b32.xlu0 %v2309, 33
      %v2330 = vpop.permute.xlu0 %2329
      %vm2331 = vcmask 269312
      %v2332 = vsel %vm2331, %v2318, %v2320
      %v2333 = vsel %vm2331, %v2320, %v2322
      %v2334 = vsel %vm2331, %v2322, %v2324
      %v2335 = vsel %vm2331, %v2324, %v2326
      %v2336 = vsel %vm2331, %v2326, %v2328
      %v2337 = vsel %vm2331, %v2328, %v2330
      %2344 = vst [vmem:[#allocation2 + $0x810] sm:$0xff] %v2332
      %2345 = vst [vmem:[#allocation2 + $0x818] sm:$0xff] %v2333
      %2346 = vst [vmem:[#allocation2 + $0x820] sm:$0xff] %v2334
      %2347 = vst [vmem:[#allocation2 + $0x828] sm:$0xff] %v2335
      %2348 = vst [vmem:[#allocation2 + $0x830] sm:$0xff] %v2336
      %2349 = vst [vmem:[#allocation2 + $0x838] sm:$0xff] %v2337
      %v2350 = vld [vmem:[%s138 + $0x4] sm:$0xff]
      %v2351 = vld [vmem:[%s138 + $0xc] sm:$0xff]
      %v2352 = vld [vmem:[%s138 + $0x14] sm:$0xff]
      %v2353 = vld [vmem:[%s138 + $0x1c] sm:$0xf]
      %v2354 = vunpack.c.l.bf16 %v2350
      %v2355 = vunpack.c.h.bf16 %v2350
      %v2356 = vunpack.c.l.bf16 %v2351
      %v2357 = vunpack.c.h.bf16 %v2351
      %v2358 = vunpack.c.l.bf16 %v2352
      %v2359 = vunpack.c.h.bf16 %v2352
      %v2360 = vunpack.c.l.bf16 %v2353
      %2368 = vrot.lane.b32.xlu0 %v2354, 26
      %v2369 = vpop.permute.xlu0 %2368
      %2370 = vrot.lane.b32.xlu0 %v2355, 26
      %v2371 = vpop.permute.xlu0 %2370
      %2372 = vrot.lane.b32.xlu0 %v2356, 26
      %v2373 = vpop.permute.xlu0 %2372
      %2374 = vrot.lane.b32.xlu0 %v2357, 26
      %v2375 = vpop.permute.xlu0 %2374
      %2376 = vrot.lane.b32.xlu0 %v2358, 26
      %v2377 = vpop.permute.xlu0 %2376
      %2378 = vrot.lane.b32.xlu0 %v2359, 26
      %v2379 = vpop.permute.xlu0 %2378
      %2380 = vrot.lane.b32.xlu0 %v2360, 26
      %v2381 = vpop.permute.xlu0 %2380
      %v2382 = vsel %vm1058, %v2369, %v2371
      %v2383 = vsel %vm1058, %v2371, %v2373
      %v2384 = vsel %vm1058, %v2373, %v2375
      %v2385 = vsel %vm1058, %v2375, %v2377
      %v2386 = vsel %vm1058, %v2377, %v2379
      %v2387 = vsel %vm1058, %v2379, %v2381
      %2394 = vst [vmem:[#allocation2 + $0x840] sm:$0xff] %v2382
      %2395 = vst [vmem:[#allocation2 + $0x848] sm:$0xff] %v2383
      %2396 = vst [vmem:[#allocation2 + $0x850] sm:$0xff] %v2384
      %2397 = vst [vmem:[#allocation2 + $0x858] sm:$0xff] %v2385
      %2398 = vst [vmem:[#allocation2 + $0x860] sm:$0xff] %v2386
      %2399 = vst [vmem:[#allocation2 + $0x868] sm:$0xff] %v2387
      %v2400 = vld [vmem:[%s138 + $0x4] sm:$0xff]
      %v2401 = vld [vmem:[%s138 + $0xc] sm:$0xff]
      %v2402 = vld [vmem:[%s138 + $0x14] sm:$0xff]
      %v2403 = vld [vmem:[%s138 + $0x1c] sm:$0xf]
      %v2404 = vunpack.c.l.bf16 %v2400
      %v2405 = vunpack.c.h.bf16 %v2400
      %v2406 = vunpack.c.l.bf16 %v2401
      %v2407 = vunpack.c.h.bf16 %v2401
      %v2408 = vunpack.c.l.bf16 %v2402
      %v2409 = vunpack.c.h.bf16 %v2402
      %v2410 = vunpack.c.l.bf16 %v2403
      %2418 = vrot.lane.b32.xlu0 %v2404, 25
      %v2419 = vpop.permute.xlu0 %2418
      %2420 = vrot.lane.b32.xlu0 %v2405, 25
      %v2421 = vpop.permute.xlu0 %2420
      %2422 = vrot.lane.b32.xlu0 %v2406, 25
      %v2423 = vpop.permute.xlu0 %2422
      %2424 = vrot.lane.b32.xlu0 %v2407, 25
      %v2425 = vpop.permute.xlu0 %2424
      %2426 = vrot.lane.b32.xlu0 %v2408, 25
      %v2427 = vpop.permute.xlu0 %2426
      %2428 = vrot.lane.b32.xlu0 %v2409, 25
      %v2429 = vpop.permute.xlu0 %2428
      %2430 = vrot.lane.b32.xlu0 %v2410, 25
      %v2431 = vpop.permute.xlu0 %2430
      %v2432 = vsel %vm1109, %v2419, %v2421
      %v2433 = vsel %vm1109, %v2421, %v2423
      %v2434 = vsel %vm1109, %v2423, %v2425
      %v2435 = vsel %vm1109, %v2425, %v2427
      %v2436 = vsel %vm1109, %v2427, %v2429
      %v2437 = vsel %vm1109, %v2429, %v2431
      %2444 = vst [vmem:[#allocation2 + $0x870] sm:$0xff] %v2432
      %2445 = vst [vmem:[#allocation2 + $0x878] sm:$0xff] %v2433
      %2446 = vst [vmem:[#allocation2 + $0x880] sm:$0xff] %v2434
      %2447 = vst [vmem:[#allocation2 + $0x888] sm:$0xff] %v2435
      %2448 = vst [vmem:[#allocation2 + $0x890] sm:$0xff] %v2436
      %2449 = vst [vmem:[#allocation2 + $0x898] sm:$0xff] %v2437
      %v2450 = vld [vmem:[%s138 + $0x4] sm:$0xff]
      %v2451 = vld [vmem:[%s138 + $0xc] sm:$0xff]
      %v2452 = vld [vmem:[%s138 + $0x14] sm:$0xff]
      %v2453 = vld [vmem:[%s138 + $0x1c] sm:$0xf]
      %v2454 = vunpack.c.l.bf16 %v2450
      %v2455 = vunpack.c.h.bf16 %v2450
      %v2456 = vunpack.c.l.bf16 %v2451
      %v2457 = vunpack.c.h.bf16 %v2451
      %v2458 = vunpack.c.l.bf16 %v2452
      %v2459 = vunpack.c.h.bf16 %v2452
      %v2460 = vunpack.c.l.bf16 %v2453
      %2468 = vrot.lane.b32.xlu0 %v2454, 24
      %v2469 = vpop.permute.xlu0 %2468
      %2470 = vrot.lane.b32.xlu0 %v2455, 24
      %v2471 = vpop.permute.xlu0 %2470
      %2472 = vrot.lane.b32.xlu0 %v2456, 24
      %v2473 = vpop.permute.xlu0 %2472
      %2474 = vrot.lane.b32.xlu0 %v2457, 24
      %v2475 = vpop.permute.xlu0 %2474
      %2476 = vrot.lane.b32.xlu0 %v2458, 24
      %v2477 = vpop.permute.xlu0 %2476
      %2478 = vrot.lane.b32.xlu0 %v2459, 24
      %v2479 = vpop.permute.xlu0 %2478
      %2480 = vrot.lane.b32.xlu0 %v2460, 24
      %v2481 = vpop.permute.xlu0 %2480
      %vm2482 = vcmask 195584
      %v2483 = vsel %vm2482, %v2469, %v2471
      %v2484 = vsel %vm2482, %v2471, %v2473
      %v2485 = vsel %vm2482, %v2473, %v2475
      %v2486 = vsel %vm2482, %v2475, %v2477
      %v2487 = vsel %vm2482, %v2477, %v2479
      %v2488 = vsel %vm2482, %v2479, %v2481
      %2495 = vst [vmem:[#allocation2 + $0x8a0] sm:$0xff] %v2483
      %2496 = vst [vmem:[#allocation2 + $0x8a8] sm:$0xff] %v2484
      %2497 = vst [vmem:[#allocation2 + $0x8b0] sm:$0xff] %v2485
      %2498 = vst [vmem:[#allocation2 + $0x8b8] sm:$0xff] %v2486
      %2499 = vst [vmem:[#allocation2 + $0x8c0] sm:$0xff] %v2487
      %2500 = vst [vmem:[#allocation2 + $0x8c8] sm:$0xff] %v2488
      %v2501 = vld [vmem:[%s138 + $0x4] sm:$0xff]
      %v2502 = vld [vmem:[%s138 + $0xc] sm:$0xff]
      %v2503 = vld [vmem:[%s138 + $0x14] sm:$0xff]
      %v2504 = vld [vmem:[%s138 + $0x1c] sm:$0xf]
      %v2505 = vunpack.c.l.bf16 %v2501
      %v2506 = vunpack.c.h.bf16 %v2501
      %v2507 = vunpack.c.l.bf16 %v2502
      %v2508 = vunpack.c.h.bf16 %v2502
      %v2509 = vunpack.c.l.bf16 %v2503
      %v2510 = vunpack.c.h.bf16 %v2503
      %v2511 = vunpack.c.l.bf16 %v2504
      %2519 = vrot.lane.b32.xlu0 %v2505, 23
      %v2520 = vpop.permute.xlu0 %2519
      %2521 = vrot.lane.b32.xlu0 %v2506, 23
      %v2522 = vpop.permute.xlu0 %2521
      %2523 = vrot.lane.b32.xlu0 %v2507, 23
      %v2524 = vpop.permute.xlu0 %2523
      %2525 = vrot.lane.b32.xlu0 %v2508, 23
      %v2526 = vpop.permute.xlu0 %2525
      %2527 = vrot.lane.b32.xlu0 %v2509, 23
      %v2528 = vpop.permute.xlu0 %2527
      %2529 = vrot.lane.b32.xlu0 %v2510, 23
      %v2530 = vpop.permute.xlu0 %2529
      %2531 = vrot.lane.b32.xlu0 %v2511, 23
      %v2532 = vpop.permute.xlu0 %2531
      %vm2533 = vcmask 187392
      %v2534 = vsel %vm2533, %v2520, %v2522
      %v2535 = vsel %vm2533, %v2522, %v2524
      %v2536 = vsel %vm2533, %v2524, %v2526
      %v2537 = vsel %vm2533, %v2526, %v2528
      %v2538 = vsel %vm2533, %v2528, %v2530
      %v2539 = vsel %vm2533, %v2530, %v2532
      %2546 = vst [vmem:[#allocation2 + $0x8d0] sm:$0xff] %v2534
      %2547 = vst [vmem:[#allocation2 + $0x8d8] sm:$0xff] %v2535
      %2548 = vst [vmem:[#allocation2 + $0x8e0] sm:$0xff] %v2536
      %2549 = vst [vmem:[#allocation2 + $0x8e8] sm:$0xff] %v2537
      %2550 = vst [vmem:[#allocation2 + $0x8f0] sm:$0xff] %v2538
      %2551 = vst [vmem:[#allocation2 + $0x8f8] sm:$0xff] %v2539
      %v2552 = vld [vmem:[%s138 + $0x8] sm:$0xff]
      %v2553 = vld [vmem:[%s138 + $0x10] sm:$0xff]
      %v2554 = vld [vmem:[%s138 + $0x18] sm:$0xff]
      %v2555 = vld [vmem:[%s138 + $0x20] sm:$0xf]
      %v2556 = vunpack.c.l.bf16 %v2552
      %v2557 = vunpack.c.h.bf16 %v2552
      %v2558 = vunpack.c.l.bf16 %v2553
      %v2559 = vunpack.c.h.bf16 %v2553
      %v2560 = vunpack.c.l.bf16 %v2554
      %v2561 = vunpack.c.h.bf16 %v2554
      %v2562 = vunpack.c.l.bf16 %v2555
      %2570 = vrot.lane.b32.xlu0 %v2556, 84
      %v2571 = vpop.permute.xlu0 %2570
      %2572 = vrot.lane.b32.xlu0 %v2557, 84
      %v2573 = vpop.permute.xlu0 %2572
      %2574 = vrot.lane.b32.xlu0 %v2558, 84
      %v2575 = vpop.permute.xlu0 %2574
      %2576 = vrot.lane.b32.xlu0 %v2559, 84
      %v2577 = vpop.permute.xlu0 %2576
      %2578 = vrot.lane.b32.xlu0 %v2560, 84
      %v2579 = vpop.permute.xlu0 %2578
      %2580 = vrot.lane.b32.xlu0 %v2561, 84
      %v2581 = vpop.permute.xlu0 %2580
      %2582 = vrot.lane.b32.xlu0 %v2562, 84
      %v2583 = vpop.permute.xlu0 %2582
      %vm2584 = vcmask 687104
      %v2585 = vsel %vm2584, %v2571, %v2573
      %v2586 = vsel %vm2584, %v2573, %v2575
      %v2587 = vsel %vm2584, %v2575, %v2577
      %v2588 = vsel %vm2584, %v2577, %v2579
      %v2589 = vsel %vm2584, %v2579, %v2581
      %v2590 = vsel %vm2584, %v2581, %v2583
      %2597 = vst [vmem:[#allocation2 + $0x900] sm:$0xff] %v2585
      %2598 = vst [vmem:[#allocation2 + $0x908] sm:$0xff] %v2586
      %2599 = vst [vmem:[#allocation2 + $0x910] sm:$0xff] %v2587
      %2600 = vst [vmem:[#allocation2 + $0x918] sm:$0xff] %v2588
      %2601 = vst [vmem:[#allocation2 + $0x920] sm:$0xff] %v2589
      %2602 = vst [vmem:[#allocation2 + $0x928] sm:$0xff] %v2590
      %v2603 = vld [vmem:[%s138 + $0x8] sm:$0xff]
      %v2604 = vld [vmem:[%s138 + $0x10] sm:$0xff]
      %v2605 = vld [vmem:[%s138 + $0x18] sm:$0xff]
      %v2606 = vld [vmem:[%s138 + $0x20] sm:$0xf]
      %v2607 = vunpack.c.l.bf16 %v2603
      %v2608 = vunpack.c.h.bf16 %v2603
      %v2609 = vunpack.c.l.bf16 %v2604
      %v2610 = vunpack.c.h.bf16 %v2604
      %v2611 = vunpack.c.l.bf16 %v2605
      %v2612 = vunpack.c.h.bf16 %v2605
      %v2613 = vunpack.c.l.bf16 %v2606
      %2621 = vrot.lane.b32.xlu0 %v2607, 83
      %v2622 = vpop.permute.xlu0 %2621
      %2623 = vrot.lane.b32.xlu0 %v2608, 83
      %v2624 = vpop.permute.xlu0 %2623
      %2625 = vrot.lane.b32.xlu0 %v2609, 83
      %v2626 = vpop.permute.xlu0 %2625
      %2627 = vrot.lane.b32.xlu0 %v2610, 83
      %v2628 = vpop.permute.xlu0 %2627
      %2629 = vrot.lane.b32.xlu0 %v2611, 83
      %v2630 = vpop.permute.xlu0 %2629
      %2631 = vrot.lane.b32.xlu0 %v2612, 83
      %v2632 = vpop.permute.xlu0 %2631
      %2633 = vrot.lane.b32.xlu0 %v2613, 83
      %v2634 = vpop.permute.xlu0 %2633
      %vm2635 = vcmask 678912
      %v2636 = vsel %vm2635, %v2622, %v2624
      %v2637 = vsel %vm2635, %v2624, %v2626
      %v2638 = vsel %vm2635, %v2626, %v2628
      %v2639 = vsel %vm2635, %v2628, %v2630
      %v2640 = vsel %vm2635, %v2630, %v2632
      %v2641 = vsel %vm2635, %v2632, %v2634
      %2648 = vst [vmem:[#allocation2 + $0x930] sm:$0xff] %v2636
      %2649 = vst [vmem:[#allocation2 + $0x938] sm:$0xff] %v2637
      %2650 = vst [vmem:[#allocation2 + $0x940] sm:$0xff] %v2638
      %2651 = vst [vmem:[#allocation2 + $0x948] sm:$0xff] %v2639
      %2652 = vst [vmem:[#allocation2 + $0x950] sm:$0xff] %v2640
      %2653 = vst [vmem:[#allocation2 + $0x958] sm:$0xff] %v2641
      %v2654 = vld [vmem:[%s138 + $0x8] sm:$0xff]
      %v2655 = vld [vmem:[%s138 + $0x10] sm:$0xff]
      %v2656 = vld [vmem:[%s138 + $0x18] sm:$0xff]
      %v2657 = vld [vmem:[%s138 + $0x20] sm:$0xf]
      %v2658 = vunpack.c.l.bf16 %v2654
      %v2659 = vunpack.c.h.bf16 %v2654
      %v2660 = vunpack.c.l.bf16 %v2655
      %v2661 = vunpack.c.h.bf16 %v2655
      %v2662 = vunpack.c.l.bf16 %v2656
      %v2663 = vunpack.c.h.bf16 %v2656
      %v2664 = vunpack.c.l.bf16 %v2657
      %2672 = vrot.lane.b32.xlu0 %v2658, 82
      %v2673 = vpop.permute.xlu0 %2672
      %2674 = vrot.lane.b32.xlu0 %v2659, 82
      %v2675 = vpop.permute.xlu0 %2674
      %2676 = vrot.lane.b32.xlu0 %v2660, 82
      %v2677 = vpop.permute.xlu0 %2676
      %2678 = vrot.lane.b32.xlu0 %v2661, 82
      %v2679 = vpop.permute.xlu0 %2678
      %2680 = vrot.lane.b32.xlu0 %v2662, 82
      %v2681 = vpop.permute.xlu0 %2680
      %2682 = vrot.lane.b32.xlu0 %v2663, 82
      %v2683 = vpop.permute.xlu0 %2682
      %2684 = vrot.lane.b32.xlu0 %v2664, 82
      %v2685 = vpop.permute.xlu0 %2684
      %vm2686 = vcmask 670720
      %v2687 = vsel %vm2686, %v2673, %v2675
      %v2688 = vsel %vm2686, %v2675, %v2677
      %v2689 = vsel %vm2686, %v2677, %v2679
      %v2690 = vsel %vm2686, %v2679, %v2681
      %v2691 = vsel %vm2686, %v2681, %v2683
      %v2692 = vsel %vm2686, %v2683, %v2685
      %2699 = vst [vmem:[#allocation2 + $0x960] sm:$0xff] %v2687
      %2700 = vst [vmem:[#allocation2 + $0x968] sm:$0xff] %v2688
      %2701 = vst [vmem:[#allocation2 + $0x970] sm:$0xff] %v2689
      %2702 = vst [vmem:[#allocation2 + $0x978] sm:$0xff] %v2690
      %2703 = vst [vmem:[#allocation2 + $0x980] sm:$0xff] %v2691
      %2704 = vst [vmem:[#allocation2 + $0x988] sm:$0xff] %v2692
      %v2705 = vld [vmem:[%s138 + $0x8] sm:$0xff]
      %v2706 = vld [vmem:[%s138 + $0x10] sm:$0xff]
      %v2707 = vld [vmem:[%s138 + $0x18] sm:$0xff]
      %v2708 = vld [vmem:[%s138 + $0x20] sm:$0xf]
      %v2709 = vunpack.c.l.bf16 %v2705
      %v2710 = vunpack.c.h.bf16 %v2705
      %v2711 = vunpack.c.l.bf16 %v2706
      %v2712 = vunpack.c.h.bf16 %v2706
      %v2713 = vunpack.c.l.bf16 %v2707
      %v2714 = vunpack.c.h.bf16 %v2707
      %v2715 = vunpack.c.l.bf16 %v2708
      %2723 = vrot.lane.b32.xlu0 %v2709, 81
      %v2724 = vpop.permute.xlu0 %2723
      %2725 = vrot.lane.b32.xlu0 %v2710, 81
      %v2726 = vpop.permute.xlu0 %2725
      %2727 = vrot.lane.b32.xlu0 %v2711, 81
      %v2728 = vpop.permute.xlu0 %2727
      %2729 = vrot.lane.b32.xlu0 %v2712, 81
      %v2730 = vpop.permute.xlu0 %2729
      %2731 = vrot.lane.b32.xlu0 %v2713, 81
      %v2732 = vpop.permute.xlu0 %2731
      %2733 = vrot.lane.b32.xlu0 %v2714, 81
      %v2734 = vpop.permute.xlu0 %2733
      %2735 = vrot.lane.b32.xlu0 %v2715, 81
      %v2736 = vpop.permute.xlu0 %2735
      %vm2737 = vcmask 662528
      %v2738 = vsel %vm2737, %v2724, %v2726
      %v2739 = vsel %vm2737, %v2726, %v2728
      %v2740 = vsel %vm2737, %v2728, %v2730
      %v2741 = vsel %vm2737, %v2730, %v2732
      %v2742 = vsel %vm2737, %v2732, %v2734
      %v2743 = vsel %vm2737, %v2734, %v2736
      %2750 = vst [vmem:[#allocation2 + $0x990] sm:$0xff] %v2738
      %2751 = vst [vmem:[#allocation2 + $0x998] sm:$0xff] %v2739
      %2752 = vst [vmem:[#allocation2 + $0x9a0] sm:$0xff] %v2740
      %2753 = vst [vmem:[#allocation2 + $0x9a8] sm:$0xff] %v2741
      %2754 = vst [vmem:[#allocation2 + $0x9b0] sm:$0xff] %v2742
      %2755 = vst [vmem:[#allocation2 + $0x9b8] sm:$0xff] %v2743
      %v2756 = vld [vmem:[%s138 + $0x8] sm:$0xff]
      %v2757 = vld [vmem:[%s138 + $0x10] sm:$0xff]
      %v2758 = vld [vmem:[%s138 + $0x18] sm:$0xff]
      %v2759 = vld [vmem:[%s138 + $0x20] sm:$0xf]
      %v2760 = vunpack.c.l.bf16 %v2756
      %v2761 = vunpack.c.h.bf16 %v2756
      %v2762 = vunpack.c.l.bf16 %v2757
      %v2763 = vunpack.c.h.bf16 %v2757
      %v2764 = vunpack.c.l.bf16 %v2758
      %v2765 = vunpack.c.h.bf16 %v2758
      %v2766 = vunpack.c.l.bf16 %v2759
      %2774 = vrot.lane.b32.xlu0 %v2760, 74
      %v2775 = vpop.permute.xlu0 %2774
      %2776 = vrot.lane.b32.xlu0 %v2761, 74
      %v2777 = vpop.permute.xlu0 %2776
      %2778 = vrot.lane.b32.xlu0 %v2762, 74
      %v2779 = vpop.permute.xlu0 %2778
      %2780 = vrot.lane.b32.xlu0 %v2763, 74
      %v2781 = vpop.permute.xlu0 %2780
      %2782 = vrot.lane.b32.xlu0 %v2764, 74
      %v2783 = vpop.permute.xlu0 %2782
      %2784 = vrot.lane.b32.xlu0 %v2765, 74
      %v2785 = vpop.permute.xlu0 %2784
      %2786 = vrot.lane.b32.xlu0 %v2766, 74
      %v2787 = vpop.permute.xlu0 %2786
      %vm2788 = vcmask 605184
      %v2789 = vsel %vm2788, %v2775, %v2777
      %v2790 = vsel %vm2788, %v2777, %v2779
      %v2791 = vsel %vm2788, %v2779, %v2781
      %v2792 = vsel %vm2788, %v2781, %v2783
      %v2793 = vsel %vm2788, %v2783, %v2785
      %v2794 = vsel %vm2788, %v2785, %v2787
      %2801 = vst [vmem:[#allocation2 + $0x9c0] sm:$0xff] %v2789
      %2802 = vst [vmem:[#allocation2 + $0x9c8] sm:$0xff] %v2790
      %2803 = vst [vmem:[#allocation2 + $0x9d0] sm:$0xff] %v2791
      %2804 = vst [vmem:[#allocation2 + $0x9d8] sm:$0xff] %v2792
      %2805 = vst [vmem:[#allocation2 + $0x9e0] sm:$0xff] %v2793
      %2806 = vst [vmem:[#allocation2 + $0x9e8] sm:$0xff] %v2794
      %v2807 = vld [vmem:[%s138 + $0x8] sm:$0xff]
      %v2808 = vld [vmem:[%s138 + $0x10] sm:$0xff]
      %v2809 = vld [vmem:[%s138 + $0x18] sm:$0xff]
      %v2810 = vld [vmem:[%s138 + $0x20] sm:$0xf]
      %v2811 = vunpack.c.l.bf16 %v2807
      %v2812 = vunpack.c.h.bf16 %v2807
      %v2813 = vunpack.c.l.bf16 %v2808
      %v2814 = vunpack.c.h.bf16 %v2808
      %v2815 = vunpack.c.l.bf16 %v2809
      %v2816 = vunpack.c.h.bf16 %v2809
      %v2817 = vunpack.c.l.bf16 %v2810
      %2825 = vrot.lane.b32.xlu0 %v2811, 73
      %v2826 = vpop.permute.xlu0 %2825
      %2827 = vrot.lane.b32.xlu0 %v2812, 73
      %v2828 = vpop.permute.xlu0 %2827
      %2829 = vrot.lane.b32.xlu0 %v2813, 73
      %v2830 = vpop.permute.xlu0 %2829
      %2831 = vrot.lane.b32.xlu0 %v2814, 73
      %v2832 = vpop.permute.xlu0 %2831
      %2833 = vrot.lane.b32.xlu0 %v2815, 73
      %v2834 = vpop.permute.xlu0 %2833
      %2835 = vrot.lane.b32.xlu0 %v2816, 73
      %v2836 = vpop.permute.xlu0 %2835
      %2837 = vrot.lane.b32.xlu0 %v2817, 73
      %v2838 = vpop.permute.xlu0 %2837
      %vm2839 = vcmask 596992
      %v2840 = vsel %vm2839, %v2826, %v2828
      %v2841 = vsel %vm2839, %v2828, %v2830
      %v2842 = vsel %vm2839, %v2830, %v2832
      %v2843 = vsel %vm2839, %v2832, %v2834
      %v2844 = vsel %vm2839, %v2834, %v2836
      %v2845 = vsel %vm2839, %v2836, %v2838
      %2852 = vst [vmem:[#allocation2 + $0x9f0] sm:$0xff] %v2840
      %2853 = vst [vmem:[#allocation2 + $0x9f8] sm:$0xff] %v2841
      %2854 = vst [vmem:[#allocation2 + $0xa00] sm:$0xff] %v2842
      %2855 = vst [vmem:[#allocation2 + $0xa08] sm:$0xff] %v2843
      %2856 = vst [vmem:[#allocation2 + $0xa10] sm:$0xff] %v2844
      %2857 = vst [vmem:[#allocation2 + $0xa18] sm:$0xff] %v2845
      %v2858 = vld [vmem:[%s138 + $0x8] sm:$0xff]
      %v2859 = vld [vmem:[%s138 + $0x10] sm:$0xff]
      %v2860 = vld [vmem:[%s138 + $0x18] sm:$0xff]
      %v2861 = vld [vmem:[%s138 + $0x20] sm:$0xf]
      %v2862 = vunpack.c.l.bf16 %v2858
      %v2863 = vunpack.c.h.bf16 %v2858
      %v2864 = vunpack.c.l.bf16 %v2859
      %v2865 = vunpack.c.h.bf16 %v2859
      %v2866 = vunpack.c.l.bf16 %v2860
      %v2867 = vunpack.c.h.bf16 %v2860
      %v2868 = vunpack.c.l.bf16 %v2861
      %2876 = vrot.lane.b32.xlu0 %v2862, 72
      %v2877 = vpop.permute.xlu0 %2876
      %2878 = vrot.lane.b32.xlu0 %v2863, 72
      %v2879 = vpop.permute.xlu0 %2878
      %2880 = vrot.lane.b32.xlu0 %v2864, 72
      %v2881 = vpop.permute.xlu0 %2880
      %2882 = vrot.lane.b32.xlu0 %v2865, 72
      %v2883 = vpop.permute.xlu0 %2882
      %2884 = vrot.lane.b32.xlu0 %v2866, 72
      %v2885 = vpop.permute.xlu0 %2884
      %2886 = vrot.lane.b32.xlu0 %v2867, 72
      %v2887 = vpop.permute.xlu0 %2886
      %2888 = vrot.lane.b32.xlu0 %v2868, 72
      %v2889 = vpop.permute.xlu0 %2888
      %vm2890 = vcmask 588800
      %v2891 = vsel %vm2890, %v2877, %v2879
      %v2892 = vsel %vm2890, %v2879, %v2881
      %v2893 = vsel %vm2890, %v2881, %v2883
      %v2894 = vsel %vm2890, %v2883, %v2885
      %v2895 = vsel %vm2890, %v2885, %v2887
      %v2896 = vsel %vm2890, %v2887, %v2889
      %2903 = vst [vmem:[#allocation2 + $0xa20] sm:$0xff] %v2891
      %2904 = vst [vmem:[#allocation2 + $0xa28] sm:$0xff] %v2892
      %2905 = vst [vmem:[#allocation2 + $0xa30] sm:$0xff] %v2893
      %2906 = vst [vmem:[#allocation2 + $0xa38] sm:$0xff] %v2894
      %2907 = vst [vmem:[#allocation2 + $0xa40] sm:$0xff] %v2895
      %2908 = vst [vmem:[#allocation2 + $0xa48] sm:$0xff] %v2896
      %v2909 = vld [vmem:[%s138 + $0x8] sm:$0xff]
      %v2910 = vld [vmem:[%s138 + $0x10] sm:$0xff]
      %v2911 = vld [vmem:[%s138 + $0x18] sm:$0xff]
      %v2912 = vld [vmem:[%s138 + $0x20] sm:$0xf]
      %v2913 = vunpack.c.l.bf16 %v2909
      %v2914 = vunpack.c.h.bf16 %v2909
      %v2915 = vunpack.c.l.bf16 %v2910
      %v2916 = vunpack.c.h.bf16 %v2910
      %v2917 = vunpack.c.l.bf16 %v2911
      %v2918 = vunpack.c.h.bf16 %v2911
      %v2919 = vunpack.c.l.bf16 %v2912
      %2927 = vrot.lane.b32.xlu0 %v2913, 71
      %v2928 = vpop.permute.xlu0 %2927
      %2929 = vrot.lane.b32.xlu0 %v2914, 71
      %v2930 = vpop.permute.xlu0 %2929
      %2931 = vrot.lane.b32.xlu0 %v2915, 71
      %v2932 = vpop.permute.xlu0 %2931
      %2933 = vrot.lane.b32.xlu0 %v2916, 71
      %v2934 = vpop.permute.xlu0 %2933
      %2935 = vrot.lane.b32.xlu0 %v2917, 71
      %v2936 = vpop.permute.xlu0 %2935
      %2937 = vrot.lane.b32.xlu0 %v2918, 71
      %v2938 = vpop.permute.xlu0 %2937
      %2939 = vrot.lane.b32.xlu0 %v2919, 71
      %v2940 = vpop.permute.xlu0 %2939
      %vm2941 = vcmask 580608
      %v2942 = vsel %vm2941, %v2928, %v2930
      %v2943 = vsel %vm2941, %v2930, %v2932
      %v2944 = vsel %vm2941, %v2932, %v2934
      %v2945 = vsel %vm2941, %v2934, %v2936
      %v2946 = vsel %vm2941, %v2936, %v2938
      %v2947 = vsel %vm2941, %v2938, %v2940
      %2954 = vst [vmem:[#allocation2 + $0xa50] sm:$0xff] %v2942
      %2955 = vst [vmem:[#allocation2 + $0xa58] sm:$0xff] %v2943
      %2956 = vst [vmem:[#allocation2 + $0xa60] sm:$0xff] %v2944
      %2957 = vst [vmem:[#allocation2 + $0xa68] sm:$0xff] %v2945
      %2958 = vst [vmem:[#allocation2 + $0xa70] sm:$0xff] %v2946
      %2959 = vst [vmem:[#allocation2 + $0xa78] sm:$0xff] %v2947
      %v2960 = vld [vmem:[%s138 + $0x8] sm:$0xff]
      %v2961 = vld [vmem:[%s138 + $0x10] sm:$0xff]
      %v2962 = vld [vmem:[%s138 + $0x18] sm:$0xff]
      %v2963 = vld [vmem:[%s138 + $0x20] sm:$0xf]
      %v2964 = vunpack.c.l.bf16 %v2960
      %v2965 = vunpack.c.h.bf16 %v2960
      %v2966 = vunpack.c.l.bf16 %v2961
      %v2967 = vunpack.c.h.bf16 %v2961
      %v2968 = vunpack.c.l.bf16 %v2962
      %v2969 = vunpack.c.h.bf16 %v2962
      %v2970 = vunpack.c.l.bf16 %v2963
      %2978 = vrot.lane.b32.xlu0 %v2964, 64
      %v2979 = vpop.permute.xlu0 %2978
      %2980 = vrot.lane.b32.xlu0 %v2965, 64
      %v2981 = vpop.permute.xlu0 %2980
      %2982 = vrot.lane.b32.xlu0 %v2966, 64
      %v2983 = vpop.permute.xlu0 %2982
      %2984 = vrot.lane.b32.xlu0 %v2967, 64
      %v2985 = vpop.permute.xlu0 %2984
      %2986 = vrot.lane.b32.xlu0 %v2968, 64
      %v2987 = vpop.permute.xlu0 %2986
      %2988 = vrot.lane.b32.xlu0 %v2969, 64
      %v2989 = vpop.permute.xlu0 %2988
      %2990 = vrot.lane.b32.xlu0 %v2970, 64
      %v2991 = vpop.permute.xlu0 %2990
      %vm2992 = vcmask 523264
      %v2993 = vsel %vm2992, %v2979, %v2981
      %v2994 = vsel %vm2992, %v2981, %v2983
      %v2995 = vsel %vm2992, %v2983, %v2985
      %v2996 = vsel %vm2992, %v2985, %v2987
      %v2997 = vsel %vm2992, %v2987, %v2989
      %v2998 = vsel %vm2992, %v2989, %v2991
      %3005 = vst [vmem:[#allocation2 + $0xa80] sm:$0xff] %v2993
      %3006 = vst [vmem:[#allocation2 + $0xa88] sm:$0xff] %v2994
      %3007 = vst [vmem:[#allocation2 + $0xa90] sm:$0xff] %v2995
      %3008 = vst [vmem:[#allocation2 + $0xa98] sm:$0xff] %v2996
      %3009 = vst [vmem:[#allocation2 + $0xaa0] sm:$0xff] %v2997
      %3010 = vst [vmem:[#allocation2 + $0xaa8] sm:$0xff] %v2998
      %v3011 = vld [vmem:[%s138 + $0x8] sm:$0xff]
      %v3012 = vld [vmem:[%s138 + $0x10] sm:$0xff]
      %v3013 = vld [vmem:[%s138 + $0x18] sm:$0xff]
      %v3014 = vld [vmem:[%s138 + $0x20] sm:$0xf]
      %v3015 = vunpack.c.l.bf16 %v3011
      %v3016 = vunpack.c.h.bf16 %v3011
      %v3017 = vunpack.c.l.bf16 %v3012
      %v3018 = vunpack.c.h.bf16 %v3012
      %v3019 = vunpack.c.l.bf16 %v3013
      %v3020 = vunpack.c.h.bf16 %v3013
      %v3021 = vunpack.c.l.bf16 %v3014
      %3029 = vrot.lane.b32.xlu0 %v3015, 63
      %v3030 = vpop.permute.xlu0 %3029
      %3031 = vrot.lane.b32.xlu0 %v3016, 63
      %v3032 = vpop.permute.xlu0 %3031
      %3033 = vrot.lane.b32.xlu0 %v3017, 63
      %v3034 = vpop.permute.xlu0 %3033
      %3035 = vrot.lane.b32.xlu0 %v3018, 63
      %v3036 = vpop.permute.xlu0 %3035
      %3037 = vrot.lane.b32.xlu0 %v3019, 63
      %v3038 = vpop.permute.xlu0 %3037
      %3039 = vrot.lane.b32.xlu0 %v3020, 63
      %v3040 = vpop.permute.xlu0 %3039
      %3041 = vrot.lane.b32.xlu0 %v3021, 63
      %v3042 = vpop.permute.xlu0 %3041
      %vm3043 = vcmask 515072
      %v3044 = vsel %vm3043, %v3030, %v3032
      %v3045 = vsel %vm3043, %v3032, %v3034
      %v3046 = vsel %vm3043, %v3034, %v3036
      %v3047 = vsel %vm3043, %v3036, %v3038
      %v3048 = vsel %vm3043, %v3038, %v3040
      %v3049 = vsel %vm3043, %v3040, %v3042
      %3056 = vst [vmem:[#allocation2 + $0xab0] sm:$0xff] %v3044
      %3057 = vst [vmem:[#allocation2 + $0xab8] sm:$0xff] %v3045
      %3058 = vst [vmem:[#allocation2 + $0xac0] sm:$0xff] %v3046
      %3059 = vst [vmem:[#allocation2 + $0xac8] sm:$0xff] %v3047
      %3060 = vst [vmem:[#allocation2 + $0xad0] sm:$0xff] %v3048
      %3061 = vst [vmem:[#allocation2 + $0xad8] sm:$0xff] %v3049
      %v3062 = vld [vmem:[%s138 + $0x8] sm:$0xff]
      %v3063 = vld [vmem:[%s138 + $0x10] sm:$0xff]
      %v3064 = vld [vmem:[%s138 + $0x18] sm:$0xff]
      %v3065 = vld [vmem:[%s138 + $0x20] sm:$0xf]
      %v3066 = vunpack.c.l.bf16 %v3062
      %v3067 = vunpack.c.h.bf16 %v3062
      %v3068 = vunpack.c.l.bf16 %v3063
      %v3069 = vunpack.c.h.bf16 %v3063
      %v3070 = vunpack.c.l.bf16 %v3064
      %v3071 = vunpack.c.h.bf16 %v3064
      %v3072 = vunpack.c.l.bf16 %v3065
      %3080 = vrot.lane.b32.xlu0 %v3066, 62
      %v3081 = vpop.permute.xlu0 %3080
      %3082 = vrot.lane.b32.xlu0 %v3067, 62
      %v3083 = vpop.permute.xlu0 %3082
      %3084 = vrot.lane.b32.xlu0 %v3068, 62
      %v3085 = vpop.permute.xlu0 %3084
      %3086 = vrot.lane.b32.xlu0 %v3069, 62
      %v3087 = vpop.permute.xlu0 %3086
      %3088 = vrot.lane.b32.xlu0 %v3070, 62
      %v3089 = vpop.permute.xlu0 %3088
      %3090 = vrot.lane.b32.xlu0 %v3071, 62
      %v3091 = vpop.permute.xlu0 %3090
      %3092 = vrot.lane.b32.xlu0 %v3072, 62
      %v3093 = vpop.permute.xlu0 %3092
      %vm3094 = vcmask 506880
      %v3095 = vsel %vm3094, %v3081, %v3083
      %v3096 = vsel %vm3094, %v3083, %v3085
      %v3097 = vsel %vm3094, %v3085, %v3087
      %v3098 = vsel %vm3094, %v3087, %v3089
      %v3099 = vsel %vm3094, %v3089, %v3091
      %v3100 = vsel %vm3094, %v3091, %v3093
      %3107 = vst [vmem:[#allocation2 + $0xae0] sm:$0xff] %v3095
      %3108 = vst [vmem:[#allocation2 + $0xae8] sm:$0xff] %v3096
      %3109 = vst [vmem:[#allocation2 + $0xaf0] sm:$0xff] %v3097
      %3110 = vst [vmem:[#allocation2 + $0xaf8] sm:$0xff] %v3098
      %3111 = vst [vmem:[#allocation2 + $0xb00] sm:$0xff] %v3099
      %3112 = vst [vmem:[#allocation2 + $0xb08] sm:$0xff] %v3100
      %v3113 = vld [vmem:[%s138 + $0x8] sm:$0xff]
      %v3114 = vld [vmem:[%s138 + $0x10] sm:$0xff]
      %v3115 = vld [vmem:[%s138 + $0x18] sm:$0xff]
      %v3116 = vld [vmem:[%s138 + $0x20] sm:$0xf]
      %v3117 = vunpack.c.l.bf16 %v3113
      %v3118 = vunpack.c.h.bf16 %v3113
      %v3119 = vunpack.c.l.bf16 %v3114
      %v3120 = vunpack.c.h.bf16 %v3114
      %v3121 = vunpack.c.l.bf16 %v3115
      %v3122 = vunpack.c.h.bf16 %v3115
      %v3123 = vunpack.c.l.bf16 %v3116
      %3131 = vrot.lane.b32.xlu0 %v3117, 61
      %v3132 = vpop.permute.xlu0 %3131
      %3133 = vrot.lane.b32.xlu0 %v3118, 61
      %v3134 = vpop.permute.xlu0 %3133
      %3135 = vrot.lane.b32.xlu0 %v3119, 61
      %v3136 = vpop.permute.xlu0 %3135
      %3137 = vrot.lane.b32.xlu0 %v3120, 61
      %v3138 = vpop.permute.xlu0 %3137
      %3139 = vrot.lane.b32.xlu0 %v3121, 61
      %v3140 = vpop.permute.xlu0 %3139
      %3141 = vrot.lane.b32.xlu0 %v3122, 61
      %v3142 = vpop.permute.xlu0 %3141
      %3143 = vrot.lane.b32.xlu0 %v3123, 61
      %v3144 = vpop.permute.xlu0 %3143
      %vm3145 = vcmask 498688
      %v3146 = vsel %vm3145, %v3132, %v3134
      %v3147 = vsel %vm3145, %v3134, %v3136
      %v3148 = vsel %vm3145, %v3136, %v3138
      %v3149 = vsel %vm3145, %v3138, %v3140
      %v3150 = vsel %vm3145, %v3140, %v3142
      %v3151 = vsel %vm3145, %v3142, %v3144
      %3158 = vst [vmem:[#allocation2 + $0xb10] sm:$0xff] %v3146
      %3159 = vst [vmem:[#allocation2 + $0xb18] sm:$0xff] %v3147
      %3160 = vst [vmem:[#allocation2 + $0xb20] sm:$0xff] %v3148
      %3161 = vst [vmem:[#allocation2 + $0xb28] sm:$0xff] %v3149
      %3162 = vst [vmem:[#allocation2 + $0xb30] sm:$0xff] %v3150
      %3163 = vst [vmem:[#allocation2 + $0xb38] sm:$0xff] %v3151
      %v3164 = vld [vmem:[%s138 + $0x8] sm:$0xff]
      %v3165 = vld [vmem:[%s138 + $0x10] sm:$0xff]
      %v3166 = vld [vmem:[%s138 + $0x18] sm:$0xff]
      %v3167 = vld [vmem:[%s138 + $0x20] sm:$0xf]
      %v3168 = vunpack.c.l.bf16 %v3164
      %v3169 = vunpack.c.h.bf16 %v3164
      %v3170 = vunpack.c.l.bf16 %v3165
      %v3171 = vunpack.c.h.bf16 %v3165
      %v3172 = vunpack.c.l.bf16 %v3166
      %v3173 = vunpack.c.h.bf16 %v3166
      %v3174 = vunpack.c.l.bf16 %v3167
      %3182 = vrot.lane.b32.xlu0 %v3168, 54
      %v3183 = vpop.permute.xlu0 %3182
      %3184 = vrot.lane.b32.xlu0 %v3169, 54
      %v3185 = vpop.permute.xlu0 %3184
      %3186 = vrot.lane.b32.xlu0 %v3170, 54
      %v3187 = vpop.permute.xlu0 %3186
      %3188 = vrot.lane.b32.xlu0 %v3171, 54
      %v3189 = vpop.permute.xlu0 %3188
      %3190 = vrot.lane.b32.xlu0 %v3172, 54
      %v3191 = vpop.permute.xlu0 %3190
      %3192 = vrot.lane.b32.xlu0 %v3173, 54
      %v3193 = vpop.permute.xlu0 %3192
      %3194 = vrot.lane.b32.xlu0 %v3174, 54
      %v3195 = vpop.permute.xlu0 %3194
      %v3196 = vsel %vm1872, %v3183, %v3185
      %v3197 = vsel %vm1872, %v3185, %v3187
      %v3198 = vsel %vm1872, %v3187, %v3189
      %v3199 = vsel %vm1872, %v3189, %v3191
      %v3200 = vsel %vm1872, %v3191, %v3193
      %v3201 = vsel %vm1872, %v3193, %v3195
      %3208 = vst [vmem:[#allocation2 + $0xb40] sm:$0xff] %v3196
      %3209 = vst [vmem:[#allocation2 + $0xb48] sm:$0xff] %v3197
      %3210 = vst [vmem:[#allocation2 + $0xb50] sm:$0xff] %v3198
      %3211 = vst [vmem:[#allocation2 + $0xb58] sm:$0xff] %v3199
      %3212 = vst [vmem:[#allocation2 + $0xb60] sm:$0xff] %v3200
      %3213 = vst [vmem:[#allocation2 + $0xb68] sm:$0xff] %v3201
      %v3214 = vld [vmem:[%s138 + $0x8] sm:$0xff]
      %v3215 = vld [vmem:[%s138 + $0x10] sm:$0xff]
      %v3216 = vld [vmem:[%s138 + $0x18] sm:$0xff]
      %v3217 = vld [vmem:[%s138 + $0x20] sm:$0xf]
      %v3218 = vunpack.c.l.bf16 %v3214
      %v3219 = vunpack.c.h.bf16 %v3214
      %v3220 = vunpack.c.l.bf16 %v3215
      %v3221 = vunpack.c.h.bf16 %v3215
      %v3222 = vunpack.c.l.bf16 %v3216
      %v3223 = vunpack.c.h.bf16 %v3216
      %v3224 = vunpack.c.l.bf16 %v3217
      %3232 = vrot.lane.b32.xlu0 %v3218, 53
      %v3233 = vpop.permute.xlu0 %3232
      %3234 = vrot.lane.b32.xlu0 %v3219, 53
      %v3235 = vpop.permute.xlu0 %3234
      %3236 = vrot.lane.b32.xlu0 %v3220, 53
      %v3237 = vpop.permute.xlu0 %3236
      %3238 = vrot.lane.b32.xlu0 %v3221, 53
      %v3239 = vpop.permute.xlu0 %3238
      %3240 = vrot.lane.b32.xlu0 %v3222, 53
      %v3241 = vpop.permute.xlu0 %3240
      %3242 = vrot.lane.b32.xlu0 %v3223, 53
      %v3243 = vpop.permute.xlu0 %3242
      %3244 = vrot.lane.b32.xlu0 %v3224, 53
      %v3245 = vpop.permute.xlu0 %3244
      %v3246 = vsel %vm1923, %v3233, %v3235
      %v3247 = vsel %vm1923, %v3235, %v3237
      %v3248 = vsel %vm1923, %v3237, %v3239
      %v3249 = vsel %vm1923, %v3239, %v3241
      %v3250 = vsel %vm1923, %v3241, %v3243
      %v3251 = vsel %vm1923, %v3243, %v3245
      %3258 = vst [vmem:[#allocation2 + $0xb70] sm:$0xff] %v3246
      %3259 = vst [vmem:[#allocation2 + $0xb78] sm:$0xff] %v3247
      %3260 = vst [vmem:[#allocation2 + $0xb80] sm:$0xff] %v3248
      %3261 = vst [vmem:[#allocation2 + $0xb88] sm:$0xff] %v3249
      %3262 = vst [vmem:[#allocation2 + $0xb90] sm:$0xff] %v3250
      %3263 = vst [vmem:[#allocation2 + $0xb98] sm:$0xff] %v3251
      %v3264 = vld [vmem:[%s138 + $0x8] sm:$0xff]
      %v3265 = vld [vmem:[%s138 + $0x10] sm:$0xff]
      %v3266 = vld [vmem:[%s138 + $0x18] sm:$0xff]
      %v3267 = vld [vmem:[%s138 + $0x20] sm:$0xf]
      %v3268 = vunpack.c.l.bf16 %v3264
      %v3269 = vunpack.c.h.bf16 %v3264
      %v3270 = vunpack.c.l.bf16 %v3265
      %v3271 = vunpack.c.h.bf16 %v3265
      %v3272 = vunpack.c.l.bf16 %v3266
      %v3273 = vunpack.c.h.bf16 %v3266
      %v3274 = vunpack.c.l.bf16 %v3267
      %3282 = vrot.lane.b32.xlu0 %v3268, 52
      %v3283 = vpop.permute.xlu0 %3282
      %3284 = vrot.lane.b32.xlu0 %v3269, 52
      %v3285 = vpop.permute.xlu0 %3284
      %3286 = vrot.lane.b32.xlu0 %v3270, 52
      %v3287 = vpop.permute.xlu0 %3286
      %3288 = vrot.lane.b32.xlu0 %v3271, 52
      %v3289 = vpop.permute.xlu0 %3288
      %3290 = vrot.lane.b32.xlu0 %v3272, 52
      %v3291 = vpop.permute.xlu0 %3290
      %3292 = vrot.lane.b32.xlu0 %v3273, 52
      %v3293 = vpop.permute.xlu0 %3292
      %3294 = vrot.lane.b32.xlu0 %v3274, 52
      %v3295 = vpop.permute.xlu0 %3294
      %vm3296 = vcmask 424960
      %v3297 = vsel %vm3296, %v3283, %v3285
      %v3298 = vsel %vm3296, %v3285, %v3287
      %v3299 = vsel %vm3296, %v3287, %v3289
      %v3300 = vsel %vm3296, %v3289, %v3291
      %v3301 = vsel %vm3296, %v3291, %v3293
      %v3302 = vsel %vm3296, %v3293, %v3295
      %3309 = vst [vmem:[#allocation2 + $0xba0] sm:$0xff] %v3297
      %3310 = vst [vmem:[#allocation2 + $0xba8] sm:$0xff] %v3298
      %3311 = vst [vmem:[#allocation2 + $0xbb0] sm:$0xff] %v3299
      %3312 = vst [vmem:[#allocation2 + $0xbb8] sm:$0xff] %v3300
      %3313 = vst [vmem:[#allocation2 + $0xbc0] sm:$0xff] %v3301
      %3314 = vst [vmem:[#allocation2 + $0xbc8] sm:$0xff] %v3302
      %v3315 = vld [vmem:[%s138 + $0x8] sm:$0xff]
      %v3316 = vld [vmem:[%s138 + $0x10] sm:$0xff]
      %v3317 = vld [vmem:[%s138 + $0x18] sm:$0xff]
      %v3318 = vld [vmem:[%s138 + $0x20] sm:$0xf]
      %v3319 = vunpack.c.l.bf16 %v3315
      %v3320 = vunpack.c.h.bf16 %v3315
      %v3321 = vunpack.c.l.bf16 %v3316
      %v3322 = vunpack.c.h.bf16 %v3316
      %v3323 = vunpack.c.l.bf16 %v3317
      %v3324 = vunpack.c.h.bf16 %v3317
      %v3325 = vunpack.c.l.bf16 %v3318
      %3333 = vrot.lane.b32.xlu0 %v3319, 51
      %v3334 = vpop.permute.xlu0 %3333
      %3335 = vrot.lane.b32.xlu0 %v3320, 51
      %v3336 = vpop.permute.xlu0 %3335
      %3337 = vrot.lane.b32.xlu0 %v3321, 51
      %v3338 = vpop.permute.xlu0 %3337
      %3339 = vrot.lane.b32.xlu0 %v3322, 51
      %v3340 = vpop.permute.xlu0 %3339
      %3341 = vrot.lane.b32.xlu0 %v3323, 51
      %v3342 = vpop.permute.xlu0 %3341
      %3343 = vrot.lane.b32.xlu0 %v3324, 51
      %v3344 = vpop.permute.xlu0 %3343
      %3345 = vrot.lane.b32.xlu0 %v3325, 51
      %v3346 = vpop.permute.xlu0 %3345
      %vm3347 = vcmask 416768
      %v3348 = vsel %vm3347, %v3334, %v3336
      %v3349 = vsel %vm3347, %v3336, %v3338
      %v3350 = vsel %vm3347, %v3338, %v3340
      %v3351 = vsel %vm3347, %v3340, %v3342
      %v3352 = vsel %vm3347, %v3342, %v3344
      %v3353 = vsel %vm3347, %v3344, %v3346
      %3360 = vst [vmem:[#allocation2 + $0xbd0] sm:$0xff] %v3348
      %3361 = vst [vmem:[#allocation2 + $0xbd8] sm:$0xff] %v3349
      %3362 = vst [vmem:[#allocation2 + $0xbe0] sm:$0xff] %v3350
      %3363 = vst [vmem:[#allocation2 + $0xbe8] sm:$0xff] %v3351
      %3364 = vst [vmem:[#allocation2 + $0xbf0] sm:$0xff] %v3352
      %3365 = vst [vmem:[#allocation2 + $0xbf8] sm:$0xff] %v3353
      %v3366 = vld [vmem:[%s1] sm:$0xff]
      %v3367 = vld [vmem:[%s1 + $0x8] sm:$0xff]
      %v3368 = vld [vmem:[#allocation2] sm:$0xff]
      %v3369 = vld [vmem:[#allocation2 + $0x8] sm:$0xff]
      %v3370 = vld [vmem:[#allocation2 + $0x10] sm:$0xff]
      %v3371 = vld [vmem:[#allocation2 + $0x18] sm:$0xff]
      %v3372 = vld [vmem:[#allocation2 + $0x20] sm:$0xff]
      %v3373 = vld [vmem:[#allocation2 + $0x28] sm:$0xff]
      %v3374 = vld [vmem:[#allocation2 + $0x30] sm:$0xff]
      %v3375 = vld [vmem:[#allocation2 + $0x38] sm:$0xff]
      %v3376 = vld [vmem:[#allocation2 + $0x40] sm:$0xff]
      %v3377 = vld [vmem:[#allocation2 + $0x48] sm:$0xff]
      %v3378 = vld [vmem:[#allocation2 + $0x50] sm:$0xff]
      %v3379 = vld [vmem:[#allocation2 + $0x58] sm:$0xff]
      %v3380 = vld [vmem:[#allocation2 + $0x60] sm:$0xff]
      %v3381 = vld [vmem:[#allocation2 + $0x68] sm:$0xff]
      %v3382 = vld [vmem:[#allocation2 + $0x70] sm:$0xff]
      %v3383 = vld [vmem:[#allocation2 + $0x78] sm:$0xff]
      %v3384 = vld [vmem:[#allocation2 + $0x80] sm:$0xff]
      %v3385 = vld [vmem:[#allocation2 + $0x88] sm:$0xff]
      %v3386 = vld [vmem:[#allocation2 + $0x90] sm:$0xff]
      %v3387 = vld [vmem:[#allocation2 + $0x98] sm:$0xff]
      %v3388 = vld [vmem:[#allocation2 + $0xa0] sm:$0xff]
      %v3389 = vld [vmem:[#allocation2 + $0xa8] sm:$0xff]
      %v3390 = vld [vmem:[#allocation2 + $0xb0] sm:$0xff]
      %v3391 = vld [vmem:[#allocation2 + $0xb8] sm:$0xff]
      %v3392 = vld [vmem:[#allocation2 + $0xc0] sm:$0xff]
      %v3393 = vld [vmem:[#allocation2 + $0xc8] sm:$0xff]
      %v3394 = vld [vmem:[#allocation2 + $0xd0] sm:$0xff]
      %v3395 = vld [vmem:[#allocation2 + $0xd8] sm:$0xff]
      %v3396 = vld [vmem:[#allocation2 + $0xe0] sm:$0xff]
      %v3397 = vld [vmem:[#allocation2 + $0xe8] sm:$0xff]
      %v3398 = vld [vmem:[#allocation2 + $0xf0] sm:$0xff]
      %v3399 = vld [vmem:[#allocation2 + $0xf8] sm:$0xff]
      %v3400 = vld [vmem:[#allocation2 + $0x100] sm:$0xff]
      %v3401 = vld [vmem:[#allocation2 + $0x108] sm:$0xff]
      %v3402 = vld [vmem:[#allocation2 + $0x110] sm:$0xff]
      %v3403 = vld [vmem:[#allocation2 + $0x118] sm:$0xff]
      %v3404 = vld [vmem:[#allocation2 + $0x120] sm:$0xff]
      %v3405 = vld [vmem:[#allocation2 + $0x128] sm:$0xff]
      %v3406 = vld [vmem:[#allocation2 + $0x130] sm:$0xff]
      %v3407 = vld [vmem:[#allocation2 + $0x138] sm:$0xff]
      %v3408 = vld [vmem:[#allocation2 + $0x140] sm:$0xff]
      %v3409 = vld [vmem:[#allocation2 + $0x148] sm:$0xff]
      %v3410 = vld [vmem:[#allocation2 + $0x150] sm:$0xff]
      %v3411 = vld [vmem:[#allocation2 + $0x158] sm:$0xff]
      %v3412 = vld [vmem:[#allocation2 + $0x160] sm:$0xff]
      %v3413 = vld [vmem:[#allocation2 + $0x168] sm:$0xff]
      %v3414 = vld [vmem:[#allocation2 + $0x170] sm:$0xff]
      %v3415 = vld [vmem:[#allocation2 + $0x178] sm:$0xff]
      %v3416 = vld [vmem:[#allocation2 + $0x180] sm:$0xff]
      %v3417 = vld [vmem:[#allocation2 + $0x188] sm:$0xff]
      %v3418 = vld [vmem:[#allocation2 + $0x190] sm:$0xff]
      %v3419 = vld [vmem:[#allocation2 + $0x198] sm:$0xff]
      %v3420 = vld [vmem:[#allocation2 + $0x1a0] sm:$0xff]
      %v3421 = vld [vmem:[#allocation2 + $0x1a8] sm:$0xff]
      %v3422 = vld [vmem:[#allocation2 + $0x1b0] sm:$0xff]
      %v3423 = vld [vmem:[#allocation2 + $0x1b8] sm:$0xff]
      %v3424 = vld [vmem:[#allocation2 + $0x1c0] sm:$0xff]
      %v3425 = vld [vmem:[#allocation2 + $0x1c8] sm:$0xff]
      %v3426 = vld [vmem:[#allocation2 + $0x1d0] sm:$0xff]
      %v3427 = vld [vmem:[#allocation2 + $0x1d8] sm:$0xff]
      %v3428 = vld [vmem:[#allocation2 + $0x1e0] sm:$0xff]
      %v3429 = vld [vmem:[#allocation2 + $0x1e8] sm:$0xff]
      %v3430 = vld [vmem:[#allocation2 + $0x1f0] sm:$0xff]
      %v3431 = vld [vmem:[#allocation2 + $0x1f8] sm:$0xff]
      %v3432 = vld [vmem:[#allocation2 + $0x200] sm:$0xff]
      %v3433 = vld [vmem:[#allocation2 + $0x208] sm:$0xff]
      %v3434 = vld [vmem:[#allocation2 + $0x210] sm:$0xff]
      %v3435 = vld [vmem:[#allocation2 + $0x218] sm:$0xff]
      %v3436 = vld [vmem:[#allocation2 + $0x220] sm:$0xff]
      %v3437 = vld [vmem:[#allocation2 + $0x228] sm:$0xff]
      %v3438 = vld [vmem:[#allocation2 + $0x230] sm:$0xff]
      %v3439 = vld [vmem:[#allocation2 + $0x238] sm:$0xff]
      %v3440 = vld [vmem:[#allocation2 + $0x240] sm:$0xff]
      %v3441 = vld [vmem:[#allocation2 + $0x248] sm:$0xff]
      %v3442 = vld [vmem:[#allocation2 + $0x250] sm:$0xff]
      %v3443 = vld [vmem:[#allocation2 + $0x258] sm:$0xff]
      %v3444 = vld [vmem:[#allocation2 + $0x260] sm:$0xff]
      %v3445 = vld [vmem:[#allocation2 + $0x268] sm:$0xff]
      %v3446 = vld [vmem:[#allocation2 + $0x270] sm:$0xff]
      %v3447 = vld [vmem:[#allocation2 + $0x278] sm:$0xff]
      %v3448 = vld [vmem:[#allocation2 + $0x280] sm:$0xff]
      %v3449 = vld [vmem:[#allocation2 + $0x288] sm:$0xff]
      %v3450 = vld [vmem:[#allocation2 + $0x290] sm:$0xff]
      %v3451 = vld [vmem:[#allocation2 + $0x298] sm:$0xff]
      %v3452 = vld [vmem:[#allocation2 + $0x2a0] sm:$0xff]
      %v3453 = vld [vmem:[#allocation2 + $0x2a8] sm:$0xff]
      %v3454 = vld [vmem:[#allocation2 + $0x2b0] sm:$0xff]
      %v3455 = vld [vmem:[#allocation2 + $0x2b8] sm:$0xff]
      %v3456 = vld [vmem:[#allocation2 + $0x2c0] sm:$0xff]
      %v3457 = vld [vmem:[#allocation2 + $0x2c8] sm:$0xff]
      %v3458 = vld [vmem:[#allocation2 + $0x2d0] sm:$0xff]
      %v3459 = vld [vmem:[#allocation2 + $0x2d8] sm:$0xff]
      %v3460 = vld [vmem:[#allocation2 + $0x2e0] sm:$0xff]
      %v3461 = vld [vmem:[#allocation2 + $0x2e8] sm:$0xff]
      %v3462 = vld [vmem:[#allocation2 + $0x2f0] sm:$0xff]
      %v3463 = vld [vmem:[#allocation2 + $0x2f8] sm:$0xff]
      %v3464 = vld [vmem:[#allocation2 + $0x300] sm:$0xff]
      %v3465 = vld [vmem:[#allocation2 + $0x308] sm:$0xff]
      %v3466 = vld [vmem:[#allocation2 + $0x310] sm:$0xff]
      %v3467 = vld [vmem:[#allocation2 + $0x318] sm:$0xff]
      %v3468 = vld [vmem:[#allocation2 + $0x320] sm:$0xff]
      %v3469 = vld [vmem:[#allocation2 + $0x328] sm:$0xff]
      %v3470 = vld [vmem:[#allocation2 + $0x330] sm:$0xff]
      %v3471 = vld [vmem:[#allocation2 + $0x338] sm:$0xff]
      %v3472 = vld [vmem:[#allocation2 + $0x340] sm:$0xff]
      %v3473 = vld [vmem:[#allocation2 + $0x348] sm:$0xff]
      %v3474 = vld [vmem:[#allocation2 + $0x350] sm:$0xff]
      %v3475 = vld [vmem:[#allocation2 + $0x358] sm:$0xff]
      %v3476 = vld [vmem:[#allocation2 + $0x360] sm:$0xff]
      %v3477 = vld [vmem:[#allocation2 + $0x368] sm:$0xff]
      %v3478 = vld [vmem:[#allocation2 + $0x370] sm:$0xff]
      %v3479 = vld [vmem:[#allocation2 + $0x378] sm:$0xff]
      %v3480 = vld [vmem:[#allocation2 + $0x380] sm:$0xff]
      %v3481 = vld [vmem:[#allocation2 + $0x388] sm:$0xff]
      %v3482 = vld [vmem:[#allocation2 + $0x390] sm:$0xff]
      %v3483 = vld [vmem:[#allocation2 + $0x398] sm:$0xff]
      %v3484 = vld [vmem:[#allocation2 + $0x3a0] sm:$0xff]
      %v3485 = vld [vmem:[#allocation2 + $0x3a8] sm:$0xff]
      %v3486 = vld [vmem:[#allocation2 + $0x3b0] sm:$0xff]
      %v3487 = vld [vmem:[#allocation2 + $0x3b8] sm:$0xff]
      %v3488 = vld [vmem:[#allocation2 + $0x3c0] sm:$0xff]
      %v3489 = vld [vmem:[#allocation2 + $0x3c8] sm:$0xff]
      %v3490 = vld [vmem:[#allocation2 + $0x3d0] sm:$0xff]
      %v3491 = vld [vmem:[#allocation2 + $0x3d8] sm:$0xff]
      %v3492 = vld [vmem:[#allocation2 + $0x3e0] sm:$0xff]
      %v3493 = vld [vmem:[#allocation2 + $0x3e8] sm:$0xff]
      %v3494 = vld [vmem:[#allocation2 + $0x3f0] sm:$0xff]
      %v3495 = vld [vmem:[#allocation2 + $0x3f8] sm:$0xff]
      %v3496 = vld [vmem:[#allocation2 + $0x400] sm:$0xff]
      %v3497 = vld [vmem:[#allocation2 + $0x408] sm:$0xff]
      %v3498 = vld [vmem:[#allocation2 + $0x410] sm:$0xff]
      %v3499 = vld [vmem:[#allocation2 + $0x418] sm:$0xff]
      %v3500 = vld [vmem:[#allocation2 + $0x420] sm:$0xff]
      %v3501 = vld [vmem:[#allocation2 + $0x428] sm:$0xff]
      %v3502 = vld [vmem:[#allocation2 + $0x430] sm:$0xff]
      %v3503 = vld [vmem:[#allocation2 + $0x438] sm:$0xff]
      %v3504 = vld [vmem:[#allocation2 + $0x440] sm:$0xff]
      %v3505 = vld [vmem:[#allocation2 + $0x448] sm:$0xff]
      %v3506 = vld [vmem:[#allocation2 + $0x450] sm:$0xff]
      %v3507 = vld [vmem:[#allocation2 + $0x458] sm:$0xff]
      %v3508 = vld [vmem:[#allocation2 + $0x460] sm:$0xff]
      %v3509 = vld [vmem:[#allocation2 + $0x468] sm:$0xff]
      %v3510 = vld [vmem:[#allocation2 + $0x470] sm:$0xff]
      %v3511 = vld [vmem:[#allocation2 + $0x478] sm:$0xff]
      %v3512 = vld [vmem:[#allocation2 + $0x480] sm:$0xff]
      %v3513 = vld [vmem:[#allocation2 + $0x488] sm:$0xff]
      %v3514 = vld [vmem:[#allocation2 + $0x490] sm:$0xff]
      %v3515 = vld [vmem:[#allocation2 + $0x498] sm:$0xff]
      %v3516 = vld [vmem:[#allocation2 + $0x4a0] sm:$0xff]
      %v3517 = vld [vmem:[#allocation2 + $0x4a8] sm:$0xff]
      %v3518 = vld [vmem:[#allocation2 + $0x4b0] sm:$0xff]
      %v3519 = vld [vmem:[#allocation2 + $0x4b8] sm:$0xff]
      %v3520 = vld [vmem:[#allocation2 + $0x4c0] sm:$0xff]
      %v3521 = vld [vmem:[#allocation2 + $0x4c8] sm:$0xff]
      %v3522 = vld [vmem:[#allocation2 + $0x4d0] sm:$0xff]
      %v3523 = vld [vmem:[#allocation2 + $0x4d8] sm:$0xff]
      %v3524 = vld [vmem:[#allocation2 + $0x4e0] sm:$0xff]
      %v3525 = vld [vmem:[#allocation2 + $0x4e8] sm:$0xff]
      %v3526 = vld [vmem:[#allocation2 + $0x4f0] sm:$0xff]
      %v3527 = vld [vmem:[#allocation2 + $0x4f8] sm:$0xff]
      %v3528 = vld [vmem:[#allocation2 + $0x500] sm:$0xff]
      %v3529 = vld [vmem:[#allocation2 + $0x508] sm:$0xff]
      %v3530 = vld [vmem:[#allocation2 + $0x510] sm:$0xff]
      %v3531 = vld [vmem:[#allocation2 + $0x518] sm:$0xff]
      %v3532 = vld [vmem:[#allocation2 + $0x520] sm:$0xff]
      %v3533 = vld [vmem:[#allocation2 + $0x528] sm:$0xff]
      %v3534 = vld [vmem:[#allocation2 + $0x530] sm:$0xff]
      %v3535 = vld [vmem:[#allocation2 + $0x538] sm:$0xff]
      %v3536 = vld [vmem:[#allocation2 + $0x540] sm:$0xff]
      %v3537 = vld [vmem:[#allocation2 + $0x548] sm:$0xff]
      %v3538 = vld [vmem:[#allocation2 + $0x550] sm:$0xff]
      %v3539 = vld [vmem:[#allocation2 + $0x558] sm:$0xff]
      %v3540 = vld [vmem:[#allocation2 + $0x560] sm:$0xff]
      %v3541 = vld [vmem:[#allocation2 + $0x568] sm:$0xff]
      %v3542 = vld [vmem:[#allocation2 + $0x570] sm:$0xff]
      %v3543 = vld [vmem:[#allocation2 + $0x578] sm:$0xff]
      %v3544 = vld [vmem:[#allocation2 + $0x580] sm:$0xff]
      %v3545 = vld [vmem:[#allocation2 + $0x588] sm:$0xff]
      %v3546 = vld [vmem:[#allocation2 + $0x590] sm:$0xff]
      %v3547 = vld [vmem:[#allocation2 + $0x598] sm:$0xff]
      %v3548 = vld [vmem:[#allocation2 + $0x5a0] sm:$0xff]
      %v3549 = vld [vmem:[#allocation2 + $0x5a8] sm:$0xff]
      %v3550 = vld [vmem:[#allocation2 + $0x5b0] sm:$0xff]
      %v3551 = vld [vmem:[#allocation2 + $0x5b8] sm:$0xff]
      %v3552 = vld [vmem:[#allocation2 + $0x5c0] sm:$0xff]
      %v3553 = vld [vmem:[#allocation2 + $0x5c8] sm:$0xff]
      %v3554 = vld [vmem:[#allocation2 + $0x5d0] sm:$0xff]
      %v3555 = vld [vmem:[#allocation2 + $0x5d8] sm:$0xff]
      %v3556 = vld [vmem:[#allocation2 + $0x5e0] sm:$0xff]
      %v3557 = vld [vmem:[#allocation2 + $0x5e8] sm:$0xff]
      %v3558 = vld [vmem:[#allocation2 + $0x5f0] sm:$0xff]
      %v3559 = vld [vmem:[#allocation2 + $0x5f8] sm:$0xff]
      %v3560 = vld [vmem:[#allocation2 + $0x600] sm:$0xff]
      %v3561 = vld [vmem:[#allocation2 + $0x608] sm:$0xff]
      %v3562 = vld [vmem:[#allocation2 + $0x610] sm:$0xff]
      %v3563 = vld [vmem:[#allocation2 + $0x618] sm:$0xff]
      %v3564 = vld [vmem:[#allocation2 + $0x620] sm:$0xff]
      %v3565 = vld [vmem:[#allocation2 + $0x628] sm:$0xff]
      %v3566 = vld [vmem:[#allocation2 + $0x630] sm:$0xff]
      %v3567 = vld [vmem:[#allocation2 + $0x638] sm:$0xff]
      %v3568 = vld [vmem:[#allocation2 + $0x640] sm:$0xff]
      %v3569 = vld [vmem:[#allocation2 + $0x648] sm:$0xff]
      %v3570 = vld [vmem:[#allocation2 + $0x650] sm:$0xff]
      %v3571 = vld [vmem:[#allocation2 + $0x658] sm:$0xff]
      %v3572 = vld [vmem:[#allocation2 + $0x660] sm:$0xff]
      %v3573 = vld [vmem:[#allocation2 + $0x668] sm:$0xff]
      %v3574 = vld [vmem:[#allocation2 + $0x670] sm:$0xff]
      %v3575 = vld [vmem:[#allocation2 + $0x678] sm:$0xff]
      %v3576 = vld [vmem:[#allocation2 + $0x680] sm:$0xff]
      %v3577 = vld [vmem:[#allocation2 + $0x688] sm:$0xff]
      %v3578 = vld [vmem:[#allocation2 + $0x690] sm:$0xff]
      %v3579 = vld [vmem:[#allocation2 + $0x698] sm:$0xff]
      %v3580 = vld [vmem:[#allocation2 + $0x6a0] sm:$0xff]
      %v3581 = vld [vmem:[#allocation2 + $0x6a8] sm:$0xff]
      %v3582 = vld [vmem:[#allocation2 + $0x6b0] sm:$0xff]
      %v3583 = vld [vmem:[#allocation2 + $0x6b8] sm:$0xff]
      %v3584 = vld [vmem:[#allocation2 + $0x6c0] sm:$0xff]
      %v3585 = vld [vmem:[#allocation2 + $0x6c8] sm:$0xff]
      %v3586 = vld [vmem:[#allocation2 + $0x6d0] sm:$0xff]
      %v3587 = vld [vmem:[#allocation2 + $0x6d8] sm:$0xff]
      %v3588 = vld [vmem:[#allocation2 + $0x6e0] sm:$0xff]
      %v3589 = vld [vmem:[#allocation2 + $0x6e8] sm:$0xff]
      %v3590 = vld [vmem:[#allocation2 + $0x6f0] sm:$0xff]
      %v3591 = vld [vmem:[#allocation2 + $0x6f8] sm:$0xff]
      %v3592 = vld [vmem:[#allocation2 + $0x700] sm:$0xff]
      %v3593 = vld [vmem:[#allocation2 + $0x708] sm:$0xff]
      %v3594 = vld [vmem:[#allocation2 + $0x710] sm:$0xff]
      %v3595 = vld [vmem:[#allocation2 + $0x718] sm:$0xff]
      %v3596 = vld [vmem:[#allocation2 + $0x720] sm:$0xff]
      %v3597 = vld [vmem:[#allocation2 + $0x728] sm:$0xff]
      %v3598 = vld [vmem:[#allocation2 + $0x730] sm:$0xff]
      %v3599 = vld [vmem:[#allocation2 + $0x738] sm:$0xff]
      %v3600 = vld [vmem:[#allocation2 + $0x740] sm:$0xff]
      %v3601 = vld [vmem:[#allocation2 + $0x748] sm:$0xff]
      %v3602 = vld [vmem:[#allocation2 + $0x750] sm:$0xff]
      %v3603 = vld [vmem:[#allocation2 + $0x758] sm:$0xff]
      %v3604 = vld [vmem:[#allocation2 + $0x760] sm:$0xff]
      %v3605 = vld [vmem:[#allocation2 + $0x768] sm:$0xff]
      %v3606 = vld [vmem:[#allocation2 + $0x770] sm:$0xff]
      %v3607 = vld [vmem:[#allocation2 + $0x778] sm:$0xff]
      %v3608 = vld [vmem:[#allocation2 + $0x780] sm:$0xff]
      %v3609 = vld [vmem:[#allocation2 + $0x788] sm:$0xff]
      %v3610 = vld [vmem:[#allocation2 + $0x790] sm:$0xff]
      %v3611 = vld [vmem:[#allocation2 + $0x798] sm:$0xff]
      %v3612 = vld [vmem:[#allocation2 + $0x7a0] sm:$0xff]
      %v3613 = vld [vmem:[#allocation2 + $0x7a8] sm:$0xff]
      %v3614 = vld [vmem:[#allocation2 + $0x7b0] sm:$0xff]
      %v3615 = vld [vmem:[#allocation2 + $0x7b8] sm:$0xff]
      %v3616 = vld [vmem:[#allocation2 + $0x7c0] sm:$0xff]
      %v3617 = vld [vmem:[#allocation2 + $0x7c8] sm:$0xff]
      %v3618 = vld [vmem:[#allocation2 + $0x7d0] sm:$0xff]
      %v3619 = vld [vmem:[#allocation2 + $0x7d8] sm:$0xff]
      %v3620 = vld [vmem:[#allocation2 + $0x7e0] sm:$0xff]
      %v3621 = vld [vmem:[#allocation2 + $0x7e8] sm:$0xff]
      %v3622 = vld [vmem:[#allocation2 + $0x7f0] sm:$0xff]
      %v3623 = vld [vmem:[#allocation2 + $0x7f8] sm:$0xff]
      %v3624 = vld [vmem:[#allocation2 + $0x800] sm:$0xff]
      %v3625 = vld [vmem:[#allocation2 + $0x808] sm:$0xff]
      %v3626 = vld [vmem:[#allocation2 + $0x810] sm:$0xff]
      %v3627 = vld [vmem:[#allocation2 + $0x818] sm:$0xff]
      %v3628 = vld [vmem:[#allocation2 + $0x820] sm:$0xff]
      %v3629 = vld [vmem:[#allocation2 + $0x828] sm:$0xff]
      %v3630 = vld [vmem:[#allocation2 + $0x830] sm:$0xff]
      %v3631 = vld [vmem:[#allocation2 + $0x838] sm:$0xff]
      %v3632 = vld [vmem:[#allocation2 + $0x840] sm:$0xff]
      %v3633 = vld [vmem:[#allocation2 + $0x848] sm:$0xff]
      %v3634 = vld [vmem:[#allocation2 + $0x850] sm:$0xff]
      %v3635 = vld [vmem:[#allocation2 + $0x858] sm:$0xff]
      %v3636 = vld [vmem:[#allocation2 + $0x860] sm:$0xff]
      %v3637 = vld [vmem:[#allocation2 + $0x868] sm:$0xff]
      %v3638 = vld [vmem:[#allocation2 + $0x870] sm:$0xff]
      %v3639 = vld [vmem:[#allocation2 + $0x878] sm:$0xff]
      %v3640 = vld [vmem:[#allocation2 + $0x880] sm:$0xff]
      %v3641 = vld [vmem:[#allocation2 + $0x888] sm:$0xff]
      %v3642 = vld [vmem:[#allocation2 + $0x890] sm:$0xff]
      %v3643 = vld [vmem:[#allocation2 + $0x898] sm:$0xff]
      %v3644 = vld [vmem:[#allocation2 + $0x8a0] sm:$0xff]
      %v3645 = vld [vmem:[#allocation2 + $0x8a8] sm:$0xff]
      %v3646 = vld [vmem:[#allocation2 + $0x8b0] sm:$0xff]
      %v3647 = vld [vmem:[#allocation2 + $0x8b8] sm:$0xff]
      %v3648 = vld [vmem:[#allocation2 + $0x8c0] sm:$0xff]
      %v3649 = vld [vmem:[#allocation2 + $0x8c8] sm:$0xff]
      %v3650 = vld [vmem:[#allocation2 + $0x8d0] sm:$0xff]
      %v3651 = vld [vmem:[#allocation2 + $0x8d8] sm:$0xff]
      %v3652 = vld [vmem:[#allocation2 + $0x8e0] sm:$0xff]
      %v3653 = vld [vmem:[#allocation2 + $0x8e8] sm:$0xff]
      %v3654 = vld [vmem:[#allocation2 + $0x8f0] sm:$0xff]
      %v3655 = vld [vmem:[#allocation2 + $0x8f8] sm:$0xff]
      %v3656 = vld [vmem:[#allocation2 + $0x900] sm:$0xff]
      %v3657 = vld [vmem:[#allocation2 + $0x908] sm:$0xff]
      %v3658 = vld [vmem:[#allocation2 + $0x910] sm:$0xff]
      %v3659 = vld [vmem:[#allocation2 + $0x918] sm:$0xff]
      %v3660 = vld [vmem:[#allocation2 + $0x920] sm:$0xff]
      %v3661 = vld [vmem:[#allocation2 + $0x928] sm:$0xff]
      %v3662 = vld [vmem:[#allocation2 + $0x930] sm:$0xff]
      %v3663 = vld [vmem:[#allocation2 + $0x938] sm:$0xff]
      %v3664 = vld [vmem:[#allocation2 + $0x940] sm:$0xff]
      %v3665 = vld [vmem:[#allocation2 + $0x948] sm:$0xff]
      %v3666 = vld [vmem:[#allocation2 + $0x950] sm:$0xff]
      %v3667 = vld [vmem:[#allocation2 + $0x958] sm:$0xff]
      %v3668 = vld [vmem:[#allocation2 + $0x960] sm:$0xff]
      %v3669 = vld [vmem:[#allocation2 + $0x968] sm:$0xff]
      %v3670 = vld [vmem:[#allocation2 + $0x970] sm:$0xff]
      %v3671 = vld [vmem:[#allocation2 + $0x978] sm:$0xff]
      %v3672 = vld [vmem:[#allocation2 + $0x980] sm:$0xff]
      %v3673 = vld [vmem:[#allocation2 + $0x988] sm:$0xff]
      %v3674 = vld [vmem:[#allocation2 + $0x990] sm:$0xff]
      %v3675 = vld [vmem:[#allocation2 + $0x998] sm:$0xff]
      %v3676 = vld [vmem:[#allocation2 + $0x9a0] sm:$0xff]
      %v3677 = vld [vmem:[#allocation2 + $0x9a8] sm:$0xff]
      %v3678 = vld [vmem:[#allocation2 + $0x9b0] sm:$0xff]
      %v3679 = vld [vmem:[#allocation2 + $0x9b8] sm:$0xff]
      %v3680 = vld [vmem:[#allocation2 + $0x9c0] sm:$0xff]
      %v3681 = vld [vmem:[#allocation2 + $0x9c8] sm:$0xff]
      %v3682 = vld [vmem:[#allocation2 + $0x9d0] sm:$0xff]
      %v3683 = vld [vmem:[#allocation2 + $0x9d8] sm:$0xff]
      %v3684 = vld [vmem:[#allocation2 + $0x9e0] sm:$0xff]
      %v3685 = vld [vmem:[#allocation2 + $0x9e8] sm:$0xff]
      %v3686 = vld [vmem:[#allocation2 + $0x9f0] sm:$0xff]
      %v3687 = vld [vmem:[#allocation2 + $0x9f8] sm:$0xff]
      %v3688 = vld [vmem:[#allocation2 + $0xa00] sm:$0xff]
      %v3689 = vld [vmem:[#allocation2 + $0xa08] sm:$0xff]
      %v3690 = vld [vmem:[#allocation2 + $0xa10] sm:$0xff]
      %v3691 = vld [vmem:[#allocation2 + $0xa18] sm:$0xff]
      %v3692 = vld [vmem:[#allocation2 + $0xa20] sm:$0xff]
      %v3693 = vld [vmem:[#allocation2 + $0xa28] sm:$0xff]
      %v3694 = vld [vmem:[#allocation2 + $0xa30] sm:$0xff]
      %v3695 = vld [vmem:[#allocation2 + $0xa38] sm:$0xff]
      %v3696 = vld [vmem:[#allocation2 + $0xa40] sm:$0xff]
      %v3697 = vld [vmem:[#allocation2 + $0xa48] sm:$0xff]
      %v3698 = vld [vmem:[#allocation2 + $0xa50] sm:$0xff]
      %v3699 = vld [vmem:[#allocation2 + $0xa58] sm:$0xff]
      %v3700 = vld [vmem:[#allocation2 + $0xa60] sm:$0xff]
      %v3701 = vld [vmem:[#allocation2 + $0xa68] sm:$0xff]
      %v3702 = vld [vmem:[#allocation2 + $0xa70] sm:$0xff]
      %v3703 = vld [vmem:[#allocation2 + $0xa78] sm:$0xff]
      %v3704 = vld [vmem:[#allocation2 + $0xa80] sm:$0xff]
      %v3705 = vld [vmem:[#allocation2 + $0xa88] sm:$0xff]
      %v3706 = vld [vmem:[#allocation2 + $0xa90] sm:$0xff]
      %v3707 = vld [vmem:[#allocation2 + $0xa98] sm:$0xff]
      %v3708 = vld [vmem:[#allocation2 + $0xaa0] sm:$0xff]
      %v3709 = vld [vmem:[#allocation2 + $0xaa8] sm:$0xff]
      %v3710 = vld [vmem:[#allocation2 + $0xab0] sm:$0xff]
      %v3711 = vld [vmem:[#allocation2 + $0xab8] sm:$0xff]
      %v3712 = vld [vmem:[#allocation2 + $0xac0] sm:$0xff]
      %v3713 = vld [vmem:[#allocation2 + $0xac8] sm:$0xff]
      %v3714 = vld [vmem:[#allocation2 + $0xad0] sm:$0xff]
      %v3715 = vld [vmem:[#allocation2 + $0xad8] sm:$0xff]
      %v3716 = vld [vmem:[#allocation2 + $0xae0] sm:$0xff]
      %v3717 = vld [vmem:[#allocation2 + $0xae8] sm:$0xff]
      %v3718 = vld [vmem:[#allocation2 + $0xaf0] sm:$0xff]
      %v3719 = vld [vmem:[#allocation2 + $0xaf8] sm:$0xff]
      %v3720 = vld [vmem:[#allocation2 + $0xb00] sm:$0xff]
      %v3721 = vld [vmem:[#allocation2 + $0xb08] sm:$0xff]
      %v3722 = vld [vmem:[#allocation2 + $0xb10] sm:$0xff]
      %v3723 = vld [vmem:[#allocation2 + $0xb18] sm:$0xff]
      %v3724 = vld [vmem:[#allocation2 + $0xb20] sm:$0xff]
      %v3725 = vld [vmem:[#allocation2 + $0xb28] sm:$0xff]
      %v3726 = vld [vmem:[#allocation2 + $0xb30] sm:$0xff]
      %v3727 = vld [vmem:[#allocation2 + $0xb38] sm:$0xff]
      %v3728 = vld [vmem:[#allocation2 + $0xb40] sm:$0xff]
      %v3729 = vld [vmem:[#allocation2 + $0xb48] sm:$0xff]
      %v3730 = vld [vmem:[#allocation2 + $0xb50] sm:$0xff]
      %v3731 = vld [vmem:[#allocation2 + $0xb58] sm:$0xff]
      %v3732 = vld [vmem:[#allocation2 + $0xb60] sm:$0xff]
      %v3733 = vld [vmem:[#allocation2 + $0xb68] sm:$0xff]
      %v3734 = vld [vmem:[#allocation2 + $0xb70] sm:$0xff]
      %v3735 = vld [vmem:[#allocation2 + $0xb78] sm:$0xff]
      %v3736 = vld [vmem:[#allocation2 + $0xb80] sm:$0xff]
      %v3737 = vld [vmem:[#allocation2 + $0xb88] sm:$0xff]
      %v3738 = vld [vmem:[#allocation2 + $0xb90] sm:$0xff]
      %v3739 = vld [vmem:[#allocation2 + $0xb98] sm:$0xff]
      %v3740 = vld [vmem:[#allocation2 + $0xba0] sm:$0xff]
      %v3741 = vld [vmem:[#allocation2 + $0xba8] sm:$0xff]
      %v3742 = vld [vmem:[#allocation2 + $0xbb0] sm:$0xff]
      %v3743 = vld [vmem:[#allocation2 + $0xbb8] sm:$0xff]
      %v3744 = vld [vmem:[#allocation2 + $0xbc0] sm:$0xff]
      %v3745 = vld [vmem:[#allocation2 + $0xbc8] sm:$0xff]
      %v3746 = vld [vmem:[#allocation2 + $0xbd0] sm:$0xff]
      %v3747 = vld [vmem:[#allocation2 + $0xbd8] sm:$0xff]
      %v3748 = vld [vmem:[#allocation2 + $0xbe0] sm:$0xff]
      %v3749 = vld [vmem:[#allocation2 + $0xbe8] sm:$0xff]
      %v3750 = vld [vmem:[#allocation2 + $0xbf0] sm:$0xff]
      %v3751 = vld [vmem:[#allocation2 + $0xbf8] sm:$0xff]
      %v3752 = vpack.c.bf16 %v3374, %v3368
      %v3753 = vpack.c.bf16 %v3375, %v3369
      %v3754 = vpack.c.bf16 %v3376, %v3370
      %v3755 = vpack.c.bf16 %v3377, %v3371
      %v3756 = vpack.c.bf16 %v3378, %v3372
      %v3757 = vpack.c.bf16 %v3379, %v3373
      %v3758 = vpack.c.bf16 %v3386, %v3380
      %v3759 = vpack.c.bf16 %v3387, %v3381
      %v3760 = vpack.c.bf16 %v3388, %v3382
      %v3761 = vpack.c.bf16 %v3389, %v3383
      %v3762 = vpack.c.bf16 %v3390, %v3384
      %v3763 = vpack.c.bf16 %v3391, %v3385
      %v3764 = vpack.c.bf16 %v3398, %v3392
      %v3765 = vpack.c.bf16 %v3399, %v3393
      %v3766 = vpack.c.bf16 %v3400, %v3394
      %v3767 = vpack.c.bf16 %v3401, %v3395
      %v3768 = vpack.c.bf16 %v3402, %v3396
      %v3769 = vpack.c.bf16 %v3403, %v3397
      %v3770 = vpack.c.bf16 %v3410, %v3404
      %v3771 = vpack.c.bf16 %v3411, %v3405
      %v3772 = vpack.c.bf16 %v3412, %v3406
      %v3773 = vpack.c.bf16 %v3413, %v3407
      %v3774 = vpack.c.bf16 %v3414, %v3408
      %v3775 = vpack.c.bf16 %v3415, %v3409
      %v3776 = vpack.c.bf16 %v3422, %v3416
      %v3777 = vpack.c.bf16 %v3423, %v3417
      %v3778 = vpack.c.bf16 %v3424, %v3418
      %v3779 = vpack.c.bf16 %v3425, %v3419
      %v3780 = vpack.c.bf16 %v3426, %v3420
      %v3781 = vpack.c.bf16 %v3427, %v3421
      %v3782 = vpack.c.bf16 %v3434, %v3428
      %v3783 = vpack.c.bf16 %v3435, %v3429
      %v3784 = vpack.c.bf16 %v3436, %v3430
      %v3785 = vpack.c.bf16 %v3437, %v3431
      %v3786 = vpack.c.bf16 %v3438, %v3432
      %v3787 = vpack.c.bf16 %v3439, %v3433
      %v3788 = vpack.c.bf16 %v3446, %v3440
      %v3789 = vpack.c.bf16 %v3447, %v3441
      %v3790 = vpack.c.bf16 %v3448, %v3442
      %v3791 = vpack.c.bf16 %v3449, %v3443
      %v3792 = vpack.c.bf16 %v3450, %v3444
      %v3793 = vpack.c.bf16 %v3451, %v3445
      %v3794 = vpack.c.bf16 %v3458, %v3452
      %v3795 = vpack.c.bf16 %v3459, %v3453
      %v3796 = vpack.c.bf16 %v3460, %v3454
      %v3797 = vpack.c.bf16 %v3461, %v3455
      %v3798 = vpack.c.bf16 %v3462, %v3456
      %v3799 = vpack.c.bf16 %v3463, %v3457
      %v3800 = vpack.c.bf16 %v3470, %v3464
      %v3801 = vpack.c.bf16 %v3471, %v3465
      %v3802 = vpack.c.bf16 %v3472, %v3466
      %v3803 = vpack.c.bf16 %v3473, %v3467
      %v3804 = vpack.c.bf16 %v3474, %v3468
      %v3805 = vpack.c.bf16 %v3475, %v3469
      %v3806 = vpack.c.bf16 %v3482, %v3476
      %v3807 = vpack.c.bf16 %v3483, %v3477
      %v3808 = vpack.c.bf16 %v3484, %v3478
      %v3809 = vpack.c.bf16 %v3485, %v3479
      %v3810 = vpack.c.bf16 %v3486, %v3480
      %v3811 = vpack.c.bf16 %v3487, %v3481
      %v3812 = vpack.c.bf16 %v3494, %v3488
      %v3813 = vpack.c.bf16 %v3495, %v3489
      %v3814 = vpack.c.bf16 %v3496, %v3490
      %v3815 = vpack.c.bf16 %v3497, %v3491
      %v3816 = vpack.c.bf16 %v3498, %v3492
      %v3817 = vpack.c.bf16 %v3499, %v3493
      %v3818 = vpack.c.bf16 %v3506, %v3500
      %v3819 = vpack.c.bf16 %v3507, %v3501
      %v3820 = vpack.c.bf16 %v3508, %v3502
      %v3821 = vpack.c.bf16 %v3509, %v3503
      %v3822 = vpack.c.bf16 %v3510, %v3504
      %v3823 = vpack.c.bf16 %v3511, %v3505
      %v3824 = vpack.c.bf16 %v3518, %v3512
      %v3825 = vpack.c.bf16 %v3519, %v3513
      %v3826 = vpack.c.bf16 %v3520, %v3514
      %v3827 = vpack.c.bf16 %v3521, %v3515
      %v3828 = vpack.c.bf16 %v3522, %v3516
      %v3829 = vpack.c.bf16 %v3523, %v3517
      %v3830 = vpack.c.bf16 %v3530, %v3524
      %v3831 = vpack.c.bf16 %v3531, %v3525
      %v3832 = vpack.c.bf16 %v3532, %v3526
      %v3833 = vpack.c.bf16 %v3533, %v3527
      %v3834 = vpack.c.bf16 %v3534, %v3528
      %v3835 = vpack.c.bf16 %v3535, %v3529
      %v3836 = vpack.c.bf16 %v3542, %v3536
      %v3837 = vpack.c.bf16 %v3543, %v3537
      %v3838 = vpack.c.bf16 %v3544, %v3538
      %v3839 = vpack.c.bf16 %v3545, %v3539
      %v3840 = vpack.c.bf16 %v3546, %v3540
      %v3841 = vpack.c.bf16 %v3547, %v3541
      %v3842 = vpack.c.bf16 %v3554, %v3548
      %v3843 = vpack.c.bf16 %v3555, %v3549
      %v3844 = vpack.c.bf16 %v3556, %v3550
      %v3845 = vpack.c.bf16 %v3557, %v3551
      %v3846 = vpack.c.bf16 %v3558, %v3552
      %v3847 = vpack.c.bf16 %v3559, %v3553
      %v3848 = vpack.c.bf16 %v3566, %v3560
      %v3849 = vpack.c.bf16 %v3567, %v3561
      %v3850 = vpack.c.bf16 %v3568, %v3562
      %v3851 = vpack.c.bf16 %v3569, %v3563
      %v3852 = vpack.c.bf16 %v3570, %v3564
      %v3853 = vpack.c.bf16 %v3571, %v3565
      %v3854 = vpack.c.bf16 %v3578, %v3572
      %v3855 = vpack.c.bf16 %v3579, %v3573
      %v3856 = vpack.c.bf16 %v3580, %v3574
      %v3857 = vpack.c.bf16 %v3581, %v3575
      %v3858 = vpack.c.bf16 %v3582, %v3576
      %v3859 = vpack.c.bf16 %v3583, %v3577
      %v3860 = vpack.c.bf16 %v3590, %v3584
      %v3861 = vpack.c.bf16 %v3591, %v3585
      %v3862 = vpack.c.bf16 %v3592, %v3586
      %v3863 = vpack.c.bf16 %v3593, %v3587
      %v3864 = vpack.c.bf16 %v3594, %v3588
      %v3865 = vpack.c.bf16 %v3595, %v3589
      %v3866 = vpack.c.bf16 %v3602, %v3596
      %v3867 = vpack.c.bf16 %v3603, %v3597
      %v3868 = vpack.c.bf16 %v3604, %v3598
      %v3869 = vpack.c.bf16 %v3605, %v3599
      %v3870 = vpack.c.bf16 %v3606, %v3600
      %v3871 = vpack.c.bf16 %v3607, %v3601
      %v3872 = vpack.c.bf16 %v3614, %v3608
      %v3873 = vpack.c.bf16 %v3615, %v3609
      %v3874 = vpack.c.bf16 %v3616, %v3610
      %v3875 = vpack.c.bf16 %v3617, %v3611
      %v3876 = vpack.c.bf16 %v3618, %v3612
      %v3877 = vpack.c.bf16 %v3619, %v3613
      %v3878 = vpack.c.bf16 %v3626, %v3620
      %v3879 = vpack.c.bf16 %v3627, %v3621
      %v3880 = vpack.c.bf16 %v3628, %v3622
      %v3881 = vpack.c.bf16 %v3629, %v3623
      %v3882 = vpack.c.bf16 %v3630, %v3624
      %v3883 = vpack.c.bf16 %v3631, %v3625
      %v3884 = vpack.c.bf16 %v3638, %v3632
      %v3885 = vpack.c.bf16 %v3639, %v3633
      %v3886 = vpack.c.bf16 %v3640, %v3634
      %v3887 = vpack.c.bf16 %v3641, %v3635
      %v3888 = vpack.c.bf16 %v3642, %v3636
      %v3889 = vpack.c.bf16 %v3643, %v3637
      %v3890 = vpack.c.bf16 %v3650, %v3644
      %v3891 = vpack.c.bf16 %v3651, %v3645
      %v3892 = vpack.c.bf16 %v3652, %v3646
      %v3893 = vpack.c.bf16 %v3653, %v3647
      %v3894 = vpack.c.bf16 %v3654, %v3648
      %v3895 = vpack.c.bf16 %v3655, %v3649
      %v3896 = vpack.c.bf16 %v3662, %v3656
      %v3897 = vpack.c.bf16 %v3663, %v3657
      %v3898 = vpack.c.bf16 %v3664, %v3658
      %v3899 = vpack.c.bf16 %v3665, %v3659
      %v3900 = vpack.c.bf16 %v3666, %v3660
      %v3901 = vpack.c.bf16 %v3667, %v3661
      %v3902 = vpack.c.bf16 %v3674, %v3668
      %v3903 = vpack.c.bf16 %v3675, %v3669
      %v3904 = vpack.c.bf16 %v3676, %v3670
      %v3905 = vpack.c.bf16 %v3677, %v3671
      %v3906 = vpack.c.bf16 %v3678, %v3672
      %v3907 = vpack.c.bf16 %v3679, %v3673
      %v3908 = vpack.c.bf16 %v3686, %v3680
      %v3909 = vpack.c.bf16 %v3687, %v3681
      %v3910 = vpack.c.bf16 %v3688, %v3682
      %v3911 = vpack.c.bf16 %v3689, %v3683
      %v3912 = vpack.c.bf16 %v3690, %v3684
      %v3913 = vpack.c.bf16 %v3691, %v3685
      %v3914 = vpack.c.bf16 %v3698, %v3692
      %v3915 = vpack.c.bf16 %v3699, %v3693
      %v3916 = vpack.c.bf16 %v3700, %v3694
      %v3917 = vpack.c.bf16 %v3701, %v3695
      %v3918 = vpack.c.bf16 %v3702, %v3696
      %v3919 = vpack.c.bf16 %v3703, %v3697
      %v3920 = vpack.c.bf16 %v3710, %v3704
      %v3921 = vpack.c.bf16 %v3711, %v3705
      %v3922 = vpack.c.bf16 %v3712, %v3706
      %v3923 = vpack.c.bf16 %v3713, %v3707
      %v3924 = vpack.c.bf16 %v3714, %v3708
      %v3925 = vpack.c.bf16 %v3715, %v3709
      %v3926 = vpack.c.bf16 %v3722, %v3716
      %v3927 = vpack.c.bf16 %v3723, %v3717
      %v3928 = vpack.c.bf16 %v3724, %v3718
      %v3929 = vpack.c.bf16 %v3725, %v3719
      %v3930 = vpack.c.bf16 %v3726, %v3720
      %v3931 = vpack.c.bf16 %v3727, %v3721
      %v3932 = vpack.c.bf16 %v3734, %v3728
      %v3933 = vpack.c.bf16 %v3735, %v3729
      %v3934 = vpack.c.bf16 %v3736, %v3730
      %v3935 = vpack.c.bf16 %v3737, %v3731
      %v3936 = vpack.c.bf16 %v3738, %v3732
      %v3937 = vpack.c.bf16 %v3739, %v3733
      %v3938 = vpack.c.bf16 %v3746, %v3740
      %v3939 = vpack.c.bf16 %v3747, %v3741
      %v3940 = vpack.c.bf16 %v3748, %v3742
      %v3941 = vpack.c.bf16 %v3749, %v3743
      %v3942 = vpack.c.bf16 %v3750, %v3744
      %v3943 = vpack.c.bf16 %v3751, %v3745
      %v3946 = vunpack.c.l.b16 %v3366
      %v3947 = vunpack.c.h.b16 %v3366
      %v3948 = vunpack.c.l.b16 %v3367
      %v3949 = vunpack.c.h.b16 %v3367
      %v3950 = vpack.c.b16 %v3946, %v3946
      %v3951 = vpack.c.b16 %v3947, %v3947
      %v3952 = vpack.c.b16 %v3948, %v3948
      %v3953 = vpack.c.b16 %v3949, %v3949
      %3958 = vmatpush.bf16.msra.mxu0 %v3794
      %3959 = vmatpush.bf16.msra.mxu0 %v3788
      %3960 = vmatpush.bf16.msra.mxu0 %v3782
      %3961 = vmatpush.bf16.msra.mxu0 %v3776
      %3962 = vmatpush.bf16.msra.mxu0 %v3770
      %3963 = vmatpush.bf16.msra.mxu0 %v3764
      %3964 = vmatpush.bf16.msra.mxu0 %v3758
      %3965 = vmatpush.bf16.msra.mxu0 %v3752
      %3966 = vmatmul.bf16.gmra.mxu0 %v3950
      %v3967 = vpop.f32.mrf.mxu0
      %v3968 = vadd.f32 0.0, %v3967
      %v3969 = vpop.f32.mrf.mxu0
      %3970 = vdwg.mxu0
      %3971 = vmatpush.bf16.msra.mxu0 %v3842
      %3972 = vmatpush.bf16.msra.mxu0 %v3836
      %3973 = vmatpush.bf16.msra.mxu0 %v3830
      %3974 = vmatpush.bf16.msra.mxu0 %v3824
      %3975 = vmatpush.bf16.msra.mxu0 %v3818
      %3976 = vmatpush.bf16.msra.mxu0 %v3812
      %3977 = vmatpush.bf16.msra.mxu0 %v3806
      %3978 = vmatpush.bf16.msra.mxu0 %v3800
      %3979 = vmatmul.bf16.gmra.mxu0 %v3951
      %v3980 = vpop.f32.mrf.mxu0
      %v3981 = vadd.f32 %v3968, %v3980
      %v3982 = vpop.f32.mrf.mxu0
      %3983 = vdwg.mxu0
      %3984 = vmatpush.bf16.msra.mxu0 %v3890
      %3985 = vmatpush.bf16.msra.mxu0 %v3884
      %3986 = vmatpush.bf16.msra.mxu0 %v3878
      %3987 = vmatpush.bf16.msra.mxu0 %v3872
      %3988 = vmatpush.bf16.msra.mxu0 %v3866
      %3989 = vmatpush.bf16.msra.mxu0 %v3860
      %3990 = vmatpush.bf16.msra.mxu0 %v3854
      %3991 = vmatpush.bf16.msra.mxu0 %v3848
      %3992 = vmatmul.bf16.gmra.mxu0 %v3952
      %v3993 = vpop.f32.mrf.mxu0
      %v3994 = vadd.f32 %v3981, %v3993
      %v3995 = vpop.f32.mrf.mxu0
      %3996 = vdwg.mxu0
      %3997 = vmatpush.bf16.msra.mxu0 %v3938
      %3998 = vmatpush.bf16.msra.mxu0 %v3932
      %3999 = vmatpush.bf16.msra.mxu0 %v3926
      %4000 = vmatpush.bf16.msra.mxu0 %v3920
      %4001 = vmatpush.bf16.msra.mxu0 %v3914
      %4002 = vmatpush.bf16.msra.mxu0 %v3908
      %4003 = vmatpush.bf16.msra.mxu0 %v3902
      %4004 = vmatpush.bf16.msra.mxu0 %v3896
      %4005 = vmatmul.bf16.gmra.mxu0 %v3953
      %v4006 = vpop.f32.mrf.mxu0
      %v4007 = vadd.f32 %v3994, %v4006
      %v4008 = vpop.f32.mrf.mxu0
      %4009 = vdwg.mxu0
      %4010 = vmatpush.bf16.msra.mxu0 %v3795
      %4011 = vmatpush.bf16.msra.mxu0 %v3789
      %4012 = vmatpush.bf16.msra.mxu0 %v3783
      %4013 = vmatpush.bf16.msra.mxu0 %v3777
      %4014 = vmatpush.bf16.msra.mxu0 %v3771
      %4015 = vmatpush.bf16.msra.mxu0 %v3765
      %4016 = vmatpush.bf16.msra.mxu0 %v3759
      %4017 = vmatpush.bf16.msra.mxu0 %v3753
      %4018 = vmatmul.bf16.gmra.mxu0 %v3950
      %v4019 = vpop.f32.mrf.mxu0
      %v4020 = vadd.f32 0.0, %v4019
      %v4021 = vpop.f32.mrf.mxu0
      %4022 = vdwg.mxu0
      %4023 = vmatpush.bf16.msra.mxu0 %v3843
      %4024 = vmatpush.bf16.msra.mxu0 %v3837
      %4025 = vmatpush.bf16.msra.mxu0 %v3831
      %4026 = vmatpush.bf16.msra.mxu0 %v3825
      %4027 = vmatpush.bf16.msra.mxu0 %v3819
      %4028 = vmatpush.bf16.msra.mxu0 %v3813
      %4029 = vmatpush.bf16.msra.mxu0 %v3807
      %4030 = vmatpush.bf16.msra.mxu0 %v3801
      %4031 = vmatmul.bf16.gmra.mxu0 %v3951
      %v4032 = vpop.f32.mrf.mxu0
      %v4033 = vadd.f32 %v4020, %v4032
      %v4034 = vpop.f32.mrf.mxu0
      %4035 = vdwg.mxu0
      %4036 = vmatpush.bf16.msra.mxu0 %v3891
      %4037 = vmatpush.bf16.msra.mxu0 %v3885
      %4038 = vmatpush.bf16.msra.mxu0 %v3879
      %4039 = vmatpush.bf16.msra.mxu0 %v3873
      %4040 = vmatpush.bf16.msra.mxu0 %v3867
      %4041 = vmatpush.bf16.msra.mxu0 %v3861
      %4042 = vmatpush.bf16.msra.mxu0 %v3855
      %4043 = vmatpush.bf16.msra.mxu0 %v3849
      %4044 = vmatmul.bf16.gmra.mxu0 %v3952
      %v4045 = vpop.f32.mrf.mxu0
      %v4046 = vadd.f32 %v4033, %v4045
      %v4047 = vpop.f32.mrf.mxu0
      %4048 = vdwg.mxu0
      %4049 = vmatpush.bf16.msra.mxu0 %v3939
      %4050 = vmatpush.bf16.msra.mxu0 %v3933
      %4051 = vmatpush.bf16.msra.mxu0 %v3927
      %4052 = vmatpush.bf16.msra.mxu0 %v3921
      %4053 = vmatpush.bf16.msra.mxu0 %v3915
      %4054 = vmatpush.bf16.msra.mxu0 %v3909
      %4055 = vmatpush.bf16.msra.mxu0 %v3903
      %4056 = vmatpush.bf16.msra.mxu0 %v3897
      %4057 = vmatmul.bf16.gmra.mxu0 %v3953
      %v4058 = vpop.f32.mrf.mxu0
      %v4059 = vadd.f32 %v4046, %v4058
      %v4060 = vpop.f32.mrf.mxu0
      %4061 = vdwg.mxu0
      %4062 = vmatpush.bf16.msra.mxu0 %v3796
      %4063 = vmatpush.bf16.msra.mxu0 %v3790
      %4064 = vmatpush.bf16.msra.mxu0 %v3784
      %4065 = vmatpush.bf16.msra.mxu0 %v3778
      %4066 = vmatpush.bf16.msra.mxu0 %v3772
      %4067 = vmatpush.bf16.msra.mxu0 %v3766
      %4068 = vmatpush.bf16.msra.mxu0 %v3760
      %4069 = vmatpush.bf16.msra.mxu0 %v3754
      %4070 = vmatmul.bf16.gmra.mxu0 %v3950
      %v4071 = vpop.f32.mrf.mxu0
      %v4072 = vadd.f32 0.0, %v4071
      %v4073 = vpop.f32.mrf.mxu0
      %4074 = vdwg.mxu0
      %4075 = vmatpush.bf16.msra.mxu0 %v3844
      %4076 = vmatpush.bf16.msra.mxu0 %v3838
      %4077 = vmatpush.bf16.msra.mxu0 %v3832
      %4078 = vmatpush.bf16.msra.mxu0 %v3826
      %4079 = vmatpush.bf16.msra.mxu0 %v3820
      %4080 = vmatpush.bf16.msra.mxu0 %v3814
      %4081 = vmatpush.bf16.msra.mxu0 %v3808
      %4082 = vmatpush.bf16.msra.mxu0 %v3802
      %4083 = vmatmul.bf16.gmra.mxu0 %v3951
      %v4084 = vpop.f32.mrf.mxu0
      %v4085 = vadd.f32 %v4072, %v4084
      %v4086 = vpop.f32.mrf.mxu0
      %4087 = vdwg.mxu0
      %4088 = vmatpush.bf16.msra.mxu0 %v3892
      %4089 = vmatpush.bf16.msra.mxu0 %v3886
      %4090 = vmatpush.bf16.msra.mxu0 %v3880
      %4091 = vmatpush.bf16.msra.mxu0 %v3874
      %4092 = vmatpush.bf16.msra.mxu0 %v3868
      %4093 = vmatpush.bf16.msra.mxu0 %v3862
      %4094 = vmatpush.bf16.msra.mxu0 %v3856
      %4095 = vmatpush.bf16.msra.mxu0 %v3850
      %4096 = vmatmul.bf16.gmra.mxu0 %v3952
      %v4097 = vpop.f32.mrf.mxu0
      %v4098 = vadd.f32 %v4085, %v4097
      %v4099 = vpop.f32.mrf.mxu0
      %4100 = vdwg.mxu0
      %4101 = vmatpush.bf16.msra.mxu0 %v3940
      %4102 = vmatpush.bf16.msra.mxu0 %v3934
      %4103 = vmatpush.bf16.msra.mxu0 %v3928
      %4104 = vmatpush.bf16.msra.mxu0 %v3922
      %4105 = vmatpush.bf16.msra.mxu0 %v3916
      %4106 = vmatpush.bf16.msra.mxu0 %v3910
      %4107 = vmatpush.bf16.msra.mxu0 %v3904
      %4108 = vmatpush.bf16.msra.mxu0 %v3898
      %4109 = vmatmul.bf16.gmra.mxu0 %v3953
      %v4110 = vpop.f32.mrf.mxu0
      %v4111 = vadd.f32 %v4098, %v4110
      %v4112 = vpop.f32.mrf.mxu0
      %4113 = vdwg.mxu0
      %4114 = vmatpush.bf16.msra.mxu0 %v3797
      %4115 = vmatpush.bf16.msra.mxu0 %v3791
      %4116 = vmatpush.bf16.msra.mxu0 %v3785
      %4117 = vmatpush.bf16.msra.mxu0 %v3779
      %4118 = vmatpush.bf16.msra.mxu0 %v3773
      %4119 = vmatpush.bf16.msra.mxu0 %v3767
      %4120 = vmatpush.bf16.msra.mxu0 %v3761
      %4121 = vmatpush.bf16.msra.mxu0 %v3755
      %4122 = vmatmul.bf16.gmra.mxu0 %v3950
      %v4123 = vpop.f32.mrf.mxu0
      %v4124 = vadd.f32 0.0, %v4123
      %v4125 = vpop.f32.mrf.mxu0
      %4126 = vdwg.mxu0
      %4127 = vmatpush.bf16.msra.mxu0 %v3845
      %4128 = vmatpush.bf16.msra.mxu0 %v3839
      %4129 = vmatpush.bf16.msra.mxu0 %v3833
      %4130 = vmatpush.bf16.msra.mxu0 %v3827
      %4131 = vmatpush.bf16.msra.mxu0 %v3821
      %4132 = vmatpush.bf16.msra.mxu0 %v3815
      %4133 = vmatpush.bf16.msra.mxu0 %v3809
      %4134 = vmatpush.bf16.msra.mxu0 %v3803
      %4135 = vmatmul.bf16.gmra.mxu0 %v3951
      %v4136 = vpop.f32.mrf.mxu0
      %v4137 = vadd.f32 %v4124, %v4136
      %v4138 = vpop.f32.mrf.mxu0
      %4139 = vdwg.mxu0
      %4140 = vmatpush.bf16.msra.mxu0 %v3893
      %4141 = vmatpush.bf16.msra.mxu0 %v3887
      %4142 = vmatpush.bf16.msra.mxu0 %v3881
      %4143 = vmatpush.bf16.msra.mxu0 %v3875
      %4144 = vmatpush.bf16.msra.mxu0 %v3869
      %4145 = vmatpush.bf16.msra.mxu0 %v3863
      %4146 = vmatpush.bf16.msra.mxu0 %v3857
      %4147 = vmatpush.bf16.msra.mxu0 %v3851
      %4148 = vmatmul.bf16.gmra.mxu0 %v3952
      %v4149 = vpop.f32.mrf.mxu0
      %v4150 = vadd.f32 %v4137, %v4149
      %v4151 = vpop.f32.mrf.mxu0
      %4152 = vdwg.mxu0
      %4153 = vmatpush.bf16.msra.mxu0 %v3941
      %4154 = vmatpush.bf16.msra.mxu0 %v3935
      %4155 = vmatpush.bf16.msra.mxu0 %v3929
      %4156 = vmatpush.bf16.msra.mxu0 %v3923
      %4157 = vmatpush.bf16.msra.mxu0 %v3917
      %4158 = vmatpush.bf16.msra.mxu0 %v3911
      %4159 = vmatpush.bf16.msra.mxu0 %v3905
      %4160 = vmatpush.bf16.msra.mxu0 %v3899
      %4161 = vmatmul.bf16.gmra.mxu0 %v3953
      %v4162 = vpop.f32.mrf.mxu0
      %v4163 = vadd.f32 %v4150, %v4162
      %v4164 = vpop.f32.mrf.mxu0
      %4165 = vdwg.mxu0
      %4166 = vmatpush.bf16.msra.mxu0 %v3798
      %4167 = vmatpush.bf16.msra.mxu0 %v3792
      %4168 = vmatpush.bf16.msra.mxu0 %v3786
      %4169 = vmatpush.bf16.msra.mxu0 %v3780
      %4170 = vmatpush.bf16.msra.mxu0 %v3774
      %4171 = vmatpush.bf16.msra.mxu0 %v3768
      %4172 = vmatpush.bf16.msra.mxu0 %v3762
      %4173 = vmatpush.bf16.msra.mxu0 %v3756
      %4174 = vmatmul.bf16.gmra.mxu0 %v3950
      %v4175 = vpop.f32.mrf.mxu0
      %v4176 = vadd.f32 0.0, %v4175
      %v4177 = vpop.f32.mrf.mxu0
      %4178 = vdwg.mxu0
      %4179 = vmatpush.bf16.msra.mxu0 %v3846
      %4180 = vmatpush.bf16.msra.mxu0 %v3840
      %4181 = vmatpush.bf16.msra.mxu0 %v3834
      %4182 = vmatpush.bf16.msra.mxu0 %v3828
      %4183 = vmatpush.bf16.msra.mxu0 %v3822
      %4184 = vmatpush.bf16.msra.mxu0 %v3816
      %4185 = vmatpush.bf16.msra.mxu0 %v3810
      %4186 = vmatpush.bf16.msra.mxu0 %v3804
      %4187 = vmatmul.bf16.gmra.mxu0 %v3951
      %v4188 = vpop.f32.mrf.mxu0
      %v4189 = vadd.f32 %v4176, %v4188
      %v4190 = vpop.f32.mrf.mxu0
      %4191 = vdwg.mxu0
      %4192 = vmatpush.bf16.msra.mxu0 %v3894
      %4193 = vmatpush.bf16.msra.mxu0 %v3888
      %4194 = vmatpush.bf16.msra.mxu0 %v3882
      %4195 = vmatpush.bf16.msra.mxu0 %v3876
      %4196 = vmatpush.bf16.msra.mxu0 %v3870
      %4197 = vmatpush.bf16.msra.mxu0 %v3864
      %4198 = vmatpush.bf16.msra.mxu0 %v3858
      %4199 = vmatpush.bf16.msra.mxu0 %v3852
      %4200 = vmatmul.bf16.gmra.mxu0 %v3952
      %v4201 = vpop.f32.mrf.mxu0
      %v4202 = vadd.f32 %v4189, %v4201
      %v4203 = vpop.f32.mrf.mxu0
      %4204 = vdwg.mxu0
      %4205 = vmatpush.bf16.msra.mxu0 %v3942
      %4206 = vmatpush.bf16.msra.mxu0 %v3936
      %4207 = vmatpush.bf16.msra.mxu0 %v3930
      %4208 = vmatpush.bf16.msra.mxu0 %v3924
      %4209 = vmatpush.bf16.msra.mxu0 %v3918
      %4210 = vmatpush.bf16.msra.mxu0 %v3912
      %4211 = vmatpush.bf16.msra.mxu0 %v3906
      %4212 = vmatpush.bf16.msra.mxu0 %v3900
      %4213 = vmatmul.bf16.gmra.mxu0 %v3953
      %v4214 = vpop.f32.mrf.mxu0
      %v4215 = vadd.f32 %v4202, %v4214
      %v4216 = vpop.f32.mrf.mxu0
      %4217 = vdwg.mxu0
      %4218 = vmatpush.bf16.msra.mxu0 %v3799
      %4219 = vmatpush.bf16.msra.mxu0 %v3793
      %4220 = vmatpush.bf16.msra.mxu0 %v3787
      %4221 = vmatpush.bf16.msra.mxu0 %v3781
      %4222 = vmatpush.bf16.msra.mxu0 %v3775
      %4223 = vmatpush.bf16.msra.mxu0 %v3769
      %4224 = vmatpush.bf16.msra.mxu0 %v3763
      %4225 = vmatpush.bf16.msra.mxu0 %v3757
      %4226 = vmatmul.bf16.gmra.mxu0 %v3950
      %v4227 = vpop.f32.mrf.mxu0
      %v4228 = vadd.f32 0.0, %v4227
      %v4229 = vpop.f32.mrf.mxu0
      %4230 = vdwg.mxu0
      %4231 = vmatpush.bf16.msra.mxu0 %v3847
      %4232 = vmatpush.bf16.msra.mxu0 %v3841
      %4233 = vmatpush.bf16.msra.mxu0 %v3835
      %4234 = vmatpush.bf16.msra.mxu0 %v3829
      %4235 = vmatpush.bf16.msra.mxu0 %v3823
      %4236 = vmatpush.bf16.msra.mxu0 %v3817
      %4237 = vmatpush.bf16.msra.mxu0 %v3811
      %4238 = vmatpush.bf16.msra.mxu0 %v3805
      %4239 = vmatmul.bf16.gmra.mxu0 %v3951
      %v4240 = vpop.f32.mrf.mxu0
      %v4241 = vadd.f32 %v4228, %v4240
      %v4242 = vpop.f32.mrf.mxu0
      %4243 = vdwg.mxu0
      %4244 = vmatpush.bf16.msra.mxu0 %v3895
      %4245 = vmatpush.bf16.msra.mxu0 %v3889
      %4246 = vmatpush.bf16.msra.mxu0 %v3883
      %4247 = vmatpush.bf16.msra.mxu0 %v3877
      %4248 = vmatpush.bf16.msra.mxu0 %v3871
      %4249 = vmatpush.bf16.msra.mxu0 %v3865
      %4250 = vmatpush.bf16.msra.mxu0 %v3859
      %4251 = vmatpush.bf16.msra.mxu0 %v3853
      %4252 = vmatmul.bf16.gmra.mxu0 %v3952
      %v4253 = vpop.f32.mrf.mxu0
      %v4254 = vadd.f32 %v4241, %v4253
      %v4255 = vpop.f32.mrf.mxu0
      %4256 = vdwg.mxu0
      %4257 = vmatpush.bf16.msra.mxu0 %v3943
      %4258 = vmatpush.bf16.msra.mxu0 %v3937
      %4259 = vmatpush.bf16.msra.mxu0 %v3931
      %4260 = vmatpush.bf16.msra.mxu0 %v3925
      %4261 = vmatpush.bf16.msra.mxu0 %v3919
      %4262 = vmatpush.bf16.msra.mxu0 %v3913
      %4263 = vmatpush.bf16.msra.mxu0 %v3907
      %4264 = vmatpush.bf16.msra.mxu0 %v3901
      %4265 = vmatmul.bf16.gmra.mxu0 %v3953
      %v4266 = vpop.f32.mrf.mxu0
      %v4267 = vadd.f32 %v4254, %v4266
      %v4268 = vpop.f32.mrf.mxu0
      %4269 = vdwg.mxu0
      %v4270 = vlaneseq
      %v4271 = vand.u32 %v4270, 127
      %v4272 = vadd.s32 %v4271, 128
      %v4273 = vadd.s32 %v4271, 256
      %v4274 = vadd.s32 %v4271, 384
      %v4275 = vadd.s32 %v4271, 512
      %v4276 = vadd.s32 %v4271, 640
      %vm4277 = vcmp.ge.s32.totalorder %v4271, 100
      %vm4278 = vcmp.ge.s32.totalorder %v4272, 100
      %vm4279 = vcmp.ge.s32.totalorder %v4273, 100
      %vm4280 = vcmp.ge.s32.totalorder %v4274, 100
      %vm4281 = vcmp.ge.s32.totalorder %v4275, 100
      %vm4282 = vcmp.ge.s32.totalorder %v4276, 100
      %v4283 = vsub.s32 %v4271, 100
      %v4284 = vsub.s32 %v4272, 100
      %v4285 = vsub.s32 %v4273, 100
      %v4286 = vsub.s32 %v4274, 100
      %v4287 = vsub.s32 %v4275, 100
      %v4288 = vsub.s32 %v4276, 100
      %v4289 = vsel %vm4277, %v4283, %v4271
      %v4290 = vsel %vm4278, %v4284, %v4272
      %v4291 = vsel %vm4279, %v4285, %v4273
      %v4292 = vsel %vm4280, %v4286, %v4274
      %v4293 = vsel %vm4281, %v4287, %v4275
      %v4294 = vsel %vm4282, %v4288, %v4276
      %vm4295 = vcmp.ge.s32.totalorder %v4289, 100
      %vm4296 = vcmp.ge.s32.totalorder %v4290, 100
      %vm4297 = vcmp.ge.s32.totalorder %v4291, 100
      %vm4298 = vcmp.ge.s32.totalorder %v4292, 100
      %vm4299 = vcmp.ge.s32.totalorder %v4293, 100
      %vm4300 = vcmp.ge.s32.totalorder %v4294, 100
      %v4301 = vsub.s32 %v4289, 100
      %v4302 = vsub.s32 %v4290, 100
      %v4303 = vsub.s32 %v4291, 100
      %v4304 = vsub.s32 %v4292, 100
      %v4305 = vsub.s32 %v4293, 100
      %v4306 = vsub.s32 %v4294, 100
      %v4307 = vsel %vm4295, %v4301, %v4289
      %v4308 = vsel %vm4296, %v4302, %v4290
      %v4309 = vsel %vm4297, %v4303, %v4291
      %v4310 = vsel %vm4298, %v4304, %v4292
      %v4311 = vsel %vm4299, %v4305, %v4293
      %v4312 = vsel %vm4300, %v4306, %v4294
      %vm4313 = vcmp.ge.s32.totalorder %v4307, 100
      %vm4314 = vcmp.ge.s32.totalorder %v4308, 100
      %vm4315 = vcmp.ge.s32.totalorder %v4309, 100
      %vm4316 = vcmp.ge.s32.totalorder %v4310, 100
      %vm4317 = vcmp.ge.s32.totalorder %v4311, 100
      %vm4318 = vcmp.ge.s32.totalorder %v4312, 100
      %v4319 = vsub.s32 %v4307, 100
      %v4320 = vsub.s32 %v4308, 100
      %v4321 = vsub.s32 %v4309, 100
      %v4322 = vsub.s32 %v4310, 100
      %v4323 = vsub.s32 %v4311, 100
      %v4324 = vsub.s32 %v4312, 100
      %v4325 = vsel %vm4313, %v4319, %v4307
      %v4326 = vsel %vm4314, %v4320, %v4308
      %v4327 = vsel %vm4315, %v4321, %v4309
      %v4328 = vsel %vm4316, %v4322, %v4310
      %v4329 = vsel %vm4317, %v4323, %v4311
      %v4330 = vsel %vm4318, %v4324, %v4312
      %vm4331 = vcmp.ge.s32.totalorder %v4325, 100
      %vm4332 = vcmp.ge.s32.totalorder %v4326, 100
      %vm4333 = vcmp.ge.s32.totalorder %v4327, 100
      %vm4334 = vcmp.ge.s32.totalorder %v4328, 100
      %vm4335 = vcmp.ge.s32.totalorder %v4329, 100
      %vm4336 = vcmp.ge.s32.totalorder %v4330, 100
      %v4337 = vsub.s32 %v4325, 100
      %v4338 = vsub.s32 %v4326, 100
      %v4339 = vsub.s32 %v4327, 100
      %v4340 = vsub.s32 %v4328, 100
      %v4341 = vsub.s32 %v4329, 100
      %v4342 = vsub.s32 %v4330, 100
      %v4343 = vsel %vm4331, %v4337, %v4325
      %v4344 = vsel %vm4332, %v4338, %v4326
      %v4345 = vsel %vm4333, %v4339, %v4327
      %v4346 = vsel %vm4334, %v4340, %v4328
      %v4347 = vsel %vm4335, %v4341, %v4329
      %v4348 = vsel %vm4336, %v4342, %v4330
      %vm4349 = vcmp.ge.s32.totalorder %v4343, 100
      %vm4350 = vcmp.ge.s32.totalorder %v4344, 100
      %vm4351 = vcmp.ge.s32.totalorder %v4345, 100
      %vm4352 = vcmp.ge.s32.totalorder %v4346, 100
      %vm4353 = vcmp.ge.s32.totalorder %v4347, 100
      %vm4354 = vcmp.ge.s32.totalorder %v4348, 100
      %v4355 = vsub.s32 %v4343, 100
      %v4356 = vsub.s32 %v4344, 100
      %v4357 = vsub.s32 %v4345, 100
      %v4358 = vsub.s32 %v4346, 100
      %v4359 = vsub.s32 %v4347, 100
      %v4360 = vsub.s32 %v4348, 100
      %v4361 = vsel %vm4349, %v4355, %v4343
      %v4362 = vsel %vm4350, %v4356, %v4344
      %v4363 = vsel %vm4351, %v4357, %v4345
      %v4364 = vsel %vm4352, %v4358, %v4346
      %v4365 = vsel %vm4353, %v4359, %v4347
      %v4366 = vsel %vm4354, %v4360, %v4348
      %vm4367 = vcmp.ge.s32.totalorder %v4361, 100
      %vm4368 = vcmp.ge.s32.totalorder %v4362, 100
      %vm4369 = vcmp.ge.s32.totalorder %v4363, 100
      %vm4370 = vcmp.ge.s32.totalorder %v4364, 100
      %vm4371 = vcmp.ge.s32.totalorder %v4365, 100
      %vm4372 = vcmp.ge.s32.totalorder %v4366, 100
      %v4373 = vsub.s32 %v4361, 100
      %v4374 = vsub.s32 %v4362, 100
      %v4375 = vsub.s32 %v4363, 100
      %v4376 = vsub.s32 %v4364, 100
      %v4377 = vsub.s32 %v4365, 100
      %v4378 = vsub.s32 %v4366, 100
      %v4379 = vsel %vm4367, %v4373, %v4361
      %v4380 = vsel %vm4368, %v4374, %v4362
      %v4381 = vsel %vm4369, %v4375, %v4363
      %v4382 = vsel %vm4370, %v4376, %v4364
      %v4383 = vsel %vm4371, %v4377, %v4365
      %v4384 = vsel %vm4372, %v4378, %v4366
      %vm4385 = vcmp.ge.s32.totalorder %v4379, 100
      %vm4386 = vcmp.ge.s32.totalorder %v4380, 100
      %vm4387 = vcmp.ge.s32.totalorder %v4381, 100
      %vm4388 = vcmp.ge.s32.totalorder %v4382, 100
      %vm4389 = vcmp.ge.s32.totalorder %v4383, 100
      %vm4390 = vcmp.ge.s32.totalorder %v4384, 100
      %v4391 = vsub.s32 %v4379, 100
      %v4392 = vsub.s32 %v4380, 100
      %v4393 = vsub.s32 %v4381, 100
      %v4394 = vsub.s32 %v4382, 100
      %v4395 = vsub.s32 %v4383, 100
      %v4396 = vsub.s32 %v4384, 100
      %v4397 = vsel %vm4385, %v4391, %v4379
      %v4398 = vsel %vm4386, %v4392, %v4380
      %v4399 = vsel %vm4387, %v4393, %v4381
      %v4400 = vsel %vm4388, %v4394, %v4382
      %v4401 = vsel %vm4389, %v4395, %v4383
      %v4402 = vsel %vm4390, %v4396, %v4384
      %vm4403 = vcmp.ge.s32.totalorder %v4397, 10
      %vm4404 = vcmp.ge.s32.totalorder %v4398, 10
      %vm4405 = vcmp.ge.s32.totalorder %v4399, 10
      %vm4406 = vcmp.ge.s32.totalorder %v4400, 10
      %vm4407 = vcmp.ge.s32.totalorder %v4401, 10
      %vm4408 = vcmp.ge.s32.totalorder %v4402, 10
      %v4409 = vsub.s32 %v4397, 10
      %v4410 = vsub.s32 %v4398, 10
      %v4411 = vsub.s32 %v4399, 10
      %v4412 = vsub.s32 %v4400, 10
      %v4413 = vsub.s32 %v4401, 10
      %v4414 = vsub.s32 %v4402, 10
      %v4415 = vsel %vm4403, %v4409, %v4397
      %v4416 = vsel %vm4404, %v4410, %v4398
      %v4417 = vsel %vm4405, %v4411, %v4399
      %v4418 = vsel %vm4406, %v4412, %v4400
      %v4419 = vsel %vm4407, %v4413, %v4401
      %v4420 = vsel %vm4408, %v4414, %v4402
      %vm4421 = vcmp.ge.s32.totalorder %v4415, 10
      %vm4422 = vcmp.ge.s32.totalorder %v4416, 10
      %vm4423 = vcmp.ge.s32.totalorder %v4417, 10
      %vm4424 = vcmp.ge.s32.totalorder %v4418, 10
      %vm4425 = vcmp.ge.s32.totalorder %v4419, 10
      %vm4426 = vcmp.ge.s32.totalorder %v4420, 10
      %v4427 = vsub.s32 %v4415, 10
      %v4428 = vsub.s32 %v4416, 10
      %v4429 = vsub.s32 %v4417, 10
      %v4430 = vsub.s32 %v4418, 10
      %v4431 = vsub.s32 %v4419, 10
      %v4432 = vsub.s32 %v4420, 10
      %v4433 = vsel %vm4421, %v4427, %v4415
      %v4434 = vsel %vm4422, %v4428, %v4416
      %v4435 = vsel %vm4423, %v4429, %v4417
      %v4436 = vsel %vm4424, %v4430, %v4418
      %v4437 = vsel %vm4425, %v4431, %v4419
      %v4438 = vsel %vm4426, %v4432, %v4420
      %vm4439 = vcmp.ge.s32.totalorder %v4433, 10
      %vm4440 = vcmp.ge.s32.totalorder %v4434, 10
      %vm4441 = vcmp.ge.s32.totalorder %v4435, 10
      %vm4442 = vcmp.ge.s32.totalorder %v4436, 10
      %vm4443 = vcmp.ge.s32.totalorder %v4437, 10
      %vm4444 = vcmp.ge.s32.totalorder %v4438, 10
      %v4445 = vsub.s32 %v4433, 10
      %v4446 = vsub.s32 %v4434, 10
      %v4447 = vsub.s32 %v4435, 10
      %v4448 = vsub.s32 %v4436, 10
      %v4449 = vsub.s32 %v4437, 10
      %v4450 = vsub.s32 %v4438, 10
      %v4451 = vsel %vm4439, %v4445, %v4433
      %v4452 = vsel %vm4440, %v4446, %v4434
      %v4453 = vsel %vm4441, %v4447, %v4435
      %v4454 = vsel %vm4442, %v4448, %v4436
      %v4455 = vsel %vm4443, %v4449, %v4437
      %v4456 = vsel %vm4444, %v4450, %v4438
      %vm4457 = vcmp.ge.s32.totalorder %v4451, 10
      %vm4458 = vcmp.ge.s32.totalorder %v4452, 10
      %vm4459 = vcmp.ge.s32.totalorder %v4453, 10
      %vm4460 = vcmp.ge.s32.totalorder %v4454, 10
      %vm4461 = vcmp.ge.s32.totalorder %v4455, 10
      %vm4462 = vcmp.ge.s32.totalorder %v4456, 10
      %v4463 = vsub.s32 %v4451, 10
      %v4464 = vsub.s32 %v4452, 10
      %v4465 = vsub.s32 %v4453, 10
      %v4466 = vsub.s32 %v4454, 10
      %v4467 = vsub.s32 %v4455, 10
      %v4468 = vsub.s32 %v4456, 10
      %v4469 = vsel %vm4457, %v4463, %v4451
      %v4470 = vsel %vm4458, %v4464, %v4452
      %v4471 = vsel %vm4459, %v4465, %v4453
      %v4472 = vsel %vm4460, %v4466, %v4454
      %v4473 = vsel %vm4461, %v4467, %v4455
      %v4474 = vsel %vm4462, %v4468, %v4456
      %vm4475 = vcmp.ge.s32.totalorder %v4469, 10
      %vm4476 = vcmp.ge.s32.totalorder %v4470, 10
      %vm4477 = vcmp.ge.s32.totalorder %v4471, 10
      %vm4478 = vcmp.ge.s32.totalorder %v4472, 10
      %vm4479 = vcmp.ge.s32.totalorder %v4473, 10
      %vm4480 = vcmp.ge.s32.totalorder %v4474, 10
      %v4481 = vsub.s32 %v4469, 10
      %v4482 = vsub.s32 %v4470, 10
      %v4483 = vsub.s32 %v4471, 10
      %v4484 = vsub.s32 %v4472, 10
      %v4485 = vsub.s32 %v4473, 10
      %v4486 = vsub.s32 %v4474, 10
      %v4487 = vsel %vm4475, %v4481, %v4469
      %v4488 = vsel %vm4476, %v4482, %v4470
      %v4489 = vsel %vm4477, %v4483, %v4471
      %v4490 = vsel %vm4478, %v4484, %v4472
      %v4491 = vsel %vm4479, %v4485, %v4473
      %v4492 = vsel %vm4480, %v4486, %v4474
      %vm4493 = vcmp.ge.s32.totalorder %v4487, 10
      %vm4494 = vcmp.ge.s32.totalorder %v4488, 10
      %vm4495 = vcmp.ge.s32.totalorder %v4489, 10
      %vm4496 = vcmp.ge.s32.totalorder %v4490, 10
      %vm4497 = vcmp.ge.s32.totalorder %v4491, 10
      %vm4498 = vcmp.ge.s32.totalorder %v4492, 10
      %v4499 = vsub.s32 %v4487, 10
      %v4500 = vsub.s32 %v4488, 10
      %v4501 = vsub.s32 %v4489, 10
      %v4502 = vsub.s32 %v4490, 10
      %v4503 = vsub.s32 %v4491, 10
      %v4504 = vsub.s32 %v4492, 10
      %v4505 = vsel %vm4493, %v4499, %v4487
      %v4506 = vsel %vm4494, %v4500, %v4488
      %v4507 = vsel %vm4495, %v4501, %v4489
      %v4508 = vsel %vm4496, %v4502, %v4490
      %v4509 = vsel %vm4497, %v4503, %v4491
      %v4510 = vsel %vm4498, %v4504, %v4492
      %vm4511 = vcmp.ge.s32.totalorder %v4505, 10
      %vm4512 = vcmp.ge.s32.totalorder %v4506, 10
      %vm4513 = vcmp.ge.s32.totalorder %v4507, 10
      %vm4514 = vcmp.ge.s32.totalorder %v4508, 10
      %vm4515 = vcmp.ge.s32.totalorder %v4509, 10
      %vm4516 = vcmp.ge.s32.totalorder %v4510, 10
      %v4517 = vsub.s32 %v4505, 10
      %v4518 = vsub.s32 %v4506, 10
      %v4519 = vsub.s32 %v4507, 10
      %v4520 = vsub.s32 %v4508, 10
      %v4521 = vsub.s32 %v4509, 10
      %v4522 = vsub.s32 %v4510, 10
      %v4523 = vsel %vm4511, %v4517, %v4505
      %v4524 = vsel %vm4512, %v4518, %v4506
      %v4525 = vsel %vm4513, %v4519, %v4507
      %v4526 = vsel %vm4514, %v4520, %v4508
      %v4527 = vsel %vm4515, %v4521, %v4509
      %v4528 = vsel %vm4516, %v4522, %v4510
      %vm4529 = vcmp.ge.s32.totalorder %v4523, 10
      %vm4530 = vcmp.ge.s32.totalorder %v4524, 10
      %vm4531 = vcmp.ge.s32.totalorder %v4525, 10
      %vm4532 = vcmp.ge.s32.totalorder %v4526, 10
      %vm4533 = vcmp.ge.s32.totalorder %v4527, 10
      %vm4534 = vcmp.ge.s32.totalorder %v4528, 10
      %v4535 = vsub.s32 %v4523, 10
      %v4536 = vsub.s32 %v4524, 10
      %v4537 = vsub.s32 %v4525, 10
      %v4538 = vsub.s32 %v4526, 10
      %v4539 = vsub.s32 %v4527, 10
      %v4540 = vsub.s32 %v4528, 10
      %v4541 = vsel %vm4529, %v4535, %v4523
      %v4542 = vsel %vm4530, %v4536, %v4524
      %v4543 = vsel %vm4531, %v4537, %v4525
      %v4544 = vsel %vm4532, %v4538, %v4526
      %v4545 = vsel %vm4533, %v4539, %v4527
      %v4546 = vsel %vm4534, %v4540, %v4528
      %vm4547 = vcmp.ge.s32.totalorder %v4541, 10
      %vm4548 = vcmp.ge.s32.totalorder %v4542, 10
      %vm4549 = vcmp.ge.s32.totalorder %v4543, 10
      %vm4550 = vcmp.ge.s32.totalorder %v4544, 10
      %vm4551 = vcmp.ge.s32.totalorder %v4545, 10
      %vm4552 = vcmp.ge.s32.totalorder %v4546, 10
      %v4553 = vsub.s32 %v4541, 10
      %v4554 = vsub.s32 %v4542, 10
      %v4555 = vsub.s32 %v4543, 10
      %v4556 = vsub.s32 %v4544, 10
      %v4557 = vsub.s32 %v4545, 10
      %v4558 = vsub.s32 %v4546, 10
      %v4559 = vsel %vm4547, %v4553, %v4541
      %v4560 = vsel %vm4548, %v4554, %v4542
      %v4561 = vsel %vm4549, %v4555, %v4543
      %v4562 = vsel %vm4550, %v4556, %v4544
      %v4563 = vsel %vm4551, %v4557, %v4545
      %v4564 = vsel %vm4552, %v4558, %v4546
      %vm4565 = vcmp.lt.s32.totalorder %v4271, 700
      %vm4566 = vcmp.lt.s32.totalorder %v4272, 700
      %vm4567 = vcmp.lt.s32.totalorder %v4273, 700
      %vm4568 = vcmp.lt.s32.totalorder %v4274, 700
      %vm4569 = vcmp.lt.s32.totalorder %v4275, 700
      %vm4570 = vcmp.lt.s32.totalorder %v4276, 700
      %vm4571 = vcmp.lt.s32.totalorder %v4397, 70
      %vm4572 = vcmp.lt.s32.totalorder %v4398, 70
      %vm4573 = vcmp.lt.s32.totalorder %v4399, 70
      %vm4574 = vcmp.lt.s32.totalorder %v4400, 70
      %vm4575 = vcmp.lt.s32.totalorder %v4401, 70
      %vm4576 = vcmp.lt.s32.totalorder %v4402, 70
      %vm4577 = vmand %vm4565, %vm4571
      %vm4578 = vmand %vm4566, %vm4572
      %vm4579 = vmand %vm4567, %vm4573
      %vm4580 = vmand %vm4568, %vm4574
      %vm4581 = vmand %vm4569, %vm4575
      %vm4582 = vmand %vm4570, %vm4576
      %vm4583 = vcmp.lt.s32.totalorder %v4559, 7
      %vm4584 = vcmp.lt.s32.totalorder %v4560, 7
      %vm4585 = vcmp.lt.s32.totalorder %v4561, 7
      %vm4586 = vcmp.lt.s32.totalorder %v4562, 7
      %vm4587 = vcmp.lt.s32.totalorder %v4563, 7
      %vm4588 = vcmp.lt.s32.totalorder %v4564, 7
      %vm4589 = vmand %vm4577, %vm4583
      %vm4590 = vmand %vm4578, %vm4584
      %vm4591 = vmand %vm4579, %vm4585
      %vm4592 = vmand %vm4580, %vm4586
      %vm4593 = vmand %vm4581, %vm4587
      %vm4594 = vmand %vm4582, %vm4588
      %v4595 = vsel %vm4589, 1, 0
      %v4596 = vsel %vm4590, 1, 0
      %v4597 = vsel %vm4591, 1, 0
      %v4598 = vsel %vm4592, 1, 0
      %v4599 = vsel %vm4593, 1, 0
      %v4600 = vsel %vm4594, 1, 0
      %vm4601 = vcmp.eq.s32.totalorder %v4595, 1
      %vm4602 = vcmp.eq.s32.totalorder %v4596, 1
      %vm4603 = vcmp.eq.s32.totalorder %v4597, 1
      %vm4604 = vcmp.eq.s32.totalorder %v4598, 1
      %vm4605 = vcmp.eq.s32.totalorder %v4599, 1
      %vm4606 = vcmp.eq.s32.totalorder %v4600, 1
      %v4607 = vsel %vm4601, %v4007, 0.0
      %v4608 = vsel %vm4602, %v4059, 0.0
      %v4609 = vsel %vm4603, %v4111, 0.0
      %v4610 = vsel %vm4604, %v4163, 0.0
      %v4611 = vsel %vm4605, %v4215, 0.0
      %v4612 = vsel %vm4606, %v4267, 0.0
      %v4613 = vadd.f32 %v4607, %v4608
      %v4614 = vadd.f32 %v4613, %v4609
      %v4615 = vadd.f32 %v4614, %v4610
      %v4616 = vadd.f32 %v4615, %v4611
      %v4617 = vadd.f32 %v4616, %v4612
      %4618 = vadd.xlane.f32.xlu0 %v4617
      %v4619 = vpop.xlane.xlu0 %4618
      %v4620 = vmul.f32 %v4607, %v4607
      %v4621 = vmul.f32 %v4608, %v4608
      %v4622 = vmul.f32 %v4609, %v4609
      %v4623 = vmul.f32 %v4610, %v4610
      %v4624 = vmul.f32 %v4611, %v4611
      %v4625 = vmul.f32 %v4612, %v4612
      %v4626 = vadd.f32 %v4620, %v4621
      %v4627 = vadd.f32 %v4626, %v4622
      %v4628 = vadd.f32 %v4627, %v4623
      %v4629 = vadd.f32 %v4628, %v4624
      %v4630 = vadd.f32 %v4629, %v4625
      %4631 = vadd.xlane.f32.xlu0 %v4630
      %v4632 = vpop.xlane.xlu0 %4631
      %v4633 = vmul.f32 %v4619, 0.002915452
      %v4634 = vmul.f32 %v4632, 0.002915452
      %v4635 = vmul.f32 %v4633, %v4633
      %v4636 = vsub.f32 %v4634, %v4635
      %v4637 = vmax.f32 %v4636, 0.0
      %v4638 = vsub.f32 %v4007, %v4633
      %v4639 = vsub.f32 %v4059, %v4633
      %v4640 = vsub.f32 %v4111, %v4633
      %v4641 = vsub.f32 %v4163, %v4633
      %v4642 = vsub.f32 %v4215, %v4633
      %v4643 = vsub.f32 %v4267, %v4633
      %v4644 = vadd.f32 %v4637, 1e-05
      %v4645 = vrsqrt.pop %v4644
      %v4646 = vmul.f32 %v4645, %v4644
      %v4647 = vmul.f32 %v4646, %v4645
      %v4648 = vmul.f32 0.5, %v4647
      %v4649 = vsub.f32 1.5, %v4648
      %v4650 = vmul.f32 %v4645, %v4649
      %vm4651 = vweird.f32 %v4644
      %vm4652 = vweird.f32 %v4645
      %vm4653 = vmor %vm4651, %vm4652
      %v4654 = vsel %vm4653, %v4645, %v4650
      %v4655 = vmul.f32 %v4638, %v4654
      %v4656 = vmul.f32 %v4639, %v4654
      %v4657 = vmul.f32 %v4640, %v4654
      %v4658 = vmul.f32 %v4641, %v4654
      %v4659 = vmul.f32 %v4642, %v4654
      %v4660 = vmul.f32 %v4643, %v4654
      %vm4661 = vcmp.gt.f32.partialorder %v4655, 0.0
      %vm4662 = vcmp.gt.f32.partialorder %v4656, 0.0
      %vm4663 = vcmp.gt.f32.partialorder %v4657, 0.0
      %vm4664 = vcmp.gt.f32.partialorder %v4658, 0.0
      %vm4665 = vcmp.gt.f32.partialorder %v4659, 0.0
      %vm4666 = vcmp.gt.f32.partialorder %v4660, 0.0
      %v4667 = vmul.f32 %v4655, 0.2
      %v4668 = vmul.f32 %v4656, 0.2
      %v4669 = vmul.f32 %v4657, 0.2
      %v4670 = vmul.f32 %v4658, 0.2
      %v4671 = vmul.f32 %v4659, 0.2
      %v4672 = vmul.f32 %v4660, 0.2
      %v4673 = vsel %vm4661, %v4655, %v4667
      %v4674 = vsel %vm4662, %v4656, %v4668
      %v4675 = vsel %vm4663, %v4657, %v4669
      %v4676 = vsel %vm4664, %v4658, %v4670
      %v4677 = vsel %vm4665, %v4659, %v4671
      %v4678 = vsel %vm4666, %v4660, %v4672
      %4679 = vst [vmem:[%s143] sm:$0xff] %v4673
      %4680 = vst [vmem:[%s143 + $0x8] sm:$0xff] %v4674
      %4681 = vst [vmem:[%s143 + $0x10] sm:$0xff] %v4675
      %4682 = vst [vmem:[%s143 + $0x18] sm:$0xff] %v4676
      %4683 = vst [vmem:[%s143 + $0x20] sm:$0xff] %v4677
      %4684 = vst [vmem:[%s143 + $0x28] sm:$0xff] %v4678
      %p4685 = scmp.lt.s32.totalorder %s13, 1
      %s4686 = scalar_select %p4685, %s13, 1
      %s4687 = smul.addr %s4686, 6
      %s4688 = smul.addr %s4687, 8
      %s4689 = scalar_lea.vmem %s2, %s4688
      // Predicated region
      $region29: #{unet_mid_forward.1} parent=27 // pred_check
        %p4690 = pneg %p78
      $region30: #{unet_mid_forward.1} parent=27 // pred_check_branch
        %4692 = sbr.rel (%p4690) target = $region32
      $region31: #{unet_mid_forward.1} parent=27 // pred_region
        _
      $region32: #{unet_mid_forward.1} parent=27 // pred_fallthru
        _
    $region28: #{unet_mid_forward.1} parent=5 // pred_fallthru
      _
    %p4693 = scmp.le.s32.totalorder 2, %s8
    // Predicated region
    $region33: #{unet_mid_forward.1} parent=5 // pred_check
      %p4694 = pneg %p4693
    $region34: #{unet_mid_forward.1} parent=5 // pred_check_branch
      %4696 = sbr.rel (%p4694) target = $region36
    $region35: #{unet_mid_forward.1} parent=5 // pred_region
      %s4697 = ssub.s32 %s8, 2
      // Predicated region
      $region37: #{unet_mid_forward.1} parent=35 // pred_check
        %p4698 = pneg %p84
      $region38: #{unet_mid_forward.1} parent=35 // pred_check_branch
        %4700 = sbr.rel (%p4698) target = $region40
      $region39: #{unet_mid_forward.1} parent=35 // pred_region
        %p4701 = scmp.lt.s32.totalorder %s14, 1
        %s4702 = scalar_select %p4701, %s14, 1
        %s4703 = smul.addr %s4702, 6
        %s4704 = smul.addr %s4703, 8
        %s4705 = scalar_lea.vmem %s2, %s4704
      $region40: #{unet_mid_forward.1} parent=35 // pred_fallthru
        _
    $region36: #{unet_mid_forward.1} parent=5 // pred_fallthru
      _
  $region6: #{unet_mid_forward.1} parent=0 // loop_footer
    %s12 = sadd.s32 1, %s8
  $region7: #{unet_mid_forward.1} parent=0 // loop_footer_branch
    %7 = sbr.rel target = $region3
  $region8: #{unet_mid_forward.1} parent=0 // loop_exit
    _

</llo_original>
